<compile_context>
chip_gen: v6e
topology: v6e:2x2x1
jax: 0.10.0
libtpu: 0.0.40
codegen_flags: <defaults>
</compile_context>

<pallas_src>
import jax
import jax.numpy as jnp
from jax.experimental import pallas as pl
from jax.experimental.pallas import tpu as pltpu


# ---------------------------------------------------------------------------
# Fused Pallas kernel: conv1d+relu -> lstm1(+relu) -> lstm2(+relu) -> flatten -> fc
# ---------------------------------------------------------------------------

def cnn_lstm_fused_kernel(x_ref, wconv_ref, bconv_ref,
                          wih1_ref, whh1_ref, b1_ref,
                          wih2_ref, whh2_ref, b2_ref,
                          fcw_ref, fcb_ref, out_ref):
    # x_ref:   (B, C_in, L)   raw input (PyTorch NCL layout)
    # wconv:   (C_in*K, C1)   im2col conv weight, row index = k*C_in + ci
    # bconv:   (1, C1)
    # wih1/2:  (Din, 4H)      gate columns permuted to [i, f, o, g]
    # whh1/2:  (H, 4H)        gate columns permuted to [i, f, o, g]
    # b1/2:    (1, 4H)        b_ih + b_hh, gate-permuted
    # fcw:     (T*H3, 9)      fc weight transposed; fcb: (1, 9)
    # out_ref: (B, 9)
    B, C_in, L = x_ref.shape
    CK, C1 = wconv_ref.shape
    K = CK // C_in
    T = L - K + 1
    H2 = whh1_ref.shape[0]
    H3 = whh2_ref.shape[0]

    wconv, bconv = wconv_ref[...], bconv_ref[...]
    wih1, whh1, b1 = wih1_ref[...], whh1_ref[...], b1_ref[...]
    wih2, whh2, b2 = wih2_ref[...], whh2_ref[...], b2_ref[...]

    # ---- Stage 1: conv1d (one im2col matmul per batch) + ReLU, then the
    #               hoisted LSTM1 input projection for all T steps at once. ---
    gx1 = []                                     # per-batch (T, 4*H2)
    for b in range(B):
        xb = x_ref[b].T                          # (L, C_in), time on sublanes
        patches = jnp.concatenate(
            [xb[k:k + T, :] for k in range(K)], axis=1)                 # (T, C_in*K)
        conv = jnp.maximum(
            jnp.dot(patches, wconv, preferred_element_type=jnp.float32) + bconv,
            0.0)                                                        # relu(conv1d): (T, C1)
        gx1.append(jnp.dot(conv, wih1, preferred_element_type=jnp.float32) + b1)

    # ---- Stage 2: LSTM1 recurrence (batched hidden state, unrolled). --------
    #      Emitted ReLU output immediately feeds LSTM2's input projection; that
    #      per-step wih2 matmul is off the recurrence dependency chain.
    h1 = jnp.zeros((B, H2), jnp.float32)
    c1 = jnp.zeros((B, H2), jnp.float32)
    gx2 = []                                     # per-step (B, 4*H3)
    for t in range(T):
        gx_t = jnp.concatenate([g[t:t + 1, :] for g in gx1], axis=0)    # (B, 4H2)
        gates = gx_t + jnp.dot(h1, whh1, preferred_element_type=jnp.float32)
        sig = jax.nn.sigmoid(gates[:, :3 * H2])   # [i | f | o] in one EUP pass
        i_g = sig[:, 0 * H2:1 * H2]
        f_g = sig[:, 1 * H2:2 * H2]
        o_g = sig[:, 2 * H2:3 * H2]
        g_g = jnp.tanh(gates[:, 3 * H2:])
        c1 = f_g * c1 + i_g * g_g
        h1 = o_g * jnp.tanh(c1)                   # recurrence uses raw h
        x2_t = jnp.maximum(h1, 0.0)               # ReLU only on the emitted output
        gx2.append(jnp.dot(x2_t, wih2, preferred_element_type=jnp.float32) + b2)

    # ---- Stage 3: LSTM2 recurrence (batched hidden state, unrolled). --------
    h2 = jnp.zeros((B, H3), jnp.float32)
    c2 = jnp.zeros((B, H3), jnp.float32)
    y_steps = []
    for t in range(T):
        gates = gx2[t] + jnp.dot(h2, whh2, preferred_element_type=jnp.float32)
        sig = jax.nn.sigmoid(gates[:, :3 * H3])
        i_g = sig[:, 0 * H3:1 * H3]
        f_g = sig[:, 1 * H3:2 * H3]
        o_g = sig[:, 2 * H3:3 * H3]
        g_g = jnp.tanh(gates[:, 3 * H3:])
        c2 = f_g * c2 + i_g * g_g
        h2 = o_g * jnp.tanh(c2)
        y_steps.append(jnp.maximum(h2, 0.0))      # (B, H3)

    # ---- Stage 4: torch.flatten(start_dim=1) of (B, T, H3) == lane-dense
    #               concat (column order t*H3 + h), then the FC as one matmul.
    y_flat = jnp.concatenate(y_steps, axis=1)     # (B, T*H3)  -- 224 lanes
    out_ref[...] = (jnp.dot(y_flat, fcw_ref[...], preferred_element_type=jnp.float32)
                    + fcb_ref[...])


# ---------------------------------------------------------------------------
# Wrappers: one-time weight layout plumbing + the single fused pallas_call
# ---------------------------------------------------------------------------

def prepare_params(p):
    """One-time layout prep of PyTorch-layout params into kernel layouts."""
    C_out, C_in, K = p["conv_w"].shape

    def lstm_prep(w_ih, w_hh, b_ih, b_hh):
        H = w_hh.shape[1]

        def perm(m):  # PyTorch gate order [i, f, g, o] -> [i, f, o, g]
            return jnp.concatenate([m[:H], m[H:2 * H], m[3 * H:], m[2 * H:3 * H]],
                                   axis=0)

        return (perm(w_ih).T,                       # (Din, 4H)
                perm(w_hh).T,                       # (H, 4H)
                perm(b_ih + b_hh).reshape(1, 4 * H))

    wih1, whh1, b1 = lstm_prep(p["lstm1_w_ih"], p["lstm1_w_hh"],
                               p["lstm1_b_ih"], p["lstm1_b_hh"])
    wih2, whh2, b2 = lstm_prep(p["lstm2_w_ih"], p["lstm2_w_hh"],
                               p["lstm2_b_ih"], p["lstm2_b_hh"])
    return {
        # im2col weight: row index k*C_in + ci matches the in-kernel patch order
        "conv_w": jnp.transpose(p["conv_w"], (2, 1, 0)).reshape(K * C_in, C_out),
        "conv_b": p["conv_b"].reshape(1, C_out),
        "wih1": wih1, "whh1": whh1, "b1": b1,
        "wih2": wih2, "whh2": whh2, "b2": b2,
        "fc_w": p["fc_w"].T,                        # (out_dim*third_hu, 9)
        "fc_b": p["fc_b"].reshape(1, -1),
    }


def cnn_lstm_net_forward(x, kp):
    """Equivalent of CNNLSTMNet.forward with CAT_encode=False (single fused kernel)."""
    x = x.astype(jnp.float32)                       # x.float()
    B = x.shape[0]
    n_out = kp["fc_b"].shape[1]
    vmem = pl.BlockSpec(memory_space=pltpu.MemorySpace.VMEM)
    return pl.pallas_call(
        cnn_lstm_fused_kernel,
        out_shape=jax.ShapeDtypeStruct((B, n_out), jnp.float32),
        in_specs=[vmem] * 11,
        out_specs=vmem,
    )(x, kp["conv_w"], kp["conv_b"],
      kp["wih1"], kp["whh1"], kp["b1"],
      kp["wih2"], kp["whh2"], kp["b2"],
      kp["fc_w"], kp["fc_b"])


def init_params(key, input_col, first_hu, second_hu, third_hu, out_dim, window=3):
    """Parameters in the original PyTorch layouts."""
    ks = jax.random.split(key, 12)
    s = 0.1
    n = lambda k, shp: jax.random.normal(k, shp, jnp.float32) * s
    return {
        "conv_w": n(ks[0], (first_hu, input_col, window)),
        "conv_b": n(ks[1], (first_hu,)),
        "lstm1_w_ih": n(ks[2], (4 * second_hu, first_hu)),
        "lstm1_w_hh": n(ks[3], (4 * second_hu, second_hu)),
        "lstm1_b_ih": n(ks[4], (4 * second_hu,)),
        "lstm1_b_hh": n(ks[5], (4 * second_hu,)),
        "lstm2_w_ih": n(ks[6], (4 * third_hu, second_hu)),
        "lstm2_w_hh": n(ks[7], (4 * third_hu, third_hu)),
        "lstm2_b_ih": n(ks[8], (4 * third_hu,)),
        "lstm2_b_hh": n(ks[9], (4 * third_hu,)),
        "fc_w": n(ks[10], (9, out_dim * third_hu)),
        "fc_b": n(ks[11], (9,)),
    }


if __name__ == "__main__":
    batch, input_col, input_len = 2, 4, 16
    first_hu, second_hu, third_hu = 8, 16, 16
    window, stride, padding = 3, 1, 0
    out_dim = int((input_len + 2 * padding - window) / stride + 1)   # 14

    key = jax.random.PRNGKey(0)
    kx, kp = jax.random.split(key)
    x = jax.random.normal(kx, (batch, input_col, input_len), jnp.float32)
    params = init_params(kp, input_col, first_hu, second_hu, third_hu, out_dim, window)
    kparams = prepare_params(params)             # one-time layout plumbing

    fwd = jax.jit(cnn_lstm_net_forward)
    out = fwd(x, kparams)
    out = jax.block_until_ready(out)
    assert out.shape == (batch, 9), out.shape
    assert out.dtype == jnp.float32
    print("KERNEL_OK")
</pallas_src>

<mosaic_0001>
module attributes {stable_mosaic.version = 11 : i64} {
  func.func @cnn_lstm_fused_kernel(%arg0: memref<2x4x16xf32, #tpu.memory_space<vmem>>, %arg1: memref<12x8xf32, #tpu.memory_space<vmem>>, %arg2: memref<1x8xf32, #tpu.memory_space<vmem>>, %arg3: memref<8x64xf32, #tpu.memory_space<vmem>>, %arg4: memref<16x64xf32, #tpu.memory_space<vmem>>, %arg5: memref<1x64xf32, #tpu.memory_space<vmem>>, %arg6: memref<16x64xf32, #tpu.memory_space<vmem>>, %arg7: memref<16x64xf32, #tpu.memory_space<vmem>>, %arg8: memref<1x64xf32, #tpu.memory_space<vmem>>, %arg9: memref<224x9xf32, #tpu.memory_space<vmem>>, %arg10: memref<1x9xf32, #tpu.memory_space<vmem>>, %arg11: memref<2x9xf32, #tpu.memory_space<vmem>>) attributes {dimension_semantics = [], scalar_prefetch = 0 : i64, scratch_operands = 0 : i64, tpu.core_type = #tpu.core_type<tc>} {
    %c0 = arith.constant 0 : index
    %c0_0 = arith.constant 0 : index
    %0 = vector.load %arg1[%c0, %c0_0] : memref<12x8xf32, #tpu.memory_space<vmem>>, vector<12x8xf32>
    %c0_1 = arith.constant 0 : index
    %c0_2 = arith.constant 0 : index
    %1 = vector.load %arg2[%c0_1, %c0_2] : memref<1x8xf32, #tpu.memory_space<vmem>>, vector<1x8xf32>
    %c0_3 = arith.constant 0 : index
    %c0_4 = arith.constant 0 : index
    %2 = vector.load %arg3[%c0_3, %c0_4] : memref<8x64xf32, #tpu.memory_space<vmem>>, vector<8x64xf32>
    %c0_5 = arith.constant 0 : index
    %c0_6 = arith.constant 0 : index
    %3 = vector.load %arg4[%c0_5, %c0_6] : memref<16x64xf32, #tpu.memory_space<vmem>>, vector<16x64xf32>
    %c0_7 = arith.constant 0 : index
    %c0_8 = arith.constant 0 : index
    %4 = vector.load %arg5[%c0_7, %c0_8] : memref<1x64xf32, #tpu.memory_space<vmem>>, vector<1x64xf32>
    %c0_9 = arith.constant 0 : index
    %c0_10 = arith.constant 0 : index
    %5 = vector.load %arg6[%c0_9, %c0_10] : memref<16x64xf32, #tpu.memory_space<vmem>>, vector<16x64xf32>
    %c0_11 = arith.constant 0 : index
    %c0_12 = arith.constant 0 : index
    %6 = vector.load %arg7[%c0_11, %c0_12] : memref<16x64xf32, #tpu.memory_space<vmem>>, vector<16x64xf32>
    %c0_13 = arith.constant 0 : index
    %c0_14 = arith.constant 0 : index
    %7 = vector.load %arg8[%c0_13, %c0_14] : memref<1x64xf32, #tpu.memory_space<vmem>>, vector<1x64xf32>
    %c0_15 = arith.constant 0 : index
    %c0_16 = arith.constant 0 : index
    %c0_17 = arith.constant 0 : index
    %8 = vector.load %arg0[%c0_15, %c0_16, %c0_17] : memref<2x4x16xf32, #tpu.memory_space<vmem>>, vector<1x4x16xf32>
    %9 = vector.shape_cast %8 : vector<1x4x16xf32> to vector<4x16xf32>
    %10 = tpu.transpose %9, [1, 0] : vector<4x16xf32> -> vector<16x4xf32>
    %11 = vector.extract_strided_slice %10 {offsets = [0, 0], sizes = [14, 4], strides = [1, 1]} : vector<16x4xf32> to vector<14x4xf32>
    %12 = vector.extract_strided_slice %10 {offsets = [1, 0], sizes = [14, 4], strides = [1, 1]} : vector<16x4xf32> to vector<14x4xf32>
    %13 = vector.extract_strided_slice %10 {offsets = [2, 0], sizes = [14, 4], strides = [1, 1]} : vector<16x4xf32> to vector<14x4xf32>
    %14 = tpu.concatenate %11, %12, %13 in 1 : vector<14x4xf32>, vector<14x4xf32>, vector<14x4xf32> -> vector<14x12xf32>
    %cst = arith.constant dense<0.000000e+00> : vector<14x8xf32>
    %15 = tpu.matmul %14, %0, %cst {dimension_numbers = #tpu.dot_dimension_numbers<[1], [0], [0], [1], [0, 0, 1, 1], [], []>} : vector<14x12xf32>, vector<12x8xf32>, vector<14x8xf32> -> vector<14x8xf32>
    %16 = vector.broadcast %1 : vector<1x8xf32> to vector<14x8xf32>
    %17 = arith.addf %15, %16 : vector<14x8xf32>
    %cst_18 = arith.constant 0.000000e+00 : f32
    %18 = vector.broadcast %cst_18 : f32 to vector<14x8xf32>
    %19 = arith.maximumf %17, %18 : vector<14x8xf32>
    %cst_19 = arith.constant dense<0.000000e+00> : vector<14x64xf32>
    %20 = tpu.matmul %19, %2, %cst_19 {dimension_numbers = #tpu.dot_dimension_numbers<[1], [0], [0], [1], [0, 0, 1, 1], [], []>} : vector<14x8xf32>, vector<8x64xf32>, vector<14x64xf32> -> vector<14x64xf32>
    %21 = vector.broadcast %4 : vector<1x64xf32> to vector<14x64xf32>
    %22 = arith.addf %20, %21 : vector<14x64xf32>
    %c1 = arith.constant 1 : index
    %c0_20 = arith.constant 0 : index
    %c0_21 = arith.constant 0 : index
    %23 = vector.load %arg0[%c1, %c0_20, %c0_21] : memref<2x4x16xf32, #tpu.memory_space<vmem>>, vector<1x4x16xf32>
    %24 = vector.shape_cast %23 : vector<1x4x16xf32> to vector<4x16xf32>
    %25 = tpu.transpose %24, [1, 0] : vector<4x16xf32> -> vector<16x4xf32>
    %26 = vector.extract_strided_slice %25 {offsets = [0, 0], sizes = [14, 4], strides = [1, 1]} : vector<16x4xf32> to vector<14x4xf32>
    %27 = vector.extract_strided_slice %25 {offsets = [1, 0], sizes = [14, 4], strides = [1, 1]} : vector<16x4xf32> to vector<14x4xf32>
    %28 = vector.extract_strided_slice %25 {offsets = [2, 0], sizes = [14, 4], strides = [1, 1]} : vector<16x4xf32> to vector<14x4xf32>
    %29 = tpu.concatenate %26, %27, %28 in 1 : vector<14x4xf32>, vector<14x4xf32>, vector<14x4xf32> -> vector<14x12xf32>
    %cst_22 = arith.constant dense<0.000000e+00> : vector<14x8xf32>
    %30 = tpu.matmul %29, %0, %cst_22 {dimension_numbers = #tpu.dot_dimension_numbers<[1], [0], [0], [1], [0, 0, 1, 1], [], []>} : vector<14x12xf32>, vector<12x8xf32>, vector<14x8xf32> -> vector<14x8xf32>
    %31 = vector.broadcast %1 : vector<1x8xf32> to vector<14x8xf32>
    %32 = arith.addf %30, %31 : vector<14x8xf32>
    %cst_23 = arith.constant 0.000000e+00 : f32
    %33 = vector.broadcast %cst_23 : f32 to vector<14x8xf32>
    %34 = arith.maximumf %32, %33 : vector<14x8xf32>
    %cst_24 = arith.constant dense<0.000000e+00> : vector<14x64xf32>
    %35 = tpu.matmul %34, %2, %cst_24 {dimension_numbers = #tpu.dot_dimension_numbers<[1], [0], [0], [1], [0, 0, 1, 1], [], []>} : vector<14x8xf32>, vector<8x64xf32>, vector<14x64xf32> -> vector<14x64xf32>
    %36 = vector.broadcast %4 : vector<1x64xf32> to vector<14x64xf32>
    %37 = arith.addf %35, %36 : vector<14x64xf32>
    %cst_25 = arith.constant 0.000000e+00 : f32
    %38 = vector.broadcast %cst_25 : f32 to vector<2x16xf32>
    %cst_26 = arith.constant 0.000000e+00 : f32
    %39 = vector.broadcast %cst_26 : f32 to vector<2x16xf32>
    %40 = vector.extract_strided_slice %22 {offsets = [0, 0], sizes = [1, 64], strides = [1, 1]} : vector<14x64xf32> to vector<1x64xf32>
    %41 = vector.extract_strided_slice %37 {offsets = [0, 0], sizes = [1, 64], strides = [1, 1]} : vector<14x64xf32> to vector<1x64xf32>
    %42 = tpu.concatenate %40, %41 in 0 : vector<1x64xf32>, vector<1x64xf32> -> vector<2x64xf32>
    %cst_27 = arith.constant dense<0.000000e+00> : vector<2x64xf32>
    %43 = tpu.matmul %38, %3, %cst_27 {dimension_numbers = #tpu.dot_dimension_numbers<[1], [0], [0], [1], [0, 0, 1, 1], [], []>} : vector<2x16xf32>, vector<16x64xf32>, vector<2x64xf32> -> vector<2x64xf32>
    %44 = arith.addf %42, %43 : vector<2x64xf32>
    %45 = vector.extract_strided_slice %44 {offsets = [0, 0], sizes = [2, 48], strides = [1, 1]} : vector<2x64xf32> to vector<2x48xf32>
    %46 = arith.negf %45 : vector<2x48xf32>
    %47 = math.exp %46 : vector<2x48xf32>
    %cst_28 = arith.constant 1.000000e+00 : f32
    %48 = vector.broadcast %cst_28 : f32 to vector<2x48xf32>
    %49 = arith.addf %48, %47 : vector<2x48xf32>
    %50 = arith.divf %48, %49 : vector<2x48xf32>
    %51 = vector.extract_strided_slice %50 {offsets = [0, 0], sizes = [2, 16], strides = [1, 1]} : vector<2x48xf32> to vector<2x16xf32>
    %52 = vector.extract_strided_slice %50 {offsets = [0, 16], sizes = [2, 16], strides = [1, 1]} : vector<2x48xf32> to vector<2x16xf32>
    %53 = vector.extract_strided_slice %50 {offsets = [0, 32], sizes = [2, 16], strides = [1, 1]} : vector<2x48xf32> to vector<2x16xf32>
    %54 = vector.extract_strided_slice %44 {offsets = [0, 48], sizes = [2, 16], strides = [1, 1]} : vector<2x64xf32> to vector<2x16xf32>
    %55 = math.tanh %54 : vector<2x16xf32>
    %56 = arith.mulf %52, %39 : vector<2x16xf32>
    %57 = arith.mulf %51, %55 : vector<2x16xf32>
    %58 = arith.addf %56, %57 : vector<2x16xf32>
    %59 = math.tanh %58 : vector<2x16xf32>
    %60 = arith.mulf %53, %59 : vector<2x16xf32>
    %cst_29 = arith.constant 0.000000e+00 : f32
    %61 = vector.broadcast %cst_29 : f32 to vector<2x16xf32>
    %62 = arith.maximumf %60, %61 : vector<2x16xf32>
    %cst_30 = arith.constant dense<0.000000e+00> : vector<2x64xf32>
    %63 = tpu.matmul %62, %5, %cst_30 {dimension_numbers = #tpu.dot_dimension_numbers<[1], [0], [0], [1], [0, 0, 1, 1], [], []>} : vector<2x16xf32>, vector<16x64xf32>, vector<2x64xf32> -> vector<2x64xf32>
    %64 = vector.broadcast %7 : vector<1x64xf32> to vector<2x64xf32>
    %65 = arith.addf %63, %64 : vector<2x64xf32>
    %66 = vector.extract_strided_slice %22 {offsets = [1, 0], sizes = [1, 64], strides = [1, 1]} : vector<14x64xf32> to vector<1x64xf32>
    %67 = vector.extract_strided_slice %37 {offsets = [1, 0], sizes = [1, 64], strides = [1, 1]} : vector<14x64xf32> to vector<1x64xf32>
    %68 = tpu.concatenate %66, %67 in 0 : vector<1x64xf32>, vector<1x64xf32> -> vector<2x64xf32>
    %cst_31 = arith.constant dense<0.000000e+00> : vector<2x64xf32>
    %69 = tpu.matmul %60, %3, %cst_31 {dimension_numbers = #tpu.dot_dimension_numbers<[1], [0], [0], [1], [0, 0, 1, 1], [], []>} : vector<2x16xf32>, vector<16x64xf32>, vector<2x64xf32> -> vector<2x64xf32>
    %70 = arith.addf %68, %69 : vector<2x64xf32>
    %71 = vector.extract_strided_slice %70 {offsets = [0, 0], sizes = [2, 48], strides = [1, 1]} : vector<2x64xf32> to vector<2x48xf32>
    %72 = arith.negf %71 : vector<2x48xf32>
    %73 = math.exp %72 : vector<2x48xf32>
    %cst_32 = arith.constant 1.000000e+00 : f32
    %74 = vector.broadcast %cst_32 : f32 to vector<2x48xf32>
    %75 = arith.addf %74, %73 : vector<2x48xf32>
    %76 = arith.divf %74, %75 : vector<2x48xf32>
    %77 = vector.extract_strided_slice %76 {offsets = [0, 0], sizes = [2, 16], strides = [1, 1]} : vector<2x48xf32> to vector<2x16xf32>
    %78 = vector.extract_strided_slice %76 {offsets = [0, 16], sizes = [2, 16], strides = [1, 1]} : vector<2x48xf32> to vector<2x16xf32>
    %79 = vector.extract_strided_slice %76 {offsets = [0, 32], sizes = [2, 16], strides = [1, 1]} : vector<2x48xf32> to vector<2x16xf32>
    %80 = vector.extract_strided_slice %70 {offsets = [0, 48], sizes = [2, 16], strides = [1, 1]} : vector<2x64xf32> to vector<2x16xf32>
    %81 = math.tanh %80 : vector<2x16xf32>
    %82 = arith.mulf %78, %58 : vector<2x16xf32>
    %83 = arith.mulf %77, %81 : vector<2x16xf32>
    %84 = arith.addf %82, %83 : vector<2x16xf32>
    %85 = math.tanh %84 : vector<2x16xf32>
    %86 = arith.mulf %79, %85 : vector<2x16xf32>
    %cst_33 = arith.constant 0.000000e+00 : f32
    %87 = vector.broadcast %cst_33 : f32 to vector<2x16xf32>
    %88 = arith.maximumf %86, %87 : vector<2x16xf32>
    %cst_34 = arith.constant dense<0.000000e+00> : vector<2x64xf32>
    %89 = tpu.matmul %88, %5, %cst_34 {dimension_numbers = #tpu.dot_dimension_numbers<[1], [0], [0], [1], [0, 0, 1, 1], [], []>} : vector<2x16xf32>, vector<16x64xf32>, vector<2x64xf32> -> vector<2x64xf32>
    %90 = vector.broadcast %7 : vector<1x64xf32> to vector<2x64xf32>
    %91 = arith.addf %89, %90 : vector<2x64xf32>
    %92 = vector.extract_strided_slice %22 {offsets = [2, 0], sizes = [1, 64], strides = [1, 1]} : vector<14x64xf32> to vector<1x64xf32>
    %93 = vector.extract_strided_slice %37 {offsets = [2, 0], sizes = [1, 64], strides = [1, 1]} : vector<14x64xf32> to vector<1x64xf32>
    %94 = tpu.concatenate %92, %93 in 0 : vector<1x64xf32>, vector<1x64xf32> -> vector<2x64xf32>
    %cst_35 = arith.constant dense<0.000000e+00> : vector<2x64xf32>
    %95 = tpu.matmul %86, %3, %cst_35 {dimension_numbers = #tpu.dot_dimension_numbers<[1], [0], [0], [1], [0, 0, 1, 1], [], []>} : vector<2x16xf32>, vector<16x64xf32>, vector<2x64xf32> -> vector<2x64xf32>
    %96 = arith.addf %94, %95 : vector<2x64xf32>
    %97 = vector.extract_strided_slice %96 {offsets = [0, 0], sizes = [2, 48], strides = [1, 1]} : vector<2x64xf32> to vector<2x48xf32>
    %98 = arith.negf %97 : vector<2x48xf32>
    %99 = math.exp %98 : vector<2x48xf32>
    %cst_36 = arith.constant 1.000000e+00 : f32
    %100 = vector.broadcast %cst_36 : f32 to vector<2x48xf32>
    %101 = arith.addf %100, %99 : vector<2x48xf32>
    %102 = arith.divf %100, %101 : vector<2x48xf32>
    %103 = vector.extract_strided_slice %102 {offsets = [0, 0], sizes = [2, 16], strides = [1, 1]} : vector<2x48xf32> to vector<2x16xf32>
    %104 = vector.extract_strided_slice %102 {offsets = [0, 16], sizes = [2, 16], strides = [1, 1]} : vector<2x48xf32> to vector<2x16xf32>
    %105 = vector.extract_strided_slice %102 {offsets = [0, 32], sizes = [2, 16], strides = [1, 1]} : vector<2x48xf32> to vector<2x16xf32>
    %106 = vector.extract_strided_slice %96 {offsets = [0, 48], sizes = [2, 16], strides = [1, 1]} : vector<2x64xf32> to vector<2x16xf32>
    %107 = math.tanh %106 : vector<2x16xf32>
    %108 = arith.mulf %104, %84 : vector<2x16xf32>
    %109 = arith.mulf %103, %107 : vector<2x16xf32>
    %110 = arith.addf %108, %109 : vector<2x16xf32>
    %111 = math.tanh %110 : vector<2x16xf32>
    %112 = arith.mulf %105, %111 : vector<2x16xf32>
    %cst_37 = arith.constant 0.000000e+00 : f32
    %113 = vector.broadcast %cst_37 : f32 to vector<2x16xf32>
    %114 = arith.maximumf %112, %113 : vector<2x16xf32>
    %cst_38 = arith.constant dense<0.000000e+00> : vector<2x64xf32>
    %115 = tpu.matmul %114, %5, %cst_38 {dimension_numbers = #tpu.dot_dimension_numbers<[1], [0], [0], [1], [0, 0, 1, 1], [], []>} : vector<2x16xf32>, vector<16x64xf32>, vector<2x64xf32> -> vector<2x64xf32>
    %116 = vector.broadcast %7 : vector<1x64xf32> to vector<2x64xf32>
    %117 = arith.addf %115, %116 : vector<2x64xf32>
    %118 = vector.extract_strided_slice %22 {offsets = [3, 0], sizes = [1, 64], strides = [1, 1]} : vector<14x64xf32> to vector<1x64xf32>
    %119 = vector.extract_strided_slice %37 {offsets = [3, 0], sizes = [1, 64], strides = [1, 1]} : vector<14x64xf32> to vector<1x64xf32>
    %120 = tpu.concatenate %118, %119 in 0 : vector<1x64xf32>, vector<1x64xf32> -> vector<2x64xf32>
    %cst_39 = arith.constant dense<0.000000e+00> : vector<2x64xf32>
    %121 = tpu.matmul %112, %3, %cst_39 {dimension_numbers = #tpu.dot_dimension_numbers<[1], [0], [0], [1], [0, 0, 1, 1], [], []>} : vector<2x16xf32>, vector<16x64xf32>, vector<2x64xf32> -> vector<2x64xf32>
    %122 = arith.addf %120, %121 : vector<2x64xf32>
    %123 = vector.extract_strided_slice %122 {offsets = [0, 0], sizes = [2, 48], strides = [1, 1]} : vector<2x64xf32> to vector<2x48xf32>
    %124 = arith.negf %123 : vector<2x48xf32>
    %125 = math.exp %124 : vector<2x48xf32>
    %cst_40 = arith.constant 1.000000e+00 : f32
    %126 = vector.broadcast %cst_40 : f32 to vector<2x48xf32>
    %127 = arith.addf %126, %125 : vector<2x48xf32>
    %128 = arith.divf %126, %127 : vector<2x48xf32>
    %129 = vector.extract_strided_slice %128 {offsets = [0, 0], sizes = [2, 16], strides = [1, 1]} : vector<2x48xf32> to vector<2x16xf32>
    %130 = vector.extract_strided_slice %128 {offsets = [0, 16], sizes = [2, 16], strides = [1, 1]} : vector<2x48xf32> to vector<2x16xf32>
    %131 = vector.extract_strided_slice %128 {offsets = [0, 32], sizes = [2, 16], strides = [1, 1]} : vector<2x48xf32> to vector<2x16xf32>
    %132 = vector.extract_strided_slice %122 {offsets = [0, 48], sizes = [2, 16], strides = [1, 1]} : vector<2x64xf32> to vector<2x16xf32>
    %133 = math.tanh %132 : vector<2x16xf32>
    %134 = arith.mulf %130, %110 : vector<2x16xf32>
    %135 = arith.mulf %129, %133 : vector<2x16xf32>
    %136 = arith.addf %134, %135 : vector<2x16xf32>
    %137 = math.tanh %136 : vector<2x16xf32>
    %138 = arith.mulf %131, %137 : vector<2x16xf32>
    %cst_41 = arith.constant 0.000000e+00 : f32
    %139 = vector.broadcast %cst_41 : f32 to vector<2x16xf32>
    %140 = arith.maximumf %138, %139 : vector<2x16xf32>
    %cst_42 = arith.constant dense<0.000000e+00> : vector<2x64xf32>
    %141 = tpu.matmul %140, %5, %cst_42 {dimension_numbers = #tpu.dot_dimension_numbers<[1], [0], [0], [1], [0, 0, 1, 1], [], []>} : vector<2x16xf32>, vector<16x64xf32>, vector<2x64xf32> -> vector<2x64xf32>
    %142 = vector.broadcast %7 : vector<1x64xf32> to vector<2x64xf32>
    %143 = arith.addf %141, %142 : vector<2x64xf32>
    %144 = vector.extract_strided_slice %22 {offsets = [4, 0], sizes = [1, 64], strides = [1, 1]} : vector<14x64xf32> to vector<1x64xf32>
    %145 = vector.extract_strided_slice %37 {offsets = [4, 0], sizes = [1, 64], strides = [1, 1]} : vector<14x64xf32> to vector<1x64xf32>
    %146 = tpu.concatenate %144, %145 in 0 : vector<1x64xf32>, vector<1x64xf32> -> vector<2x64xf32>
    %cst_43 = arith.constant dense<0.000000e+00> : vector<2x64xf32>
    %147 = tpu.matmul %138, %3, %cst_43 {dimension_numbers = #tpu.dot_dimension_numbers<[1], [0], [0], [1], [0, 0, 1, 1], [], []>} : vector<2x16xf32>, vector<16x64xf32>, vector<2x64xf32> -> vector<2x64xf32>
    %148 = arith.addf %146, %147 : vector<2x64xf32>
    %149 = vector.extract_strided_slice %148 {offsets = [0, 0], sizes = [2, 48], strides = [1, 1]} : vector<2x64xf32> to vector<2x48xf32>
    %150 = arith.negf %149 : vector<2x48xf32>
    %151 = math.exp %150 : vector<2x48xf32>
    %cst_44 = arith.constant 1.000000e+00 : f32
    %152 = vector.broadcast %cst_44 : f32 to vector<2x48xf32>
    %153 = arith.addf %152, %151 : vector<2x48xf32>
    %154 = arith.divf %152, %153 : vector<2x48xf32>
    %155 = vector.extract_strided_slice %154 {offsets = [0, 0], sizes = [2, 16], strides = [1, 1]} : vector<2x48xf32> to vector<2x16xf32>
    %156 = vector.extract_strided_slice %154 {offsets = [0, 16], sizes = [2, 16], strides = [1, 1]} : vector<2x48xf32> to vector<2x16xf32>
    %157 = vector.extract_strided_slice %154 {offsets = [0, 32], sizes = [2, 16], strides = [1, 1]} : vector<2x48xf32> to vector<2x16xf32>
    %158 = vector.extract_strided_slice %148 {offsets = [0, 48], sizes = [2, 16], strides = [1, 1]} : vector<2x64xf32> to vector<2x16xf32>
    %159 = math.tanh %158 : vector<2x16xf32>
    %160 = arith.mulf %156, %136 : vector<2x16xf32>
    %161 = arith.mulf %155, %159 : vector<2x16xf32>
    %162 = arith.addf %160, %161 : vector<2x16xf32>
    %163 = math.tanh %162 : vector<2x16xf32>
    %164 = arith.mulf %157, %163 : vector<2x16xf32>
    %cst_45 = arith.constant 0.000000e+00 : f32
    %165 = vector.broadcast %cst_45 : f32 to vector<2x16xf32>
    %166 = arith.maximumf %164, %165 : vector<2x16xf32>
    %cst_46 = arith.constant dense<0.000000e+00> : vector<2x64xf32>
    %167 = tpu.matmul %166, %5, %cst_46 {dimension_numbers = #tpu.dot_dimension_numbers<[1], [0], [0], [1], [0, 0, 1, 1], [], []>} : vector<2x16xf32>, vector<16x64xf32>, vector<2x64xf32> -> vector<2x64xf32>
    %168 = vector.broadcast %7 : vector<1x64xf32> to vector<2x64xf32>
    %169 = arith.addf %167, %168 : vector<2x64xf32>
    %170 = vector.extract_strided_slice %22 {offsets = [5, 0], sizes = [1, 64], strides = [1, 1]} : vector<14x64xf32> to vector<1x64xf32>
    %171 = vector.extract_strided_slice %37 {offsets = [5, 0], sizes = [1, 64], strides = [1, 1]} : vector<14x64xf32> to vector<1x64xf32>
    %172 = tpu.concatenate %170, %171 in 0 : vector<1x64xf32>, vector<1x64xf32> -> vector<2x64xf32>
    %cst_47 = arith.constant dense<0.000000e+00> : vector<2x64xf32>
    %173 = tpu.matmul %164, %3, %cst_47 {dimension_numbers = #tpu.dot_dimension_numbers<[1], [0], [0], [1], [0, 0, 1, 1], [], []>} : vector<2x16xf32>, vector<16x64xf32>, vector<2x64xf32> -> vector<2x64xf32>
    %174 = arith.addf %172, %173 : vector<2x64xf32>
    %175 = vector.extract_strided_slice %174 {offsets = [0, 0], sizes = [2, 48], strides = [1, 1]} : vector<2x64xf32> to vector<2x48xf32>
    %176 = arith.negf %175 : vector<2x48xf32>
    %177 = math.exp %176 : vector<2x48xf32>
    %cst_48 = arith.constant 1.000000e+00 : f32
    %178 = vector.broadcast %cst_48 : f32 to vector<2x48xf32>
    %179 = arith.addf %178, %177 : vector<2x48xf32>
    %180 = arith.divf %178, %179 : vector<2x48xf32>
    %181 = vector.extract_strided_slice %180 {offsets = [0, 0], sizes = [2, 16], strides = [1, 1]} : vector<2x48xf32> to vector<2x16xf32>
    %182 = vector.extract_strided_slice %180 {offsets = [0, 16], sizes = [2, 16], strides = [1, 1]} : vector<2x48xf32> to vector<2x16xf32>
    %183 = vector.extract_strided_slice %180 {offsets = [0, 32], sizes = [2, 16], strides = [1, 1]} : vector<2x48xf32> to vector<2x16xf32>
    %184 = vector.extract_strided_slice %174 {offsets = [0, 48], sizes = [2, 16], strides = [1, 1]} : vector<2x64xf32> to vector<2x16xf32>
    %185 = math.tanh %184 : vector<2x16xf32>
    %186 = arith.mulf %182, %162 : vector<2x16xf32>
    %187 = arith.mulf %181, %185 : vector<2x16xf32>
    %188 = arith.addf %186, %187 : vector<2x16xf32>
    %189 = math.tanh %188 : vector<2x16xf32>
    %190 = arith.mulf %183, %189 : vector<2x16xf32>
    %cst_49 = arith.constant 0.000000e+00 : f32
    %191 = vector.broadcast %cst_49 : f32 to vector<2x16xf32>
    %192 = arith.maximumf %190, %191 : vector<2x16xf32>
    %cst_50 = arith.constant dense<0.000000e+00> : vector<2x64xf32>
    %193 = tpu.matmul %192, %5, %cst_50 {dimension_numbers = #tpu.dot_dimension_numbers<[1], [0], [0], [1], [0, 0, 1, 1], [], []>} : vector<2x16xf32>, vector<16x64xf32>, vector<2x64xf32> -> vector<2x64xf32>
    %194 = vector.broadcast %7 : vector<1x64xf32> to vector<2x64xf32>
    %195 = arith.addf %193, %194 : vector<2x64xf32>
    %196 = vector.extract_strided_slice %22 {offsets = [6, 0], sizes = [1, 64], strides = [1, 1]} : vector<14x64xf32> to vector<1x64xf32>
    %197 = vector.extract_strided_slice %37 {offsets = [6, 0], sizes = [1, 64], strides = [1, 1]} : vector<14x64xf32> to vector<1x64xf32>
    %198 = tpu.concatenate %196, %197 in 0 : vector<1x64xf32>, vector<1x64xf32> -> vector<2x64xf32>
    %cst_51 = arith.constant dense<0.000000e+00> : vector<2x64xf32>
    %199 = tpu.matmul %190, %3, %cst_51 {dimension_numbers = #tpu.dot_dimension_numbers<[1], [0], [0], [1], [0, 0, 1, 1], [], []>} : vector<2x16xf32>, vector<16x64xf32>, vector<2x64xf32> -> vector<2x64xf32>
    %200 = arith.addf %198, %199 : vector<2x64xf32>
    %201 = vector.extract_strided_slice %200 {offsets = [0, 0], sizes = [2, 48], strides = [1, 1]} : vector<2x64xf32> to vector<2x48xf32>
    %202 = arith.negf %201 : vector<2x48xf32>
    %203 = math.exp %202 : vector<2x48xf32>
    %cst_52 = arith.constant 1.000000e+00 : f32
    %204 = vector.broadcast %cst_52 : f32 to vector<2x48xf32>
    %205 = arith.addf %204, %203 : vector<2x48xf32>
    %206 = arith.divf %204, %205 : vector<2x48xf32>
    %207 = vector.extract_strided_slice %206 {offsets = [0, 0], sizes = [2, 16], strides = [1, 1]} : vector<2x48xf32> to vector<2x16xf32>
    %208 = vector.extract_strided_slice %206 {offsets = [0, 16], sizes = [2, 16], strides = [1, 1]} : vector<2x48xf32> to vector<2x16xf32>
    %209 = vector.extract_strided_slice %206 {offsets = [0, 32], sizes = [2, 16], strides = [1, 1]} : vector<2x48xf32> to vector<2x16xf32>
    %210 = vector.extract_strided_slice %200 {offsets = [0, 48], sizes = [2, 16], strides = [1, 1]} : vector<2x64xf32> to vector<2x16xf32>
    %211 = math.tanh %210 : vector<2x16xf32>
    %212 = arith.mulf %208, %188 : vector<2x16xf32>
    %213 = arith.mulf %207, %211 : vector<2x16xf32>
    %214 = arith.addf %212, %213 : vector<2x16xf32>
    %215 = math.tanh %214 : vector<2x16xf32>
    %216 = arith.mulf %209, %215 : vector<2x16xf32>
    %cst_53 = arith.constant 0.000000e+00 : f32
    %217 = vector.broadcast %cst_53 : f32 to vector<2x16xf32>
    %218 = arith.maximumf %216, %217 : vector<2x16xf32>
    %cst_54 = arith.constant dense<0.000000e+00> : vector<2x64xf32>
    %219 = tpu.matmul %218, %5, %cst_54 {dimension_numbers = #tpu.dot_dimension_numbers<[1], [0], [0], [1], [0, 0, 1, 1], [], []>} : vector<2x16xf32>, vector<16x64xf32>, vector<2x64xf32> -> vector<2x64xf32>
    %220 = vector.broadcast %7 : vector<1x64xf32> to vector<2x64xf32>
    %221 = arith.addf %219, %220 : vector<2x64xf32>
    %222 = vector.extract_strided_slice %22 {offsets = [7, 0], sizes = [1, 64], strides = [1, 1]} : vector<14x64xf32> to vector<1x64xf32>
    %223 = vector.extract_strided_slice %37 {offsets = [7, 0], sizes = [1, 64], strides = [1, 1]} : vector<14x64xf32> to vector<1x64xf32>
    %224 = tpu.concatenate %222, %223 in 0 : vector<1x64xf32>, vector<1x64xf32> -> vector<2x64xf32>
    %cst_55 = arith.constant dense<0.000000e+00> : vector<2x64xf32>
    %225 = tpu.matmul %216, %3, %cst_55 {dimension_numbers = #tpu.dot_dimension_numbers<[1], [0], [0], [1], [0, 0, 1, 1], [], []>} : vector<2x16xf32>, vector<16x64xf32>, vector<2x64xf32> -> vector<2x64xf32>
    %226 = arith.addf %224, %225 : vector<2x64xf32>
    %227 = vector.extract_strided_slice %226 {offsets = [0, 0], sizes = [2, 48], strides = [1, 1]} : vector<2x64xf32> to vector<2x48xf32>
    %228 = arith.negf %227 : vector<2x48xf32>
    %229 = math.exp %228 : vector<2x48xf32>
    %cst_56 = arith.constant 1.000000e+00 : f32
    %230 = vector.broadcast %cst_56 : f32 to vector<2x48xf32>
    %231 = arith.addf %230, %229 : vector<2x48xf32>
    %232 = arith.divf %230, %231 : vector<2x48xf32>
    %233 = vector.extract_strided_slice %232 {offsets = [0, 0], sizes = [2, 16], strides = [1, 1]} : vector<2x48xf32> to vector<2x16xf32>
    %234 = vector.extract_strided_slice %232 {offsets = [0, 16], sizes = [2, 16], strides = [1, 1]} : vector<2x48xf32> to vector<2x16xf32>
    %235 = vector.extract_strided_slice %232 {offsets = [0, 32], sizes = [2, 16], strides = [1, 1]} : vector<2x48xf32> to vector<2x16xf32>
    %236 = vector.extract_strided_slice %226 {offsets = [0, 48], sizes = [2, 16], strides = [1, 1]} : vector<2x64xf32> to vector<2x16xf32>
    %237 = math.tanh %236 : vector<2x16xf32>
    %238 = arith.mulf %234, %214 : vector<2x16xf32>
    %239 = arith.mulf %233, %237 : vector<2x16xf32>
    %240 = arith.addf %238, %239 : vector<2x16xf32>
    %241 = math.tanh %240 : vector<2x16xf32>
    %242 = arith.mulf %235, %241 : vector<2x16xf32>
    %cst_57 = arith.constant 0.000000e+00 : f32
    %243 = vector.broadcast %cst_57 : f32 to vector<2x16xf32>
    %244 = arith.maximumf %242, %243 : vector<2x16xf32>
    %cst_58 = arith.constant dense<0.000000e+00> : vector<2x64xf32>
    %245 = tpu.matmul %244, %5, %cst_58 {dimension_numbers = #tpu.dot_dimension_numbers<[1], [0], [0], [1], [0, 0, 1, 1], [], []>} : vector<2x16xf32>, vector<16x64xf32>, vector<2x64xf32> -> vector<2x64xf32>
    %246 = vector.broadcast %7 : vector<1x64xf32> to vector<2x64xf32>
    %247 = arith.addf %245, %246 : vector<2x64xf32>
    %248 = vector.extract_strided_slice %22 {offsets = [8, 0], sizes = [1, 64], strides = [1, 1]} : vector<14x64xf32> to vector<1x64xf32>
    %249 = vector.extract_strided_slice %37 {offsets = [8, 0], sizes = [1, 64], strides = [1, 1]} : vector<14x64xf32> to vector<1x64xf32>
    %250 = tpu.concatenate %248, %249 in 0 : vector<1x64xf32>, vector<1x64xf32> -> vector<2x64xf32>
    %cst_59 = arith.constant dense<0.000000e+00> : vector<2x64xf32>
    %251 = tpu.matmul %242, %3, %cst_59 {dimension_numbers = #tpu.dot_dimension_numbers<[1], [0], [0], [1], [0, 0, 1, 1], [], []>} : vector<2x16xf32>, vector<16x64xf32>, vector<2x64xf32> -> vector<2x64xf32>
    %252 = arith.addf %250, %251 : vector<2x64xf32>
    %253 = vector.extract_strided_slice %252 {offsets = [0, 0], sizes = [2, 48], strides = [1, 1]} : vector<2x64xf32> to vector<2x48xf32>
    %254 = arith.negf %253 : vector<2x48xf32>
    %255 = math.exp %254 : vector<2x48xf32>
    %cst_60 = arith.constant 1.000000e+00 : f32
    %256 = vector.broadcast %cst_60 : f32 to vector<2x48xf32>
    %257 = arith.addf %256, %255 : vector<2x48xf32>
    %258 = arith.divf %256, %257 : vector<2x48xf32>
    %259 = vector.extract_strided_slice %258 {offsets = [0, 0], sizes = [2, 16], strides = [1, 1]} : vector<2x48xf32> to vector<2x16xf32>
    %260 = vector.extract_strided_slice %258 {offsets = [0, 16], sizes = [2, 16], strides = [1, 1]} : vector<2x48xf32> to vector<2x16xf32>
    %261 = vector.extract_strided_slice %258 {offsets = [0, 32], sizes = [2, 16], strides = [1, 1]} : vector<2x48xf32> to vector<2x16xf32>
    %262 = vector.extract_strided_slice %252 {offsets = [0, 48], sizes = [2, 16], strides = [1, 1]} : vector<2x64xf32> to vector<2x16xf32>
    %263 = math.tanh %262 : vector<2x16xf32>
    %264 = arith.mulf %260, %240 : vector<2x16xf32>
    %265 = arith.mulf %259, %263 : vector<2x16xf32>
    %266 = arith.addf %264, %265 : vector<2x16xf32>
    %267 = math.tanh %266 : vector<2x16xf32>
    %268 = arith.mulf %261, %267 : vector<2x16xf32>
    %cst_61 = arith.constant 0.000000e+00 : f32
    %269 = vector.broadcast %cst_61 : f32 to vector<2x16xf32>
    %270 = arith.maximumf %268, %269 : vector<2x16xf32>
    %cst_62 = arith.constant dense<0.000000e+00> : vector<2x64xf32>
    %271 = tpu.matmul %270, %5, %cst_62 {dimension_numbers = #tpu.dot_dimension_numbers<[1], [0], [0], [1], [0, 0, 1, 1], [], []>} : vector<2x16xf32>, vector<16x64xf32>, vector<2x64xf32> -> vector<2x64xf32>
    %272 = vector.broadcast %7 : vector<1x64xf32> to vector<2x64xf32>
    %273 = arith.addf %271, %272 : vector<2x64xf32>
    %274 = vector.extract_strided_slice %22 {offsets = [9, 0], sizes = [1, 64], strides = [1, 1]} : vector<14x64xf32> to vector<1x64xf32>
    %275 = vector.extract_strided_slice %37 {offsets = [9, 0], sizes = [1, 64], strides = [1, 1]} : vector<14x64xf32> to vector<1x64xf32>
    %276 = tpu.concatenate %274, %275 in 0 : vector<1x64xf32>, vector<1x64xf32> -> vector<2x64xf32>
    %cst_63 = arith.constant dense<0.000000e+00> : vector<2x64xf32>
    %277 = tpu.matmul %268, %3, %cst_63 {dimension_numbers = #tpu.dot_dimension_numbers<[1], [0], [0], [1], [0, 0, 1, 1], [], []>} : vector<2x16xf32>, vector<16x64xf32>, vector<2x64xf32> -> vector<2x64xf32>
    %278 = arith.addf %276, %277 : vector<2x64xf32>
    %279 = vector.extract_strided_slice %278 {offsets = [0, 0], sizes = [2, 48], strides = [1, 1]} : vector<2x64xf32> to vector<2x48xf32>
    %280 = arith.negf %279 : vector<2x48xf32>
    %281 = math.exp %280 : vector<2x48xf32>
    %cst_64 = arith.constant 1.000000e+00 : f32
    %282 = vector.broadcast %cst_64 : f32 to vector<2x48xf32>
    %283 = arith.addf %282, %281 : vector<2x48xf32>
    %284 = arith.divf %282, %283 : vector<2x48xf32>
    %285 = vector.extract_strided_slice %284 {offsets = [0, 0], sizes = [2, 16], strides = [1, 1]} : vector<2x48xf32> to vector<2x16xf32>
    %286 = vector.extract_strided_slice %284 {offsets = [0, 16], sizes = [2, 16], strides = [1, 1]} : vector<2x48xf32> to vector<2x16xf32>
    %287 = vector.extract_strided_slice %284 {offsets = [0, 32], sizes = [2, 16], strides = [1, 1]} : vector<2x48xf32> to vector<2x16xf32>
    %288 = vector.extract_strided_slice %278 {offsets = [0, 48], sizes = [2, 16], strides = [1, 1]} : vector<2x64xf32> to vector<2x16xf32>
    %289 = math.tanh %288 : vector<2x16xf32>
    %290 = arith.mulf %286, %266 : vector<2x16xf32>
    %291 = arith.mulf %285, %289 : vector<2x16xf32>
    %292 = arith.addf %290, %291 : vector<2x16xf32>
    %293 = math.tanh %292 : vector<2x16xf32>
    %294 = arith.mulf %287, %293 : vector<2x16xf32>
    %cst_65 = arith.constant 0.000000e+00 : f32
    %295 = vector.broadcast %cst_65 : f32 to vector<2x16xf32>
    %296 = arith.maximumf %294, %295 : vector<2x16xf32>
    %cst_66 = arith.constant dense<0.000000e+00> : vector<2x64xf32>
    %297 = tpu.matmul %296, %5, %cst_66 {dimension_numbers = #tpu.dot_dimension_numbers<[1], [0], [0], [1], [0, 0, 1, 1], [], []>} : vector<2x16xf32>, vector<16x64xf32>, vector<2x64xf32> -> vector<2x64xf32>
    %298 = vector.broadcast %7 : vector<1x64xf32> to vector<2x64xf32>
    %299 = arith.addf %297, %298 : vector<2x64xf32>
    %300 = vector.extract_strided_slice %22 {offsets = [10, 0], sizes = [1, 64], strides = [1, 1]} : vector<14x64xf32> to vector<1x64xf32>
    %301 = vector.extract_strided_slice %37 {offsets = [10, 0], sizes = [1, 64], strides = [1, 1]} : vector<14x64xf32> to vector<1x64xf32>
    %302 = tpu.concatenate %300, %301 in 0 : vector<1x64xf32>, vector<1x64xf32> -> vector<2x64xf32>
    %cst_67 = arith.constant dense<0.000000e+00> : vector<2x64xf32>
    %303 = tpu.matmul %294, %3, %cst_67 {dimension_numbers = #tpu.dot_dimension_numbers<[1], [0], [0], [1], [0, 0, 1, 1], [], []>} : vector<2x16xf32>, vector<16x64xf32>, vector<2x64xf32> -> vector<2x64xf32>
    %304 = arith.addf %302, %303 : vector<2x64xf32>
    %305 = vector.extract_strided_slice %304 {offsets = [0, 0], sizes = [2, 48], strides = [1, 1]} : vector<2x64xf32> to vector<2x48xf32>
    %306 = arith.negf %305 : vector<2x48xf32>
    %307 = math.exp %306 : vector<2x48xf32>
    %cst_68 = arith.constant 1.000000e+00 : f32
    %308 = vector.broadcast %cst_68 : f32 to vector<2x48xf32>
    %309 = arith.addf %308, %307 : vector<2x48xf32>
    %310 = arith.divf %308, %309 : vector<2x48xf32>
    %311 = vector.extract_strided_slice %310 {offsets = [0, 0], sizes = [2, 16], strides = [1, 1]} : vector<2x48xf32> to vector<2x16xf32>
    %312 = vector.extract_strided_slice %310 {offsets = [0, 16], sizes = [2, 16], strides = [1, 1]} : vector<2x48xf32> to vector<2x16xf32>
    %313 = vector.extract_strided_slice %310 {offsets = [0, 32], sizes = [2, 16], strides = [1, 1]} : vector<2x48xf32> to vector<2x16xf32>
    %314 = vector.extract_strided_slice %304 {offsets = [0, 48], sizes = [2, 16], strides = [1, 1]} : vector<2x64xf32> to vector<2x16xf32>
    %315 = math.tanh %314 : vector<2x16xf32>
    %316 = arith.mulf %312, %292 : vector<2x16xf32>
    %317 = arith.mulf %311, %315 : vector<2x16xf32>
    %318 = arith.addf %316, %317 : vector<2x16xf32>
    %319 = math.tanh %318 : vector<2x16xf32>
    %320 = arith.mulf %313, %319 : vector<2x16xf32>
    %cst_69 = arith.constant 0.000000e+00 : f32
    %321 = vector.broadcast %cst_69 : f32 to vector<2x16xf32>
    %322 = arith.maximumf %320, %321 : vector<2x16xf32>
    %cst_70 = arith.constant dense<0.000000e+00> : vector<2x64xf32>
    %323 = tpu.matmul %322, %5, %cst_70 {dimension_numbers = #tpu.dot_dimension_numbers<[1], [0], [0], [1], [0, 0, 1, 1], [], []>} : vector<2x16xf32>, vector<16x64xf32>, vector<2x64xf32> -> vector<2x64xf32>
    %324 = vector.broadcast %7 : vector<1x64xf32> to vector<2x64xf32>
    %325 = arith.addf %323, %324 : vector<2x64xf32>
    %326 = vector.extract_strided_slice %22 {offsets = [11, 0], sizes = [1, 64], strides = [1, 1]} : vector<14x64xf32> to vector<1x64xf32>
    %327 = vector.extract_strided_slice %37 {offsets = [11, 0], sizes = [1, 64], strides = [1, 1]} : vector<14x64xf32> to vector<1x64xf32>
    %328 = tpu.concatenate %326, %327 in 0 : vector<1x64xf32>, vector<1x64xf32> -> vector<2x64xf32>
    %cst_71 = arith.constant dense<0.000000e+00> : vector<2x64xf32>
    %329 = tpu.matmul %320, %3, %cst_71 {dimension_numbers = #tpu.dot_dimension_numbers<[1], [0], [0], [1], [0, 0, 1, 1], [], []>} : vector<2x16xf32>, vector<16x64xf32>, vector<2x64xf32> -> vector<2x64xf32>
    %330 = arith.addf %328, %329 : vector<2x64xf32>
    %331 = vector.extract_strided_slice %330 {offsets = [0, 0], sizes = [2, 48], strides = [1, 1]} : vector<2x64xf32> to vector<2x48xf32>
    %332 = arith.negf %331 : vector<2x48xf32>
    %333 = math.exp %332 : vector<2x48xf32>
    %cst_72 = arith.constant 1.000000e+00 : f32
    %334 = vector.broadcast %cst_72 : f32 to vector<2x48xf32>
    %335 = arith.addf %334, %333 : vector<2x48xf32>
    %336 = arith.divf %334, %335 : vector<2x48xf32>
    %337 = vector.extract_strided_slice %336 {offsets = [0, 0], sizes = [2, 16], strides = [1, 1]} : vector<2x48xf32> to vector<2x16xf32>
    %338 = vector.extract_strided_slice %336 {offsets = [0, 16], sizes = [2, 16], strides = [1, 1]} : vector<2x48xf32> to vector<2x16xf32>
    %339 = vector.extract_strided_slice %336 {offsets = [0, 32], sizes = [2, 16], strides = [1, 1]} : vector<2x48xf32> to vector<2x16xf32>
    %340 = vector.extract_strided_slice %330 {offsets = [0, 48], sizes = [2, 16], strides = [1, 1]} : vector<2x64xf32> to vector<2x16xf32>
    %341 = math.tanh %340 : vector<2x16xf32>
    %342 = arith.mulf %338, %318 : vector<2x16xf32>
    %343 = arith.mulf %337, %341 : vector<2x16xf32>
    %344 = arith.addf %342, %343 : vector<2x16xf32>
    %345 = math.tanh %344 : vector<2x16xf32>
    %346 = arith.mulf %339, %345 : vector<2x16xf32>
    %cst_73 = arith.constant 0.000000e+00 : f32
    %347 = vector.broadcast %cst_73 : f32 to vector<2x16xf32>
    %348 = arith.maximumf %346, %347 : vector<2x16xf32>
    %cst_74 = arith.constant dense<0.000000e+00> : vector<2x64xf32>
    %349 = tpu.matmul %348, %5, %cst_74 {dimension_numbers = #tpu.dot_dimension_numbers<[1], [0], [0], [1], [0, 0, 1, 1], [], []>} : vector<2x16xf32>, vector<16x64xf32>, vector<2x64xf32> -> vector<2x64xf32>
    %350 = vector.broadcast %7 : vector<1x64xf32> to vector<2x64xf32>
    %351 = arith.addf %349, %350 : vector<2x64xf32>
    %352 = vector.extract_strided_slice %22 {offsets = [12, 0], sizes = [1, 64], strides = [1, 1]} : vector<14x64xf32> to vector<1x64xf32>
    %353 = vector.extract_strided_slice %37 {offsets = [12, 0], sizes = [1, 64], strides = [1, 1]} : vector<14x64xf32> to vector<1x64xf32>
    %354 = tpu.concatenate %352, %353 in 0 : vector<1x64xf32>, vector<1x64xf32> -> vector<2x64xf32>
    %cst_75 = arith.constant dense<0.000000e+00> : vector<2x64xf32>
    %355 = tpu.matmul %346, %3, %cst_75 {dimension_numbers = #tpu.dot_dimension_numbers<[1], [0], [0], [1], [0, 0, 1, 1], [], []>} : vector<2x16xf32>, vector<16x64xf32>, vector<2x64xf32> -> vector<2x64xf32>
    %356 = arith.addf %354, %355 : vector<2x64xf32>
    %357 = vector.extract_strided_slice %356 {offsets = [0, 0], sizes = [2, 48], strides = [1, 1]} : vector<2x64xf32> to vector<2x48xf32>
    %358 = arith.negf %357 : vector<2x48xf32>
    %359 = math.exp %358 : vector<2x48xf32>
    %cst_76 = arith.constant 1.000000e+00 : f32
    %360 = vector.broadcast %cst_76 : f32 to vector<2x48xf32>
    %361 = arith.addf %360, %359 : vector<2x48xf32>
    %362 = arith.divf %360, %361 : vector<2x48xf32>
    %363 = vector.extract_strided_slice %362 {offsets = [0, 0], sizes = [2, 16], strides = [1, 1]} : vector<2x48xf32> to vector<2x16xf32>
    %364 = vector.extract_strided_slice %362 {offsets = [0, 16], sizes = [2, 16], strides = [1, 1]} : vector<2x48xf32> to vector<2x16xf32>
    %365 = vector.extract_strided_slice %362 {offsets = [0, 32], sizes = [2, 16], strides = [1, 1]} : vector<2x48xf32> to vector<2x16xf32>
    %366 = vector.extract_strided_slice %356 {offsets = [0, 48], sizes = [2, 16], strides = [1, 1]} : vector<2x64xf32> to vector<2x16xf32>
    %367 = math.tanh %366 : vector<2x16xf32>
    %368 = arith.mulf %364, %344 : vector<2x16xf32>
    %369 = arith.mulf %363, %367 : vector<2x16xf32>
    %370 = arith.addf %368, %369 : vector<2x16xf32>
    %371 = math.tanh %370 : vector<2x16xf32>
    %372 = arith.mulf %365, %371 : vector<2x16xf32>
    %cst_77 = arith.constant 0.000000e+00 : f32
    %373 = vector.broadcast %cst_77 : f32 to vector<2x16xf32>
    %374 = arith.maximumf %372, %373 : vector<2x16xf32>
    %cst_78 = arith.constant dense<0.000000e+00> : vector<2x64xf32>
    %375 = tpu.matmul %374, %5, %cst_78 {dimension_numbers = #tpu.dot_dimension_numbers<[1], [0], [0], [1], [0, 0, 1, 1], [], []>} : vector<2x16xf32>, vector<16x64xf32>, vector<2x64xf32> -> vector<2x64xf32>
    %376 = vector.broadcast %7 : vector<1x64xf32> to vector<2x64xf32>
    %377 = arith.addf %375, %376 : vector<2x64xf32>
    %378 = vector.extract_strided_slice %22 {offsets = [13, 0], sizes = [1, 64], strides = [1, 1]} : vector<14x64xf32> to vector<1x64xf32>
    %379 = vector.extract_strided_slice %37 {offsets = [13, 0], sizes = [1, 64], strides = [1, 1]} : vector<14x64xf32> to vector<1x64xf32>
    %380 = tpu.concatenate %378, %379 in 0 : vector<1x64xf32>, vector<1x64xf32> -> vector<2x64xf32>
    %cst_79 = arith.constant dense<0.000000e+00> : vector<2x64xf32>
    %381 = tpu.matmul %372, %3, %cst_79 {dimension_numbers = #tpu.dot_dimension_numbers<[1], [0], [0], [1], [0, 0, 1, 1], [], []>} : vector<2x16xf32>, vector<16x64xf32>, vector<2x64xf32> -> vector<2x64xf32>
    %382 = arith.addf %380, %381 : vector<2x64xf32>
    %383 = vector.extract_strided_slice %382 {offsets = [0, 0], sizes = [2, 48], strides = [1, 1]} : vector<2x64xf32> to vector<2x48xf32>
    %384 = arith.negf %383 : vector<2x48xf32>
    %385 = math.exp %384 : vector<2x48xf32>
    %cst_80 = arith.constant 1.000000e+00 : f32
    %386 = vector.broadcast %cst_80 : f32 to vector<2x48xf32>
    %387 = arith.addf %386, %385 : vector<2x48xf32>
    %388 = arith.divf %386, %387 : vector<2x48xf32>
    %389 = vector.extract_strided_slice %388 {offsets = [0, 0], sizes = [2, 16], strides = [1, 1]} : vector<2x48xf32> to vector<2x16xf32>
    %390 = vector.extract_strided_slice %388 {offsets = [0, 16], sizes = [2, 16], strides = [1, 1]} : vector<2x48xf32> to vector<2x16xf32>
    %391 = vector.extract_strided_slice %388 {offsets = [0, 32], sizes = [2, 16], strides = [1, 1]} : vector<2x48xf32> to vector<2x16xf32>
    %392 = vector.extract_strided_slice %382 {offsets = [0, 48], sizes = [2, 16], strides = [1, 1]} : vector<2x64xf32> to vector<2x16xf32>
    %393 = math.tanh %392 : vector<2x16xf32>
    %394 = arith.mulf %390, %370 : vector<2x16xf32>
    %395 = arith.mulf %389, %393 : vector<2x16xf32>
    %396 = arith.addf %394, %395 : vector<2x16xf32>
    %397 = math.tanh %396 : vector<2x16xf32>
    %398 = arith.mulf %391, %397 : vector<2x16xf32>
    %cst_81 = arith.constant 0.000000e+00 : f32
    %399 = vector.broadcast %cst_81 : f32 to vector<2x16xf32>
    %400 = arith.maximumf %398, %399 : vector<2x16xf32>
    %cst_82 = arith.constant dense<0.000000e+00> : vector<2x64xf32>
    %401 = tpu.matmul %400, %5, %cst_82 {dimension_numbers = #tpu.dot_dimension_numbers<[1], [0], [0], [1], [0, 0, 1, 1], [], []>} : vector<2x16xf32>, vector<16x64xf32>, vector<2x64xf32> -> vector<2x64xf32>
    %402 = vector.broadcast %7 : vector<1x64xf32> to vector<2x64xf32>
    %403 = arith.addf %401, %402 : vector<2x64xf32>
    %cst_83 = arith.constant 0.000000e+00 : f32
    %404 = vector.broadcast %cst_83 : f32 to vector<2x16xf32>
    %cst_84 = arith.constant 0.000000e+00 : f32
    %405 = vector.broadcast %cst_84 : f32 to vector<2x16xf32>
    %cst_85 = arith.constant dense<0.000000e+00> : vector<2x64xf32>
    %406 = tpu.matmul %404, %6, %cst_85 {dimension_numbers = #tpu.dot_dimension_numbers<[1], [0], [0], [1], [0, 0, 1, 1], [], []>} : vector<2x16xf32>, vector<16x64xf32>, vector<2x64xf32> -> vector<2x64xf32>
    %407 = arith.addf %65, %406 : vector<2x64xf32>
    %408 = vector.extract_strided_slice %407 {offsets = [0, 0], sizes = [2, 48], strides = [1, 1]} : vector<2x64xf32> to vector<2x48xf32>
    %409 = arith.negf %408 : vector<2x48xf32>
    %410 = math.exp %409 : vector<2x48xf32>
    %cst_86 = arith.constant 1.000000e+00 : f32
    %411 = vector.broadcast %cst_86 : f32 to vector<2x48xf32>
    %412 = arith.addf %411, %410 : vector<2x48xf32>
    %413 = arith.divf %411, %412 : vector<2x48xf32>
    %414 = vector.extract_strided_slice %413 {offsets = [0, 0], sizes = [2, 16], strides = [1, 1]} : vector<2x48xf32> to vector<2x16xf32>
    %415 = vector.extract_strided_slice %413 {offsets = [0, 16], sizes = [2, 16], strides = [1, 1]} : vector<2x48xf32> to vector<2x16xf32>
    %416 = vector.extract_strided_slice %413 {offsets = [0, 32], sizes = [2, 16], strides = [1, 1]} : vector<2x48xf32> to vector<2x16xf32>
    %417 = vector.extract_strided_slice %407 {offsets = [0, 48], sizes = [2, 16], strides = [1, 1]} : vector<2x64xf32> to vector<2x16xf32>
    %418 = math.tanh %417 : vector<2x16xf32>
    %419 = arith.mulf %415, %405 : vector<2x16xf32>
    %420 = arith.mulf %414, %418 : vector<2x16xf32>
    %421 = arith.addf %419, %420 : vector<2x16xf32>
    %422 = math.tanh %421 : vector<2x16xf32>
    %423 = arith.mulf %416, %422 : vector<2x16xf32>
    %cst_87 = arith.constant 0.000000e+00 : f32
    %424 = vector.broadcast %cst_87 : f32 to vector<2x16xf32>
    %425 = arith.maximumf %423, %424 : vector<2x16xf32>
    %cst_88 = arith.constant dense<0.000000e+00> : vector<2x64xf32>
    %426 = tpu.matmul %423, %6, %cst_88 {dimension_numbers = #tpu.dot_dimension_numbers<[1], [0], [0], [1], [0, 0, 1, 1], [], []>} : vector<2x16xf32>, vector<16x64xf32>, vector<2x64xf32> -> vector<2x64xf32>
    %427 = arith.addf %91, %426 : vector<2x64xf32>
    %428 = vector.extract_strided_slice %427 {offsets = [0, 0], sizes = [2, 48], strides = [1, 1]} : vector<2x64xf32> to vector<2x48xf32>
    %429 = arith.negf %428 : vector<2x48xf32>
    %430 = math.exp %429 : vector<2x48xf32>
    %cst_89 = arith.constant 1.000000e+00 : f32
    %431 = vector.broadcast %cst_89 : f32 to vector<2x48xf32>
    %432 = arith.addf %431, %430 : vector<2x48xf32>
    %433 = arith.divf %431, %432 : vector<2x48xf32>
    %434 = vector.extract_strided_slice %433 {offsets = [0, 0], sizes = [2, 16], strides = [1, 1]} : vector<2x48xf32> to vector<2x16xf32>
    %435 = vector.extract_strided_slice %433 {offsets = [0, 16], sizes = [2, 16], strides = [1, 1]} : vector<2x48xf32> to vector<2x16xf32>
    %436 = vector.extract_strided_slice %433 {offsets = [0, 32], sizes = [2, 16], strides = [1, 1]} : vector<2x48xf32> to vector<2x16xf32>
    %437 = vector.extract_strided_slice %427 {offsets = [0, 48], sizes = [2, 16], strides = [1, 1]} : vector<2x64xf32> to vector<2x16xf32>
    %438 = math.tanh %437 : vector<2x16xf32>
    %439 = arith.mulf %435, %421 : vector<2x16xf32>
    %440 = arith.mulf %434, %438 : vector<2x16xf32>
    %441 = arith.addf %439, %440 : vector<2x16xf32>
    %442 = math.tanh %441 : vector<2x16xf32>
    %443 = arith.mulf %436, %442 : vector<2x16xf32>
    %cst_90 = arith.constant 0.000000e+00 : f32
    %444 = vector.broadcast %cst_90 : f32 to vector<2x16xf32>
    %445 = arith.maximumf %443, %444 : vector<2x16xf32>
    %cst_91 = arith.constant dense<0.000000e+00> : vector<2x64xf32>
    %446 = tpu.matmul %443, %6, %cst_91 {dimension_numbers = #tpu.dot_dimension_numbers<[1], [0], [0], [1], [0, 0, 1, 1], [], []>} : vector<2x16xf32>, vector<16x64xf32>, vector<2x64xf32> -> vector<2x64xf32>
    %447 = arith.addf %117, %446 : vector<2x64xf32>
    %448 = vector.extract_strided_slice %447 {offsets = [0, 0], sizes = [2, 48], strides = [1, 1]} : vector<2x64xf32> to vector<2x48xf32>
    %449 = arith.negf %448 : vector<2x48xf32>
    %450 = math.exp %449 : vector<2x48xf32>
    %cst_92 = arith.constant 1.000000e+00 : f32
    %451 = vector.broadcast %cst_92 : f32 to vector<2x48xf32>
    %452 = arith.addf %451, %450 : vector<2x48xf32>
    %453 = arith.divf %451, %452 : vector<2x48xf32>
    %454 = vector.extract_strided_slice %453 {offsets = [0, 0], sizes = [2, 16], strides = [1, 1]} : vector<2x48xf32> to vector<2x16xf32>
    %455 = vector.extract_strided_slice %453 {offsets = [0, 16], sizes = [2, 16], strides = [1, 1]} : vector<2x48xf32> to vector<2x16xf32>
    %456 = vector.extract_strided_slice %453 {offsets = [0, 32], sizes = [2, 16], strides = [1, 1]} : vector<2x48xf32> to vector<2x16xf32>
    %457 = vector.extract_strided_slice %447 {offsets = [0, 48], sizes = [2, 16], strides = [1, 1]} : vector<2x64xf32> to vector<2x16xf32>
    %458 = math.tanh %457 : vector<2x16xf32>
    %459 = arith.mulf %455, %441 : vector<2x16xf32>
    %460 = arith.mulf %454, %458 : vector<2x16xf32>
    %461 = arith.addf %459, %460 : vector<2x16xf32>
    %462 = math.tanh %461 : vector<2x16xf32>
    %463 = arith.mulf %456, %462 : vector<2x16xf32>
    %cst_93 = arith.constant 0.000000e+00 : f32
    %464 = vector.broadcast %cst_93 : f32 to vector<2x16xf32>
    %465 = arith.maximumf %463, %464 : vector<2x16xf32>
    %cst_94 = arith.constant dense<0.000000e+00> : vector<2x64xf32>
    %466 = tpu.matmul %463, %6, %cst_94 {dimension_numbers = #tpu.dot_dimension_numbers<[1], [0], [0], [1], [0, 0, 1, 1], [], []>} : vector<2x16xf32>, vector<16x64xf32>, vector<2x64xf32> -> vector<2x64xf32>
    %467 = arith.addf %143, %466 : vector<2x64xf32>
    %468 = vector.extract_strided_slice %467 {offsets = [0, 0], sizes = [2, 48], strides = [1, 1]} : vector<2x64xf32> to vector<2x48xf32>
    %469 = arith.negf %468 : vector<2x48xf32>
    %470 = math.exp %469 : vector<2x48xf32>
    %cst_95 = arith.constant 1.000000e+00 : f32
    %471 = vector.broadcast %cst_95 : f32 to vector<2x48xf32>
    %472 = arith.addf %471, %470 : vector<2x48xf32>
    %473 = arith.divf %471, %472 : vector<2x48xf32>
    %474 = vector.extract_strided_slice %473 {offsets = [0, 0], sizes = [2, 16], strides = [1, 1]} : vector<2x48xf32> to vector<2x16xf32>
    %475 = vector.extract_strided_slice %473 {offsets = [0, 16], sizes = [2, 16], strides = [1, 1]} : vector<2x48xf32> to vector<2x16xf32>
    %476 = vector.extract_strided_slice %473 {offsets = [0, 32], sizes = [2, 16], strides = [1, 1]} : vector<2x48xf32> to vector<2x16xf32>
    %477 = vector.extract_strided_slice %467 {offsets = [0, 48], sizes = [2, 16], strides = [1, 1]} : vector<2x64xf32> to vector<2x16xf32>
    %478 = math.tanh %477 : vector<2x16xf32>
    %479 = arith.mulf %475, %461 : vector<2x16xf32>
    %480 = arith.mulf %474, %478 : vector<2x16xf32>
    %481 = arith.addf %479, %480 : vector<2x16xf32>
    %482 = math.tanh %481 : vector<2x16xf32>
    %483 = arith.mulf %476, %482 : vector<2x16xf32>
    %cst_96 = arith.constant 0.000000e+00 : f32
    %484 = vector.broadcast %cst_96 : f32 to vector<2x16xf32>
    %485 = arith.maximumf %483, %484 : vector<2x16xf32>
    %cst_97 = arith.constant dense<0.000000e+00> : vector<2x64xf32>
    %486 = tpu.matmul %483, %6, %cst_97 {dimension_numbers = #tpu.dot_dimension_numbers<[1], [0], [0], [1], [0, 0, 1, 1], [], []>} : vector<2x16xf32>, vector<16x64xf32>, vector<2x64xf32> -> vector<2x64xf32>
    %487 = arith.addf %169, %486 : vector<2x64xf32>
    %488 = vector.extract_strided_slice %487 {offsets = [0, 0], sizes = [2, 48], strides = [1, 1]} : vector<2x64xf32> to vector<2x48xf32>
    %489 = arith.negf %488 : vector<2x48xf32>
    %490 = math.exp %489 : vector<2x48xf32>
    %cst_98 = arith.constant 1.000000e+00 : f32
    %491 = vector.broadcast %cst_98 : f32 to vector<2x48xf32>
    %492 = arith.addf %491, %490 : vector<2x48xf32>
    %493 = arith.divf %491, %492 : vector<2x48xf32>
    %494 = vector.extract_strided_slice %493 {offsets = [0, 0], sizes = [2, 16], strides = [1, 1]} : vector<2x48xf32> to vector<2x16xf32>
    %495 = vector.extract_strided_slice %493 {offsets = [0, 16], sizes = [2, 16], strides = [1, 1]} : vector<2x48xf32> to vector<2x16xf32>
    %496 = vector.extract_strided_slice %493 {offsets = [0, 32], sizes = [2, 16], strides = [1, 1]} : vector<2x48xf32> to vector<2x16xf32>
    %497 = vector.extract_strided_slice %487 {offsets = [0, 48], sizes = [2, 16], strides = [1, 1]} : vector<2x64xf32> to vector<2x16xf32>
    %498 = math.tanh %497 : vector<2x16xf32>
    %499 = arith.mulf %495, %481 : vector<2x16xf32>
    %500 = arith.mulf %494, %498 : vector<2x16xf32>
    %501 = arith.addf %499, %500 : vector<2x16xf32>
    %502 = math.tanh %501 : vector<2x16xf32>
    %503 = arith.mulf %496, %502 : vector<2x16xf32>
    %cst_99 = arith.constant 0.000000e+00 : f32
    %504 = vector.broadcast %cst_99 : f32 to vector<2x16xf32>
    %505 = arith.maximumf %503, %504 : vector<2x16xf32>
    %cst_100 = arith.constant dense<0.000000e+00> : vector<2x64xf32>
    %506 = tpu.matmul %503, %6, %cst_100 {dimension_numbers = #tpu.dot_dimension_numbers<[1], [0], [0], [1], [0, 0, 1, 1], [], []>} : vector<2x16xf32>, vector<16x64xf32>, vector<2x64xf32> -> vector<2x64xf32>
    %507 = arith.addf %195, %506 : vector<2x64xf32>
    %508 = vector.extract_strided_slice %507 {offsets = [0, 0], sizes = [2, 48], strides = [1, 1]} : vector<2x64xf32> to vector<2x48xf32>
    %509 = arith.negf %508 : vector<2x48xf32>
    %510 = math.exp %509 : vector<2x48xf32>
    %cst_101 = arith.constant 1.000000e+00 : f32
    %511 = vector.broadcast %cst_101 : f32 to vector<2x48xf32>
    %512 = arith.addf %511, %510 : vector<2x48xf32>
    %513 = arith.divf %511, %512 : vector<2x48xf32>
    %514 = vector.extract_strided_slice %513 {offsets = [0, 0], sizes = [2, 16], strides = [1, 1]} : vector<2x48xf32> to vector<2x16xf32>
    %515 = vector.extract_strided_slice %513 {offsets = [0, 16], sizes = [2, 16], strides = [1, 1]} : vector<2x48xf32> to vector<2x16xf32>
    %516 = vector.extract_strided_slice %513 {offsets = [0, 32], sizes = [2, 16], strides = [1, 1]} : vector<2x48xf32> to vector<2x16xf32>
    %517 = vector.extract_strided_slice %507 {offsets = [0, 48], sizes = [2, 16], strides = [1, 1]} : vector<2x64xf32> to vector<2x16xf32>
    %518 = math.tanh %517 : vector<2x16xf32>
    %519 = arith.mulf %515, %501 : vector<2x16xf32>
    %520 = arith.mulf %514, %518 : vector<2x16xf32>
    %521 = arith.addf %519, %520 : vector<2x16xf32>
    %522 = math.tanh %521 : vector<2x16xf32>
    %523 = arith.mulf %516, %522 : vector<2x16xf32>
    %cst_102 = arith.constant 0.000000e+00 : f32
    %524 = vector.broadcast %cst_102 : f32 to vector<2x16xf32>
    %525 = arith.maximumf %523, %524 : vector<2x16xf32>
    %cst_103 = arith.constant dense<0.000000e+00> : vector<2x64xf32>
    %526 = tpu.matmul %523, %6, %cst_103 {dimension_numbers = #tpu.dot_dimension_numbers<[1], [0], [0], [1], [0, 0, 1, 1], [], []>} : vector<2x16xf32>, vector<16x64xf32>, vector<2x64xf32> -> vector<2x64xf32>
    %527 = arith.addf %221, %526 : vector<2x64xf32>
    %528 = vector.extract_strided_slice %527 {offsets = [0, 0], sizes = [2, 48], strides = [1, 1]} : vector<2x64xf32> to vector<2x48xf32>
    %529 = arith.negf %528 : vector<2x48xf32>
    %530 = math.exp %529 : vector<2x48xf32>
    %cst_104 = arith.constant 1.000000e+00 : f32
    %531 = vector.broadcast %cst_104 : f32 to vector<2x48xf32>
    %532 = arith.addf %531, %530 : vector<2x48xf32>
    %533 = arith.divf %531, %532 : vector<2x48xf32>
    %534 = vector.extract_strided_slice %533 {offsets = [0, 0], sizes = [2, 16], strides = [1, 1]} : vector<2x48xf32> to vector<2x16xf32>
    %535 = vector.extract_strided_slice %533 {offsets = [0, 16], sizes = [2, 16], strides = [1, 1]} : vector<2x48xf32> to vector<2x16xf32>
    %536 = vector.extract_strided_slice %533 {offsets = [0, 32], sizes = [2, 16], strides = [1, 1]} : vector<2x48xf32> to vector<2x16xf32>
    %537 = vector.extract_strided_slice %527 {offsets = [0, 48], sizes = [2, 16], strides = [1, 1]} : vector<2x64xf32> to vector<2x16xf32>
    %538 = math.tanh %537 : vector<2x16xf32>
    %539 = arith.mulf %535, %521 : vector<2x16xf32>
    %540 = arith.mulf %534, %538 : vector<2x16xf32>
    %541 = arith.addf %539, %540 : vector<2x16xf32>
    %542 = math.tanh %541 : vector<2x16xf32>
    %543 = arith.mulf %536, %542 : vector<2x16xf32>
    %cst_105 = arith.constant 0.000000e+00 : f32
    %544 = vector.broadcast %cst_105 : f32 to vector<2x16xf32>
    %545 = arith.maximumf %543, %544 : vector<2x16xf32>
    %cst_106 = arith.constant dense<0.000000e+00> : vector<2x64xf32>
    %546 = tpu.matmul %543, %6, %cst_106 {dimension_numbers = #tpu.dot_dimension_numbers<[1], [0], [0], [1], [0, 0, 1, 1], [], []>} : vector<2x16xf32>, vector<16x64xf32>, vector<2x64xf32> -> vector<2x64xf32>
    %547 = arith.addf %247, %546 : vector<2x64xf32>
    %548 = vector.extract_strided_slice %547 {offsets = [0, 0], sizes = [2, 48], strides = [1, 1]} : vector<2x64xf32> to vector<2x48xf32>
    %549 = arith.negf %548 : vector<2x48xf32>
    %550 = math.exp %549 : vector<2x48xf32>
    %cst_107 = arith.constant 1.000000e+00 : f32
    %551 = vector.broadcast %cst_107 : f32 to vector<2x48xf32>
    %552 = arith.addf %551, %550 : vector<2x48xf32>
    %553 = arith.divf %551, %552 : vector<2x48xf32>
    %554 = vector.extract_strided_slice %553 {offsets = [0, 0], sizes = [2, 16], strides = [1, 1]} : vector<2x48xf32> to vector<2x16xf32>
    %555 = vector.extract_strided_slice %553 {offsets = [0, 16], sizes = [2, 16], strides = [1, 1]} : vector<2x48xf32> to vector<2x16xf32>
    %556 = vector.extract_strided_slice %553 {offsets = [0, 32], sizes = [2, 16], strides = [1, 1]} : vector<2x48xf32> to vector<2x16xf32>
    %557 = vector.extract_strided_slice %547 {offsets = [0, 48], sizes = [2, 16], strides = [1, 1]} : vector<2x64xf32> to vector<2x16xf32>
    %558 = math.tanh %557 : vector<2x16xf32>
    %559 = arith.mulf %555, %541 : vector<2x16xf32>
    %560 = arith.mulf %554, %558 : vector<2x16xf32>
    %561 = arith.addf %559, %560 : vector<2x16xf32>
    %562 = math.tanh %561 : vector<2x16xf32>
    %563 = arith.mulf %556, %562 : vector<2x16xf32>
    %cst_108 = arith.constant 0.000000e+00 : f32
    %564 = vector.broadcast %cst_108 : f32 to vector<2x16xf32>
    %565 = arith.maximumf %563, %564 : vector<2x16xf32>
    %cst_109 = arith.constant dense<0.000000e+00> : vector<2x64xf32>
    %566 = tpu.matmul %563, %6, %cst_109 {dimension_numbers = #tpu.dot_dimension_numbers<[1], [0], [0], [1], [0, 0, 1, 1], [], []>} : vector<2x16xf32>, vector<16x64xf32>, vector<2x64xf32> -> vector<2x64xf32>
    %567 = arith.addf %273, %566 : vector<2x64xf32>
    %568 = vector.extract_strided_slice %567 {offsets = [0, 0], sizes = [2, 48], strides = [1, 1]} : vector<2x64xf32> to vector<2x48xf32>
    %569 = arith.negf %568 : vector<2x48xf32>
    %570 = math.exp %569 : vector<2x48xf32>
    %cst_110 = arith.constant 1.000000e+00 : f32
    %571 = vector.broadcast %cst_110 : f32 to vector<2x48xf32>
    %572 = arith.addf %571, %570 : vector<2x48xf32>
    %573 = arith.divf %571, %572 : vector<2x48xf32>
    %574 = vector.extract_strided_slice %573 {offsets = [0, 0], sizes = [2, 16], strides = [1, 1]} : vector<2x48xf32> to vector<2x16xf32>
    %575 = vector.extract_strided_slice %573 {offsets = [0, 16], sizes = [2, 16], strides = [1, 1]} : vector<2x48xf32> to vector<2x16xf32>
    %576 = vector.extract_strided_slice %573 {offsets = [0, 32], sizes = [2, 16], strides = [1, 1]} : vector<2x48xf32> to vector<2x16xf32>
    %577 = vector.extract_strided_slice %567 {offsets = [0, 48], sizes = [2, 16], strides = [1, 1]} : vector<2x64xf32> to vector<2x16xf32>
    %578 = math.tanh %577 : vector<2x16xf32>
    %579 = arith.mulf %575, %561 : vector<2x16xf32>
    %580 = arith.mulf %574, %578 : vector<2x16xf32>
    %581 = arith.addf %579, %580 : vector<2x16xf32>
    %582 = math.tanh %581 : vector<2x16xf32>
    %583 = arith.mulf %576, %582 : vector<2x16xf32>
    %cst_111 = arith.constant 0.000000e+00 : f32
    %584 = vector.broadcast %cst_111 : f32 to vector<2x16xf32>
    %585 = arith.maximumf %583, %584 : vector<2x16xf32>
    %cst_112 = arith.constant dense<0.000000e+00> : vector<2x64xf32>
    %586 = tpu.matmul %583, %6, %cst_112 {dimension_numbers = #tpu.dot_dimension_numbers<[1], [0], [0], [1], [0, 0, 1, 1], [], []>} : vector<2x16xf32>, vector<16x64xf32>, vector<2x64xf32> -> vector<2x64xf32>
    %587 = arith.addf %299, %586 : vector<2x64xf32>
    %588 = vector.extract_strided_slice %587 {offsets = [0, 0], sizes = [2, 48], strides = [1, 1]} : vector<2x64xf32> to vector<2x48xf32>
    %589 = arith.negf %588 : vector<2x48xf32>
    %590 = math.exp %589 : vector<2x48xf32>
    %cst_113 = arith.constant 1.000000e+00 : f32
    %591 = vector.broadcast %cst_113 : f32 to vector<2x48xf32>
    %592 = arith.addf %591, %590 : vector<2x48xf32>
    %593 = arith.divf %591, %592 : vector<2x48xf32>
    %594 = vector.extract_strided_slice %593 {offsets = [0, 0], sizes = [2, 16], strides = [1, 1]} : vector<2x48xf32> to vector<2x16xf32>
    %595 = vector.extract_strided_slice %593 {offsets = [0, 16], sizes = [2, 16], strides = [1, 1]} : vector<2x48xf32> to vector<2x16xf32>
    %596 = vector.extract_strided_slice %593 {offsets = [0, 32], sizes = [2, 16], strides = [1, 1]} : vector<2x48xf32> to vector<2x16xf32>
    %597 = vector.extract_strided_slice %587 {offsets = [0, 48], sizes = [2, 16], strides = [1, 1]} : vector<2x64xf32> to vector<2x16xf32>
    %598 = math.tanh %597 : vector<2x16xf32>
    %599 = arith.mulf %595, %581 : vector<2x16xf32>
    %600 = arith.mulf %594, %598 : vector<2x16xf32>
    %601 = arith.addf %599, %600 : vector<2x16xf32>
    %602 = math.tanh %601 : vector<2x16xf32>
    %603 = arith.mulf %596, %602 : vector<2x16xf32>
    %cst_114 = arith.constant 0.000000e+00 : f32
    %604 = vector.broadcast %cst_114 : f32 to vector<2x16xf32>
    %605 = arith.maximumf %603, %604 : vector<2x16xf32>
    %cst_115 = arith.constant dense<0.000000e+00> : vector<2x64xf32>
    %606 = tpu.matmul %603, %6, %cst_115 {dimension_numbers = #tpu.dot_dimension_numbers<[1], [0], [0], [1], [0, 0, 1, 1], [], []>} : vector<2x16xf32>, vector<16x64xf32>, vector<2x64xf32> -> vector<2x64xf32>
    %607 = arith.addf %325, %606 : vector<2x64xf32>
    %608 = vector.extract_strided_slice %607 {offsets = [0, 0], sizes = [2, 48], strides = [1, 1]} : vector<2x64xf32> to vector<2x48xf32>
    %609 = arith.negf %608 : vector<2x48xf32>
    %610 = math.exp %609 : vector<2x48xf32>
    %cst_116 = arith.constant 1.000000e+00 : f32
    %611 = vector.broadcast %cst_116 : f32 to vector<2x48xf32>
    %612 = arith.addf %611, %610 : vector<2x48xf32>
    %613 = arith.divf %611, %612 : vector<2x48xf32>
    %614 = vector.extract_strided_slice %613 {offsets = [0, 0], sizes = [2, 16], strides = [1, 1]} : vector<2x48xf32> to vector<2x16xf32>
    %615 = vector.extract_strided_slice %613 {offsets = [0, 16], sizes = [2, 16], strides = [1, 1]} : vector<2x48xf32> to vector<2x16xf32>
    %616 = vector.extract_strided_slice %613 {offsets = [0, 32], sizes = [2, 16], strides = [1, 1]} : vector<2x48xf32> to vector<2x16xf32>
    %617 = vector.extract_strided_slice %607 {offsets = [0, 48], sizes = [2, 16], strides = [1, 1]} : vector<2x64xf32> to vector<2x16xf32>
    %618 = math.tanh %617 : vector<2x16xf32>
    %619 = arith.mulf %615, %601 : vector<2x16xf32>
    %620 = arith.mulf %614, %618 : vector<2x16xf32>
    %621 = arith.addf %619, %620 : vector<2x16xf32>
    %622 = math.tanh %621 : vector<2x16xf32>
    %623 = arith.mulf %616, %622 : vector<2x16xf32>
    %cst_117 = arith.constant 0.000000e+00 : f32
    %624 = vector.broadcast %cst_117 : f32 to vector<2x16xf32>
    %625 = arith.maximumf %623, %624 : vector<2x16xf32>
    %cst_118 = arith.constant dense<0.000000e+00> : vector<2x64xf32>
    %626 = tpu.matmul %623, %6, %cst_118 {dimension_numbers = #tpu.dot_dimension_numbers<[1], [0], [0], [1], [0, 0, 1, 1], [], []>} : vector<2x16xf32>, vector<16x64xf32>, vector<2x64xf32> -> vector<2x64xf32>
    %627 = arith.addf %351, %626 : vector<2x64xf32>
    %628 = vector.extract_strided_slice %627 {offsets = [0, 0], sizes = [2, 48], strides = [1, 1]} : vector<2x64xf32> to vector<2x48xf32>
    %629 = arith.negf %628 : vector<2x48xf32>
    %630 = math.exp %629 : vector<2x48xf32>
    %cst_119 = arith.constant 1.000000e+00 : f32
    %631 = vector.broadcast %cst_119 : f32 to vector<2x48xf32>
    %632 = arith.addf %631, %630 : vector<2x48xf32>
    %633 = arith.divf %631, %632 : vector<2x48xf32>
    %634 = vector.extract_strided_slice %633 {offsets = [0, 0], sizes = [2, 16], strides = [1, 1]} : vector<2x48xf32> to vector<2x16xf32>
    %635 = vector.extract_strided_slice %633 {offsets = [0, 16], sizes = [2, 16], strides = [1, 1]} : vector<2x48xf32> to vector<2x16xf32>
    %636 = vector.extract_strided_slice %633 {offsets = [0, 32], sizes = [2, 16], strides = [1, 1]} : vector<2x48xf32> to vector<2x16xf32>
    %637 = vector.extract_strided_slice %627 {offsets = [0, 48], sizes = [2, 16], strides = [1, 1]} : vector<2x64xf32> to vector<2x16xf32>
    %638 = math.tanh %637 : vector<2x16xf32>
    %639 = arith.mulf %635, %621 : vector<2x16xf32>
    %640 = arith.mulf %634, %638 : vector<2x16xf32>
    %641 = arith.addf %639, %640 : vector<2x16xf32>
    %642 = math.tanh %641 : vector<2x16xf32>
    %643 = arith.mulf %636, %642 : vector<2x16xf32>
    %cst_120 = arith.constant 0.000000e+00 : f32
    %644 = vector.broadcast %cst_120 : f32 to vector<2x16xf32>
    %645 = arith.maximumf %643, %644 : vector<2x16xf32>
    %cst_121 = arith.constant dense<0.000000e+00> : vector<2x64xf32>
    %646 = tpu.matmul %643, %6, %cst_121 {dimension_numbers = #tpu.dot_dimension_numbers<[1], [0], [0], [1], [0, 0, 1, 1], [], []>} : vector<2x16xf32>, vector<16x64xf32>, vector<2x64xf32> -> vector<2x64xf32>
    %647 = arith.addf %377, %646 : vector<2x64xf32>
    %648 = vector.extract_strided_slice %647 {offsets = [0, 0], sizes = [2, 48], strides = [1, 1]} : vector<2x64xf32> to vector<2x48xf32>
    %649 = arith.negf %648 : vector<2x48xf32>
    %650 = math.exp %649 : vector<2x48xf32>
    %cst_122 = arith.constant 1.000000e+00 : f32
    %651 = vector.broadcast %cst_122 : f32 to vector<2x48xf32>
    %652 = arith.addf %651, %650 : vector<2x48xf32>
    %653 = arith.divf %651, %652 : vector<2x48xf32>
    %654 = vector.extract_strided_slice %653 {offsets = [0, 0], sizes = [2, 16], strides = [1, 1]} : vector<2x48xf32> to vector<2x16xf32>
    %655 = vector.extract_strided_slice %653 {offsets = [0, 16], sizes = [2, 16], strides = [1, 1]} : vector<2x48xf32> to vector<2x16xf32>
    %656 = vector.extract_strided_slice %653 {offsets = [0, 32], sizes = [2, 16], strides = [1, 1]} : vector<2x48xf32> to vector<2x16xf32>
    %657 = vector.extract_strided_slice %647 {offsets = [0, 48], sizes = [2, 16], strides = [1, 1]} : vector<2x64xf32> to vector<2x16xf32>
    %658 = math.tanh %657 : vector<2x16xf32>
    %659 = arith.mulf %655, %641 : vector<2x16xf32>
    %660 = arith.mulf %654, %658 : vector<2x16xf32>
    %661 = arith.addf %659, %660 : vector<2x16xf32>
    %662 = math.tanh %661 : vector<2x16xf32>
    %663 = arith.mulf %656, %662 : vector<2x16xf32>
    %cst_123 = arith.constant 0.000000e+00 : f32
    %664 = vector.broadcast %cst_123 : f32 to vector<2x16xf32>
    %665 = arith.maximumf %663, %664 : vector<2x16xf32>
    %cst_124 = arith.constant dense<0.000000e+00> : vector<2x64xf32>
    %666 = tpu.matmul %663, %6, %cst_124 {dimension_numbers = #tpu.dot_dimension_numbers<[1], [0], [0], [1], [0, 0, 1, 1], [], []>} : vector<2x16xf32>, vector<16x64xf32>, vector<2x64xf32> -> vector<2x64xf32>
    %667 = arith.addf %403, %666 : vector<2x64xf32>
    %668 = vector.extract_strided_slice %667 {offsets = [0, 0], sizes = [2, 48], strides = [1, 1]} : vector<2x64xf32> to vector<2x48xf32>
    %669 = arith.negf %668 : vector<2x48xf32>
    %670 = math.exp %669 : vector<2x48xf32>
    %cst_125 = arith.constant 1.000000e+00 : f32
    %671 = vector.broadcast %cst_125 : f32 to vector<2x48xf32>
    %672 = arith.addf %671, %670 : vector<2x48xf32>
    %673 = arith.divf %671, %672 : vector<2x48xf32>
    %674 = vector.extract_strided_slice %673 {offsets = [0, 0], sizes = [2, 16], strides = [1, 1]} : vector<2x48xf32> to vector<2x16xf32>
    %675 = vector.extract_strided_slice %673 {offsets = [0, 16], sizes = [2, 16], strides = [1, 1]} : vector<2x48xf32> to vector<2x16xf32>
    %676 = vector.extract_strided_slice %673 {offsets = [0, 32], sizes = [2, 16], strides = [1, 1]} : vector<2x48xf32> to vector<2x16xf32>
    %677 = vector.extract_strided_slice %667 {offsets = [0, 48], sizes = [2, 16], strides = [1, 1]} : vector<2x64xf32> to vector<2x16xf32>
    %678 = math.tanh %677 : vector<2x16xf32>
    %679 = arith.mulf %675, %661 : vector<2x16xf32>
    %680 = arith.mulf %674, %678 : vector<2x16xf32>
    %681 = arith.addf %679, %680 : vector<2x16xf32>
    %682 = math.tanh %681 : vector<2x16xf32>
    %683 = arith.mulf %676, %682 : vector<2x16xf32>
    %cst_126 = arith.constant 0.000000e+00 : f32
    %684 = vector.broadcast %cst_126 : f32 to vector<2x16xf32>
    %685 = arith.maximumf %683, %684 : vector<2x16xf32>
    %686 = tpu.concatenate %425, %445, %465, %485, %505, %525, %545, %565, %585, %605, %625, %645, %665, %685 in 1 : vector<2x16xf32>, vector<2x16xf32>, vector<2x16xf32>, vector<2x16xf32>, vector<2x16xf32>, vector<2x16xf32>, vector<2x16xf32>, vector<2x16xf32>, vector<2x16xf32>, vector<2x16xf32>, vector<2x16xf32>, vector<2x16xf32>, vector<2x16xf32>, vector<2x16xf32> -> vector<2x224xf32>
    %c0_127 = arith.constant 0 : index
    %c0_128 = arith.constant 0 : index
    %687 = vector.load %arg9[%c0_127, %c0_128] : memref<224x9xf32, #tpu.memory_space<vmem>>, vector<224x9xf32>
    %cst_129 = arith.constant dense<0.000000e+00> : vector<2x9xf32>
    %688 = tpu.matmul %686, %687, %cst_129 {dimension_numbers = #tpu.dot_dimension_numbers<[1], [0], [0], [1], [0, 0, 1, 1], [], []>} : vector<2x224xf32>, vector<224x9xf32>, vector<2x9xf32> -> vector<2x9xf32>
    %c0_130 = arith.constant 0 : index
    %c0_131 = arith.constant 0 : index
    %689 = vector.load %arg10[%c0_130, %c0_131] : memref<1x9xf32, #tpu.memory_space<vmem>>, vector<1x9xf32>
    %690 = vector.broadcast %689 : vector<1x9xf32> to vector<2x9xf32>
    %691 = arith.addf %688, %690 : vector<2x9xf32>
    %c0_132 = arith.constant 0 : index
    %c0_133 = arith.constant 0 : index
    %692 = vector.load %arg11[%c0_132, %c0_133] : memref<2x9xf32, #tpu.memory_space<vmem>>, vector<2x9xf32>
    tpu.vector_store %arg11[%c0_132, %c0_133], %691 {strides = array<i32>} : memref<2x9xf32, #tpu.memory_space<vmem>>, vector<2x9xf32>,
    return
  }
}

</mosaic_0001>

<llo_original>
// kernel: cnn_lstm_net_forward.1
$region0: #{cnn_lstm_net_forward.1}
  #allocation0 [shape = 'u32[]', space=smem, size = 0x4, offset = 0x4, fixed_abs, tag = 'smem constant byte address 0x4 - core index']
  #allocation1 [shape = 'u32[144,128]{1,0:T(1,128)}', space=vmem, size = 0x12000, scoped, tag = 'internal scratch']
  %s0 = inlined_call_operand.vmem [shape: f32[2,4,16], index: 0, kind: input, shape index: {}]
  %s1 = inlined_call_operand.vmem [shape: f32[12,8], index: 1, kind: input, shape index: {}]
  %s2 = inlined_call_operand.vmem [shape: f32[1,8], index: 2, kind: input, shape index: {}]
  %s3 = inlined_call_operand.vmem [shape: f32[8,64], index: 3, kind: input, shape index: {}]
  %s4 = inlined_call_operand.vmem [shape: f32[16,64], index: 4, kind: input, shape index: {}]
  %s5 = inlined_call_operand.vmem [shape: f32[1,64], index: 5, kind: input, shape index: {}]
  %s6 = inlined_call_operand.vmem [shape: f32[16,64], index: 6, kind: input, shape index: {}]
  %s7 = inlined_call_operand.vmem [shape: f32[16,64], index: 7, kind: input, shape index: {}]
  %s8 = inlined_call_operand.vmem [shape: f32[1,64], index: 8, kind: input, shape index: {}]
  %s9 = inlined_call_operand.vmem [shape: f32[224,9], index: 9, kind: input, shape index: {}]
  %s10 = inlined_call_operand.vmem [shape: f32[1,9], index: 10, kind: input, shape index: {}]
  %s11 = inlined_call_operand.hbm [shape: f32[2,9], index: 11, kind: output, shape index: {}]
  %s12 = sld [smem:[#allocation0]]
  $region54: #{cnn_lstm_net_forward.1} parent=0
    _
  %s14 = ssub.s32 1, %s12
  %s15 = scalar_select 0, %s14, %s12
  $region1: #{cnn_lstm_net_forward.1} parent=0
    #allocation2 [shape = 'u8[1024]{0}', space=vmem, size = 0x400, scoped, tag = 'output window, operand 0, single buffered']
    #allocation3 [shape = 's32[1]{0}', space=sflag, size = 0x4, scoped, tag = 'scoped memory for cnn_lstm_net_forward.1']
    %16 = vsyncpa [#allocation3], 0
    // Predicated region
    $region2: #{cnn_lstm_net_forward.1} parent=1 // pred_check
      _
    $region3: #{cnn_lstm_net_forward.1} parent=1 // pred_check_branch
      %18 = sbr.rel (0) target = $region5
    $region4: #{cnn_lstm_net_forward.1} parent=1 // pred_region
      _
    $region5: #{cnn_lstm_net_forward.1} parent=1 // pred_fallthru
      _
    // Predicated region
    $region6: #{cnn_lstm_net_forward.1} parent=1 // pred_check
      _
    $region7: #{cnn_lstm_net_forward.1} parent=1 // pred_check_branch
      %20 = sbr.rel (0) target = $region9
    $region8: #{cnn_lstm_net_forward.1} parent=1 // pred_region
      _
    $region9: #{cnn_lstm_net_forward.1} parent=1 // pred_fallthru
      _
    // Predicated region
    $region10: #{cnn_lstm_net_forward.1} parent=1 // pred_check
      _
    $region11: #{cnn_lstm_net_forward.1} parent=1 // pred_check_branch
      %22 = sbr.rel (0) target = $region13
    $region12: #{cnn_lstm_net_forward.1} parent=1 // pred_region
      _
    $region13: #{cnn_lstm_net_forward.1} parent=1 // pred_fallthru
      _
    // Predicated region
    $region14: #{cnn_lstm_net_forward.1} parent=1 // pred_check
      _
    $region15: #{cnn_lstm_net_forward.1} parent=1 // pred_check_branch
      %24 = sbr.rel (0) target = $region17
    $region16: #{cnn_lstm_net_forward.1} parent=1 // pred_region
      _
    $region17: #{cnn_lstm_net_forward.1} parent=1 // pred_fallthru
      _
    // Predicated region
    $region18: #{cnn_lstm_net_forward.1} parent=1 // pred_check
      _
    $region19: #{cnn_lstm_net_forward.1} parent=1 // pred_check_branch
      %26 = sbr.rel (0) target = $region21
    $region20: #{cnn_lstm_net_forward.1} parent=1 // pred_region
      _
    $region21: #{cnn_lstm_net_forward.1} parent=1 // pred_fallthru
      _
    // Predicated region
    $region22: #{cnn_lstm_net_forward.1} parent=1 // pred_check
      _
    $region23: #{cnn_lstm_net_forward.1} parent=1 // pred_check_branch
      %28 = sbr.rel (0) target = $region25
    $region24: #{cnn_lstm_net_forward.1} parent=1 // pred_region
      _
    $region25: #{cnn_lstm_net_forward.1} parent=1 // pred_fallthru
      _
    // Predicated region
    $region26: #{cnn_lstm_net_forward.1} parent=1 // pred_check
      _
    $region27: #{cnn_lstm_net_forward.1} parent=1 // pred_check_branch
      %30 = sbr.rel (0) target = $region29
    $region28: #{cnn_lstm_net_forward.1} parent=1 // pred_region
      _
    $region29: #{cnn_lstm_net_forward.1} parent=1 // pred_fallthru
      _
    // Predicated region
    $region30: #{cnn_lstm_net_forward.1} parent=1 // pred_check
      _
    $region31: #{cnn_lstm_net_forward.1} parent=1 // pred_check_branch
      %32 = sbr.rel (0) target = $region33
    $region32: #{cnn_lstm_net_forward.1} parent=1 // pred_region
      _
    $region33: #{cnn_lstm_net_forward.1} parent=1 // pred_fallthru
      _
    // Predicated region
    $region34: #{cnn_lstm_net_forward.1} parent=1 // pred_check
      _
    $region35: #{cnn_lstm_net_forward.1} parent=1 // pred_check_branch
      %34 = sbr.rel (0) target = $region37
    $region36: #{cnn_lstm_net_forward.1} parent=1 // pred_region
      _
    $region37: #{cnn_lstm_net_forward.1} parent=1 // pred_fallthru
      _
    // Predicated region
    $region38: #{cnn_lstm_net_forward.1} parent=1 // pred_check
      _
    $region39: #{cnn_lstm_net_forward.1} parent=1 // pred_check_branch
      %36 = sbr.rel (0) target = $region41
    $region40: #{cnn_lstm_net_forward.1} parent=1 // pred_region
      _
    $region41: #{cnn_lstm_net_forward.1} parent=1 // pred_fallthru
      _
    // Predicated region
    $region42: #{cnn_lstm_net_forward.1} parent=1 // pred_check
      _
    $region43: #{cnn_lstm_net_forward.1} parent=1 // pred_check_branch
      %38 = sbr.rel (0) target = $region45
    $region44: #{cnn_lstm_net_forward.1} parent=1 // pred_region
      _
    $region45: #{cnn_lstm_net_forward.1} parent=1 // pred_fallthru
      _
    %v39 = vld [vmem:[%s1] sm:$0xff]
    %v40 = vld [vmem:[%s1 + $0x8] sm:$0xf]
    %v41 = vld [vmem:[%s2] sm:$0x1]
    %v42 = vld [vmem:[%s3] sm:$0xff]
    %v43 = vld [vmem:[%s4] sm:$0xff]
    %v44 = vld [vmem:[%s4 + $0x8] sm:$0xff]
    %v45 = vld [vmem:[%s5] sm:$0x1]
    %v46 = vld [vmem:[%s6] sm:$0xff]
    %v47 = vld [vmem:[%s6 + $0x8] sm:$0xff]
    %v48 = vld [vmem:[%s7] sm:$0xff]
    %v49 = vld [vmem:[%s7 + $0x8] sm:$0xff]
    %v50 = vld [vmem:[%s8] sm:$0x1]
    %v51 = vld [vmem:[%s0] sm:$0xf]
    %52 = vxpose.xlu0.b32.start [1/16] %v51, 128
    %53 = vxpose.xlu0.b32.cont [2/16] 0.0, 128
    %54 = vxpose.xlu0.b32.cont [3/16] 0.0, 128
    %55 = vxpose.xlu0.b32.cont [4/16] 0.0, 128
    %56 = vxpose.xlu0.b32.cont [5/16] 0.0, 128
    %57 = vxpose.xlu0.b32.cont [6/16] 0.0, 128
    %58 = vxpose.xlu0.b32.cont [7/16] 0.0, 128
    %59 = vxpose.xlu0.b32.cont [8/16] 0.0, 128
    %60 = vxpose.xlu0.b32.cont [9/16] 0.0, 128
    %61 = vxpose.xlu0.b32.cont [10/16] 0.0, 128
    %62 = vxpose.xlu0.b32.cont [11/16] 0.0, 128
    %63 = vxpose.xlu0.b32.cont [12/16] 0.0, 128
    %64 = vxpose.xlu0.b32.cont [13/16] 0.0, 128
    %65 = vxpose.xlu0.b32.cont [14/16] 0.0, 128
    %66 = vxpose.xlu0.b32.cont [15/16] 0.0, 128
    %67 = vxpose.xlu0.b32.end [16/16] 0.0, 128
    %v68 = vpop.trf.xlu0
    %v69 = vpop.trf.xlu0
    %v70 = vpop.trf.xlu0
    %v71 = vpop.trf.xlu0
    %v72 = vpop.trf.xlu0
    %v73 = vpop.trf.xlu0
    %v74 = vpop.trf.xlu0
    %v75 = vpop.trf.xlu0
    %v76 = vpop.trf.xlu0
    %v77 = vpop.trf.xlu0
    %v78 = vpop.trf.xlu0
    %v79 = vpop.trf.xlu0
    %v80 = vpop.trf.xlu0
    %v81 = vpop.trf.xlu0
    %v82 = vpop.trf.xlu0
    %v83 = vpop.trf.xlu0
    %vm86 = vcmask 1046528
    %v87 = vrot.slane %v68, 1
    %v88 = vrot.slane %v69, 1
    %v89 = vsel %vm86, %v87, %v88
    %90 = vrot.lane.b32.xlu0 %v89, 4
    %v91 = vpop.permute.xlu0 %90
    %92 = vrot.lane.b32.xlu0 %v88, 4
    %v93 = vpop.permute.xlu0 %92
    %vm96 = vcmask 1045504
    %v97 = vrot.slane %v68, 2
    %v98 = vrot.slane %v69, 2
    %v99 = vsel %vm96, %v97, %v98
    %100 = vrot.lane.b32.xlu0 %v99, 8
    %v101 = vpop.permute.xlu0 %100
    %102 = vrot.lane.b32.xlu0 %v98, 8
    %v103 = vpop.permute.xlu0 %102
    %vm106 = vcmask 31744
    %v107 = vsel %vm106, %v68, %v91
    %v108 = vsel %vm106, %v69, %v93
    %vm109 = vcmask 64512
    %v110 = vsel %vm109, %v107, %v101
    %v111 = vsel %vm109, %v108, %v103
    %v113 = vlaneseq
    %v114 = vshrl.u32 %v113, 7
    %v115 = vsub.s32 0, %v114
    %v116 = vrot.slane %v41, %v115
    %vm118 = vcmask 97280
    %v120 = vsel %vm118, %v110, 0
    %v123 = vsel %vm118, %v111, 0
    %vm125 = vcmask 1043456
    %v127 = vsel %vm125, %v40, 0
    %129 = vmatprep.subr.mxu0 0.0
    %130 = vmatpush1.msra.mxu0 0.0
    %131 = vmatprep.subr.mxu0 0.0
    %132 = vmatpush1.msra.mxu0 0.0
    %133 = vmatprep.subr.mxu0 0.0
    %134 = vmatpush1.msra.mxu0 0.0
    %135 = vmatprep.subr.mxu0 0.0
    %136 = vmatpush1.msra.mxu0 0.0
    %137 = vmatprep.subr.mxu0 0.0
    %138 = vmatpush1.msra.mxu0 0.0
    %139 = vmatprep.subr.mxu0 0.0
    %140 = vmatpush1.msra.mxu0 0.0
    %141 = vmatprep.subr.mxu0 0.0
    %142 = vmatpush1.msra.mxu0 0.0
    %143 = vmatprep.subr.mxu0 0.0
    %144 = vmatpush1.msra.mxu0 0.0
    %145 = vmatprep.subr.mxu0 0.0
    %146 = vmatpush1.msra.mxu0 0.0
    %147 = vmatprep.subr.mxu0 0.0
    %148 = vmatpush1.msra.mxu0 0.0
    %149 = vmatprep.subr.mxu0 0.0
    %150 = vmatpush1.msra.mxu0 0.0
    %151 = vmatprep.subr.mxu0 0.0
    %152 = vmatpush1.msra.mxu0 0.0
    %153 = vmatprep.subr.mxu0 0.0
    %154 = vmatpush1.msra.mxu0 0.0
    %155 = vmatprep.subr.mxu0 0.0
    %156 = vmatpush1.msra.mxu0 0.0
    %157 = vmatprep.subr.mxu0 0.0
    %158 = vmatpush1.msra.mxu0 %v127
    %159 = vmatprep.subr.mxu0 0.0
    %160 = vmatpush1.msra.mxu0 %v39
    %161 = vmatprep.subr.mxu0 0.0
    %162 = vmatpush2.msra.mxu0 0.0
    %163 = vmatprep.subr.mxu0 0.0
    %164 = vmatpush2.msra.mxu0 0.0
    %165 = vmatprep.subr.mxu0 0.0
    %166 = vmatpush2.msra.mxu0 0.0
    %167 = vmatprep.subr.mxu0 0.0
    %168 = vmatpush2.msra.mxu0 0.0
    %169 = vmatprep.subr.mxu0 0.0
    %170 = vmatpush2.msra.mxu0 0.0
    %171 = vmatprep.subr.mxu0 0.0
    %172 = vmatpush2.msra.mxu0 0.0
    %173 = vmatprep.subr.mxu0 0.0
    %174 = vmatpush2.msra.mxu0 0.0
    %175 = vmatprep.subr.mxu0 0.0
    %176 = vmatpush2.msra.mxu0 0.0
    %177 = vmatprep.subr.mxu0 0.0
    %178 = vmatpush2.msra.mxu0 0.0
    %179 = vmatprep.subr.mxu0 0.0
    %180 = vmatpush2.msra.mxu0 0.0
    %181 = vmatprep.subr.mxu0 0.0
    %182 = vmatpush2.msra.mxu0 0.0
    %183 = vmatprep.subr.mxu0 0.0
    %184 = vmatpush2.msra.mxu0 0.0
    %185 = vmatprep.subr.mxu0 0.0
    %186 = vmatpush2.msra.mxu0 0.0
    %187 = vmatprep.subr.mxu0 0.0
    %188 = vmatpush2.msra.mxu0 0.0
    %189 = vmatprep.subr.mxu0 0.0
    %190 = vmatpush2.msra.mxu0 0.0
    %191 = vmatprep.subr.mxu0 0.0
    %192 = vmatpush2.msra.mxu0 0.0
    %193 = vmatprep.mubr.f32.mxu0 0.0
    %194 = vmatmul.mubr.f32.gmra.mxu0 %v120
    %v195 = vpop.f32.mrf.mxu0
    %v196 = vadd.f32 %v116, %v195
    %v197 = vpop.f32.mrf.mxu0
    %198 = vmatprep.mubr.f32.mxu0 0.0
    %199 = vmatmul.mubr.f32.gmra.mxu0 %v123
    %v200 = vpop.f32.mrf.mxu0
    %v201 = vadd.f32 %v116, %v200
    %v202 = vpop.f32.mrf.mxu0
    %203 = vdwg.mxu0
    %v204 = vmax.f32 %v196, 0.0
    %v205 = vmax.f32 %v201, 0.0
    %v207 = vlaneseq
    %v208 = vshrl.u32 %v207, 7
    %v209 = vsub.s32 0, %v208
    %v210 = vrot.slane %v45, %v209
    %v213 = vsel %vm109, %v204, 0
    %v216 = vsel %vm109, %v205, 0
    %218 = vmatprep.subr.mxu0 0.0
    %219 = vmatpush1.msra.mxu0 0.0
    %220 = vmatprep.subr.mxu0 0.0
    %221 = vmatpush1.msra.mxu0 0.0
    %222 = vmatprep.subr.mxu0 0.0
    %223 = vmatpush1.msra.mxu0 0.0
    %224 = vmatprep.subr.mxu0 0.0
    %225 = vmatpush1.msra.mxu0 0.0
    %226 = vmatprep.subr.mxu0 0.0
    %227 = vmatpush1.msra.mxu0 0.0
    %228 = vmatprep.subr.mxu0 0.0
    %229 = vmatpush1.msra.mxu0 0.0
    %230 = vmatprep.subr.mxu0 0.0
    %231 = vmatpush1.msra.mxu0 0.0
    %232 = vmatprep.subr.mxu0 0.0
    %233 = vmatpush1.msra.mxu0 0.0
    %234 = vmatprep.subr.mxu0 0.0
    %235 = vmatpush1.msra.mxu0 0.0
    %236 = vmatprep.subr.mxu0 0.0
    %237 = vmatpush1.msra.mxu0 0.0
    %238 = vmatprep.subr.mxu0 0.0
    %239 = vmatpush1.msra.mxu0 0.0
    %240 = vmatprep.subr.mxu0 0.0
    %241 = vmatpush1.msra.mxu0 0.0
    %242 = vmatprep.subr.mxu0 0.0
    %243 = vmatpush1.msra.mxu0 0.0
    %244 = vmatprep.subr.mxu0 0.0
    %245 = vmatpush1.msra.mxu0 0.0
    %246 = vmatprep.subr.mxu0 0.0
    %247 = vmatpush1.msra.mxu0 0.0
    %248 = vmatprep.subr.mxu0 0.0
    %249 = vmatpush1.msra.mxu0 %v42
    %250 = vmatprep.subr.mxu0 0.0
    %251 = vmatpush2.msra.mxu0 0.0
    %252 = vmatprep.subr.mxu0 0.0
    %253 = vmatpush2.msra.mxu0 0.0
    %254 = vmatprep.subr.mxu0 0.0
    %255 = vmatpush2.msra.mxu0 0.0
    %256 = vmatprep.subr.mxu0 0.0
    %257 = vmatpush2.msra.mxu0 0.0
    %258 = vmatprep.subr.mxu0 0.0
    %259 = vmatpush2.msra.mxu0 0.0
    %260 = vmatprep.subr.mxu0 0.0
    %261 = vmatpush2.msra.mxu0 0.0
    %262 = vmatprep.subr.mxu0 0.0
    %263 = vmatpush2.msra.mxu0 0.0
    %264 = vmatprep.subr.mxu0 0.0
    %265 = vmatpush2.msra.mxu0 0.0
    %266 = vmatprep.subr.mxu0 0.0
    %267 = vmatpush2.msra.mxu0 0.0
    %268 = vmatprep.subr.mxu0 0.0
    %269 = vmatpush2.msra.mxu0 0.0
    %270 = vmatprep.subr.mxu0 0.0
    %271 = vmatpush2.msra.mxu0 0.0
    %272 = vmatprep.subr.mxu0 0.0
    %273 = vmatpush2.msra.mxu0 0.0
    %274 = vmatprep.subr.mxu0 0.0
    %275 = vmatpush2.msra.mxu0 0.0
    %276 = vmatprep.subr.mxu0 0.0
    %277 = vmatpush2.msra.mxu0 0.0
    %278 = vmatprep.subr.mxu0 0.0
    %279 = vmatpush2.msra.mxu0 0.0
    %280 = vmatprep.subr.mxu0 0.0
    %281 = vmatpush2.msra.mxu0 0.0
    %282 = vmatprep.mubr.f32.mxu0 0.0
    %283 = vmatmul.mubr.f32.gmra.mxu0 %v213
    %v284 = vpop.f32.mrf.mxu0
    %v285 = vadd.f32 %v210, %v284
    %v286 = vpop.f32.mrf.mxu0
    %287 = vmatprep.mubr.f32.mxu0 0.0
    %288 = vmatmul.mubr.f32.gmra.mxu0 %v216
    %v289 = vpop.f32.mrf.mxu0
    %v290 = vadd.f32 %v210, %v289
    %v291 = vpop.f32.mrf.mxu0
    %292 = vdwg.mxu0
    %s293 = scalar_lea.vmem %s0, 4
    %v294 = vld [vmem:[%s293] sm:$0xf]
    %295 = vxpose.xlu0.b32.start [1/16] %v294, 128
    %296 = vxpose.xlu0.b32.cont [2/16] 0.0, 128
    %297 = vxpose.xlu0.b32.cont [3/16] 0.0, 128
    %298 = vxpose.xlu0.b32.cont [4/16] 0.0, 128
    %299 = vxpose.xlu0.b32.cont [5/16] 0.0, 128
    %300 = vxpose.xlu0.b32.cont [6/16] 0.0, 128
    %301 = vxpose.xlu0.b32.cont [7/16] 0.0, 128
    %302 = vxpose.xlu0.b32.cont [8/16] 0.0, 128
    %303 = vxpose.xlu0.b32.cont [9/16] 0.0, 128
    %304 = vxpose.xlu0.b32.cont [10/16] 0.0, 128
    %305 = vxpose.xlu0.b32.cont [11/16] 0.0, 128
    %306 = vxpose.xlu0.b32.cont [12/16] 0.0, 128
    %307 = vxpose.xlu0.b32.cont [13/16] 0.0, 128
    %308 = vxpose.xlu0.b32.cont [14/16] 0.0, 128
    %309 = vxpose.xlu0.b32.cont [15/16] 0.0, 128
    %310 = vxpose.xlu0.b32.end [16/16] 0.0, 128
    %v311 = vpop.trf.xlu0
    %v312 = vpop.trf.xlu0
    %v313 = vpop.trf.xlu0
    %v314 = vpop.trf.xlu0
    %v315 = vpop.trf.xlu0
    %v316 = vpop.trf.xlu0
    %v317 = vpop.trf.xlu0
    %v318 = vpop.trf.xlu0
    %v319 = vpop.trf.xlu0
    %v320 = vpop.trf.xlu0
    %v321 = vpop.trf.xlu0
    %v322 = vpop.trf.xlu0
    %v323 = vpop.trf.xlu0
    %v324 = vpop.trf.xlu0
    %v325 = vpop.trf.xlu0
    %v326 = vpop.trf.xlu0
    %v329 = vrot.slane %v311, 1
    %v330 = vrot.slane %v312, 1
    %v331 = vsel %vm86, %v329, %v330
    %332 = vrot.lane.b32.xlu0 %v331, 4
    %v333 = vpop.permute.xlu0 %332
    %334 = vrot.lane.b32.xlu0 %v330, 4
    %v335 = vpop.permute.xlu0 %334
    %v338 = vrot.slane %v311, 2
    %v339 = vrot.slane %v312, 2
    %v340 = vsel %vm96, %v338, %v339
    %341 = vrot.lane.b32.xlu0 %v340, 8
    %v342 = vpop.permute.xlu0 %341
    %343 = vrot.lane.b32.xlu0 %v339, 8
    %v344 = vpop.permute.xlu0 %343
    %v347 = vsel %vm106, %v311, %v333
    %v348 = vsel %vm106, %v312, %v335
    %v349 = vsel %vm109, %v347, %v342
    %v350 = vsel %vm109, %v348, %v344
    %v352 = vsel %vm118, %v349, 0
    %v355 = vsel %vm118, %v350, 0
    %357 = vmatprep.subr.mxu0 0.0
    %358 = vmatpush1.msra.mxu0 0.0
    %359 = vmatprep.subr.mxu0 0.0
    %360 = vmatpush1.msra.mxu0 0.0
    %361 = vmatprep.subr.mxu0 0.0
    %362 = vmatpush1.msra.mxu0 0.0
    %363 = vmatprep.subr.mxu0 0.0
    %364 = vmatpush1.msra.mxu0 0.0
    %365 = vmatprep.subr.mxu0 0.0
    %366 = vmatpush1.msra.mxu0 0.0
    %367 = vmatprep.subr.mxu0 0.0
    %368 = vmatpush1.msra.mxu0 0.0
    %369 = vmatprep.subr.mxu0 0.0
    %370 = vmatpush1.msra.mxu0 0.0
    %371 = vmatprep.subr.mxu0 0.0
    %372 = vmatpush1.msra.mxu0 0.0
    %373 = vmatprep.subr.mxu0 0.0
    %374 = vmatpush1.msra.mxu0 0.0
    %375 = vmatprep.subr.mxu0 0.0
    %376 = vmatpush1.msra.mxu0 0.0
    %377 = vmatprep.subr.mxu0 0.0
    %378 = vmatpush1.msra.mxu0 0.0
    %379 = vmatprep.subr.mxu0 0.0
    %380 = vmatpush1.msra.mxu0 0.0
    %381 = vmatprep.subr.mxu0 0.0
    %382 = vmatpush1.msra.mxu0 0.0
    %383 = vmatprep.subr.mxu0 0.0
    %384 = vmatpush1.msra.mxu0 0.0
    %385 = vmatprep.subr.mxu0 0.0
    %386 = vmatpush1.msra.mxu0 %v127
    %387 = vmatprep.subr.mxu0 0.0
    %388 = vmatpush1.msra.mxu0 %v39
    %389 = vmatprep.subr.mxu0 0.0
    %390 = vmatpush2.msra.mxu0 0.0
    %391 = vmatprep.subr.mxu0 0.0
    %392 = vmatpush2.msra.mxu0 0.0
    %393 = vmatprep.subr.mxu0 0.0
    %394 = vmatpush2.msra.mxu0 0.0
    %395 = vmatprep.subr.mxu0 0.0
    %396 = vmatpush2.msra.mxu0 0.0
    %397 = vmatprep.subr.mxu0 0.0
    %398 = vmatpush2.msra.mxu0 0.0
    %399 = vmatprep.subr.mxu0 0.0
    %400 = vmatpush2.msra.mxu0 0.0
    %401 = vmatprep.subr.mxu0 0.0
    %402 = vmatpush2.msra.mxu0 0.0
    %403 = vmatprep.subr.mxu0 0.0
    %404 = vmatpush2.msra.mxu0 0.0
    %405 = vmatprep.subr.mxu0 0.0
    %406 = vmatpush2.msra.mxu0 0.0
    %407 = vmatprep.subr.mxu0 0.0
    %408 = vmatpush2.msra.mxu0 0.0
    %409 = vmatprep.subr.mxu0 0.0
    %410 = vmatpush2.msra.mxu0 0.0
    %411 = vmatprep.subr.mxu0 0.0
    %412 = vmatpush2.msra.mxu0 0.0
    %413 = vmatprep.subr.mxu0 0.0
    %414 = vmatpush2.msra.mxu0 0.0
    %415 = vmatprep.subr.mxu0 0.0
    %416 = vmatpush2.msra.mxu0 0.0
    %417 = vmatprep.subr.mxu0 0.0
    %418 = vmatpush2.msra.mxu0 0.0
    %419 = vmatprep.subr.mxu0 0.0
    %420 = vmatpush2.msra.mxu0 0.0
    %421 = vmatprep.mubr.f32.mxu0 0.0
    %422 = vmatmul.mubr.f32.gmra.mxu0 %v352
    %v423 = vpop.f32.mrf.mxu0
    %v424 = vadd.f32 %v116, %v423
    %v425 = vpop.f32.mrf.mxu0
    %426 = vmatprep.mubr.f32.mxu0 0.0
    %427 = vmatmul.mubr.f32.gmra.mxu0 %v355
    %v428 = vpop.f32.mrf.mxu0
    %v429 = vadd.f32 %v116, %v428
    %v430 = vpop.f32.mrf.mxu0
    %431 = vdwg.mxu0
    %v432 = vmax.f32 %v424, 0.0
    %v433 = vmax.f32 %v429, 0.0
    %v435 = vsel %vm109, %v432, 0
    %v438 = vsel %vm109, %v433, 0
    %440 = vmatprep.subr.mxu0 0.0
    %441 = vmatpush1.msra.mxu0 0.0
    %442 = vmatprep.subr.mxu0 0.0
    %443 = vmatpush1.msra.mxu0 0.0
    %444 = vmatprep.subr.mxu0 0.0
    %445 = vmatpush1.msra.mxu0 0.0
    %446 = vmatprep.subr.mxu0 0.0
    %447 = vmatpush1.msra.mxu0 0.0
    %448 = vmatprep.subr.mxu0 0.0
    %449 = vmatpush1.msra.mxu0 0.0
    %450 = vmatprep.subr.mxu0 0.0
    %451 = vmatpush1.msra.mxu0 0.0
    %452 = vmatprep.subr.mxu0 0.0
    %453 = vmatpush1.msra.mxu0 0.0
    %454 = vmatprep.subr.mxu0 0.0
    %455 = vmatpush1.msra.mxu0 0.0
    %456 = vmatprep.subr.mxu0 0.0
    %457 = vmatpush1.msra.mxu0 0.0
    %458 = vmatprep.subr.mxu0 0.0
    %459 = vmatpush1.msra.mxu0 0.0
    %460 = vmatprep.subr.mxu0 0.0
    %461 = vmatpush1.msra.mxu0 0.0
    %462 = vmatprep.subr.mxu0 0.0
    %463 = vmatpush1.msra.mxu0 0.0
    %464 = vmatprep.subr.mxu0 0.0
    %465 = vmatpush1.msra.mxu0 0.0
    %466 = vmatprep.subr.mxu0 0.0
    %467 = vmatpush1.msra.mxu0 0.0
    %468 = vmatprep.subr.mxu0 0.0
    %469 = vmatpush1.msra.mxu0 0.0
    %470 = vmatprep.subr.mxu0 0.0
    %471 = vmatpush1.msra.mxu0 %v42
    %472 = vmatprep.subr.mxu0 0.0
    %473 = vmatpush2.msra.mxu0 0.0
    %474 = vmatprep.subr.mxu0 0.0
    %475 = vmatpush2.msra.mxu0 0.0
    %476 = vmatprep.subr.mxu0 0.0
    %477 = vmatpush2.msra.mxu0 0.0
    %478 = vmatprep.subr.mxu0 0.0
    %479 = vmatpush2.msra.mxu0 0.0
    %480 = vmatprep.subr.mxu0 0.0
    %481 = vmatpush2.msra.mxu0 0.0
    %482 = vmatprep.subr.mxu0 0.0
    %483 = vmatpush2.msra.mxu0 0.0
    %484 = vmatprep.subr.mxu0 0.0
    %485 = vmatpush2.msra.mxu0 0.0
    %486 = vmatprep.subr.mxu0 0.0
    %487 = vmatpush2.msra.mxu0 0.0
    %488 = vmatprep.subr.mxu0 0.0
    %489 = vmatpush2.msra.mxu0 0.0
    %490 = vmatprep.subr.mxu0 0.0
    %491 = vmatpush2.msra.mxu0 0.0
    %492 = vmatprep.subr.mxu0 0.0
    %493 = vmatpush2.msra.mxu0 0.0
    %494 = vmatprep.subr.mxu0 0.0
    %495 = vmatpush2.msra.mxu0 0.0
    %496 = vmatprep.subr.mxu0 0.0
    %497 = vmatpush2.msra.mxu0 0.0
    %498 = vmatprep.subr.mxu0 0.0
    %499 = vmatpush2.msra.mxu0 0.0
    %500 = vmatprep.subr.mxu0 0.0
    %501 = vmatpush2.msra.mxu0 0.0
    %502 = vmatprep.subr.mxu0 0.0
    %503 = vmatpush2.msra.mxu0 0.0
    %504 = vmatprep.mubr.f32.mxu0 0.0
    %505 = vmatmul.mubr.f32.gmra.mxu0 %v435
    %v506 = vpop.f32.mrf.mxu0
    %v507 = vadd.f32 %v210, %v506
    %v508 = vpop.f32.mrf.mxu0
    %509 = vmatprep.mubr.f32.mxu0 0.0
    %510 = vmatmul.mubr.f32.gmra.mxu0 %v438
    %v511 = vpop.f32.mrf.mxu0
    %v512 = vadd.f32 %v210, %v511
    %v513 = vpop.f32.mrf.mxu0
    %514 = vdwg.mxu0
    %v516 = vrot.slane %v507, 7
    %vm518 = vcmask 1040384
    %v519 = vsel %vm518, %v285, %v516
    %vm520 = vcmask 130048
    %v522 = vsel %vm520, 0.0, 0
    %524 = vmatprep.subr.mxu0 0.0
    %525 = vmatpush1.msra.mxu0 0.0
    %526 = vmatprep.subr.mxu0 0.0
    %527 = vmatpush1.msra.mxu0 0.0
    %528 = vmatprep.subr.mxu0 0.0
    %529 = vmatpush1.msra.mxu0 0.0
    %530 = vmatprep.subr.mxu0 0.0
    %531 = vmatpush1.msra.mxu0 0.0
    %532 = vmatprep.subr.mxu0 0.0
    %533 = vmatpush1.msra.mxu0 0.0
    %534 = vmatprep.subr.mxu0 0.0
    %535 = vmatpush1.msra.mxu0 0.0
    %536 = vmatprep.subr.mxu0 0.0
    %537 = vmatpush1.msra.mxu0 0.0
    %538 = vmatprep.subr.mxu0 0.0
    %539 = vmatpush1.msra.mxu0 0.0
    %540 = vmatprep.subr.mxu0 0.0
    %541 = vmatpush1.msra.mxu0 0.0
    %542 = vmatprep.subr.mxu0 0.0
    %543 = vmatpush1.msra.mxu0 0.0
    %544 = vmatprep.subr.mxu0 0.0
    %545 = vmatpush1.msra.mxu0 0.0
    %546 = vmatprep.subr.mxu0 0.0
    %547 = vmatpush1.msra.mxu0 0.0
    %548 = vmatprep.subr.mxu0 0.0
    %549 = vmatpush1.msra.mxu0 0.0
    %550 = vmatprep.subr.mxu0 0.0
    %551 = vmatpush1.msra.mxu0 0.0
    %552 = vmatprep.subr.mxu0 0.0
    %553 = vmatpush1.msra.mxu0 %v44
    %554 = vmatprep.subr.mxu0 0.0
    %555 = vmatpush1.msra.mxu0 %v43
    %556 = vmatprep.subr.mxu0 0.0
    %557 = vmatpush2.msra.mxu0 0.0
    %558 = vmatprep.subr.mxu0 0.0
    %559 = vmatpush2.msra.mxu0 0.0
    %560 = vmatprep.subr.mxu0 0.0
    %561 = vmatpush2.msra.mxu0 0.0
    %562 = vmatprep.subr.mxu0 0.0
    %563 = vmatpush2.msra.mxu0 0.0
    %564 = vmatprep.subr.mxu0 0.0
    %565 = vmatpush2.msra.mxu0 0.0
    %566 = vmatprep.subr.mxu0 0.0
    %567 = vmatpush2.msra.mxu0 0.0
    %568 = vmatprep.subr.mxu0 0.0
    %569 = vmatpush2.msra.mxu0 0.0
    %570 = vmatprep.subr.mxu0 0.0
    %571 = vmatpush2.msra.mxu0 0.0
    %572 = vmatprep.subr.mxu0 0.0
    %573 = vmatpush2.msra.mxu0 0.0
    %574 = vmatprep.subr.mxu0 0.0
    %575 = vmatpush2.msra.mxu0 0.0
    %576 = vmatprep.subr.mxu0 0.0
    %577 = vmatpush2.msra.mxu0 0.0
    %578 = vmatprep.subr.mxu0 0.0
    %579 = vmatpush2.msra.mxu0 0.0
    %580 = vmatprep.subr.mxu0 0.0
    %581 = vmatpush2.msra.mxu0 0.0
    %582 = vmatprep.subr.mxu0 0.0
    %583 = vmatpush2.msra.mxu0 0.0
    %584 = vmatprep.subr.mxu0 0.0
    %585 = vmatpush2.msra.mxu0 0.0
    %586 = vmatprep.subr.mxu0 0.0
    %587 = vmatpush2.msra.mxu0 0.0
    %588 = vmatprep.mubr.f32.mxu0 0.0
    %589 = vmatmul.mubr.f32.gmra.mxu0 %v522
    %v590 = vpop.f32.mrf.mxu0
    %v591 = vadd.f32 0.0, %v590
    %v592 = vpop.f32.mrf.mxu0
    %593 = vdwg.mxu0
    %v594 = vadd.f32 %v519, %v591
    %v595 = vxor.u32 %v594, 2147483648
    %v596 = vmul.f32 %v595, 1.442695
    %v597 = vpow.pop %v596
    %v598 = vadd.f32 %v597, 1.0
    %v599 = vrcp.pop %v598
    %v600 = vmul.f32 1.0, %v599
    %v601 = vtanh.pop %v594
    %v602 = vmul.f32 %v600, 0.0
    %604 = vrot.lane.b32.xlu0 %v601, 80
    %v605 = vpop.permute.xlu0 %604
    %v607 = vmul.f32 %v600, %v605
    %609 = vrot.lane.b32.xlu0 %v607, 16
    %v610 = vpop.permute.xlu0 %609
    %v612 = vadd.f32 %v602, %v610
    %v613 = vtanh.pop %v612
    %615 = vrot.lane.b32.xlu0 %v613, 16
    %v616 = vpop.permute.xlu0 %615
    %v618 = vmul.f32 %v600, %v616
    %v619 = vmax.f32 %v618, 0.0
    %v621 = vlaneseq
    %v622 = vshrl.u32 %v621, 7
    %v623 = vsub.s32 0, %v622
    %v624 = vrot.slane %v50, %v623
    %627 = vrot.lane.b32.xlu0 %v619, 96
    %v628 = vpop.permute.xlu0 %627
    %v629 = vsel %vm520, %v628, 0
    %631 = vmatprep.subr.mxu0 0.0
    %632 = vmatpush1.msra.mxu0 0.0
    %633 = vmatprep.subr.mxu0 0.0
    %634 = vmatpush1.msra.mxu0 0.0
    %635 = vmatprep.subr.mxu0 0.0
    %636 = vmatpush1.msra.mxu0 0.0
    %637 = vmatprep.subr.mxu0 0.0
    %638 = vmatpush1.msra.mxu0 0.0
    %639 = vmatprep.subr.mxu0 0.0
    %640 = vmatpush1.msra.mxu0 0.0
    %641 = vmatprep.subr.mxu0 0.0
    %642 = vmatpush1.msra.mxu0 0.0
    %643 = vmatprep.subr.mxu0 0.0
    %644 = vmatpush1.msra.mxu0 0.0
    %645 = vmatprep.subr.mxu0 0.0
    %646 = vmatpush1.msra.mxu0 0.0
    %647 = vmatprep.subr.mxu0 0.0
    %648 = vmatpush1.msra.mxu0 0.0
    %649 = vmatprep.subr.mxu0 0.0
    %650 = vmatpush1.msra.mxu0 0.0
    %651 = vmatprep.subr.mxu0 0.0
    %652 = vmatpush1.msra.mxu0 0.0
    %653 = vmatprep.subr.mxu0 0.0
    %654 = vmatpush1.msra.mxu0 0.0
    %655 = vmatprep.subr.mxu0 0.0
    %656 = vmatpush1.msra.mxu0 0.0
    %657 = vmatprep.subr.mxu0 0.0
    %658 = vmatpush1.msra.mxu0 0.0
    %659 = vmatprep.subr.mxu0 0.0
    %660 = vmatpush1.msra.mxu0 %v47
    %661 = vmatprep.subr.mxu0 0.0
    %662 = vmatpush1.msra.mxu0 %v46
    %663 = vmatprep.subr.mxu0 0.0
    %664 = vmatpush2.msra.mxu0 0.0
    %665 = vmatprep.subr.mxu0 0.0
    %666 = vmatpush2.msra.mxu0 0.0
    %667 = vmatprep.subr.mxu0 0.0
    %668 = vmatpush2.msra.mxu0 0.0
    %669 = vmatprep.subr.mxu0 0.0
    %670 = vmatpush2.msra.mxu0 0.0
    %671 = vmatprep.subr.mxu0 0.0
    %672 = vmatpush2.msra.mxu0 0.0
    %673 = vmatprep.subr.mxu0 0.0
    %674 = vmatpush2.msra.mxu0 0.0
    %675 = vmatprep.subr.mxu0 0.0
    %676 = vmatpush2.msra.mxu0 0.0
    %677 = vmatprep.subr.mxu0 0.0
    %678 = vmatpush2.msra.mxu0 0.0
    %679 = vmatprep.subr.mxu0 0.0
    %680 = vmatpush2.msra.mxu0 0.0
    %681 = vmatprep.subr.mxu0 0.0
    %682 = vmatpush2.msra.mxu0 0.0
    %683 = vmatprep.subr.mxu0 0.0
    %684 = vmatpush2.msra.mxu0 0.0
    %685 = vmatprep.subr.mxu0 0.0
    %686 = vmatpush2.msra.mxu0 0.0
    %687 = vmatprep.subr.mxu0 0.0
    %688 = vmatpush2.msra.mxu0 0.0
    %689 = vmatprep.subr.mxu0 0.0
    %690 = vmatpush2.msra.mxu0 0.0
    %691 = vmatprep.subr.mxu0 0.0
    %692 = vmatpush2.msra.mxu0 0.0
    %693 = vmatprep.subr.mxu0 0.0
    %694 = vmatpush2.msra.mxu0 0.0
    %695 = vmatprep.mubr.f32.mxu0 0.0
    %696 = vmatmul.mubr.f32.gmra.mxu0 %v629
    %v697 = vpop.f32.mrf.mxu0
    %v698 = vadd.f32 %v624, %v697
    %v699 = vpop.f32.mrf.mxu0
    %700 = vdwg.mxu0
    %v702 = vrot.slane %v285, 1
    %v704 = vsel %vm518, %v702, %v507
    %706 = vrot.lane.b32.xlu0 %v618, 96
    %v707 = vpop.permute.xlu0 %706
    %v708 = vsel %vm520, %v707, 0
    %710 = vmatprep.subr.mxu0 0.0
    %711 = vmatpush1.msra.mxu0 0.0
    %712 = vmatprep.subr.mxu0 0.0
    %713 = vmatpush1.msra.mxu0 0.0
    %714 = vmatprep.subr.mxu0 0.0
    %715 = vmatpush1.msra.mxu0 0.0
    %716 = vmatprep.subr.mxu0 0.0
    %717 = vmatpush1.msra.mxu0 0.0
    %718 = vmatprep.subr.mxu0 0.0
    %719 = vmatpush1.msra.mxu0 0.0
    %720 = vmatprep.subr.mxu0 0.0
    %721 = vmatpush1.msra.mxu0 0.0
    %722 = vmatprep.subr.mxu0 0.0
    %723 = vmatpush1.msra.mxu0 0.0
    %724 = vmatprep.subr.mxu0 0.0
    %725 = vmatpush1.msra.mxu0 0.0
    %726 = vmatprep.subr.mxu0 0.0
    %727 = vmatpush1.msra.mxu0 0.0
    %728 = vmatprep.subr.mxu0 0.0
    %729 = vmatpush1.msra.mxu0 0.0
    %730 = vmatprep.subr.mxu0 0.0
    %731 = vmatpush1.msra.mxu0 0.0
    %732 = vmatprep.subr.mxu0 0.0
    %733 = vmatpush1.msra.mxu0 0.0
    %734 = vmatprep.subr.mxu0 0.0
    %735 = vmatpush1.msra.mxu0 0.0
    %736 = vmatprep.subr.mxu0 0.0
    %737 = vmatpush1.msra.mxu0 0.0
    %738 = vmatprep.subr.mxu0 0.0
    %739 = vmatpush1.msra.mxu0 %v44
    %740 = vmatprep.subr.mxu0 0.0
    %741 = vmatpush1.msra.mxu0 %v43
    %742 = vmatprep.subr.mxu0 0.0
    %743 = vmatpush2.msra.mxu0 0.0
    %744 = vmatprep.subr.mxu0 0.0
    %745 = vmatpush2.msra.mxu0 0.0
    %746 = vmatprep.subr.mxu0 0.0
    %747 = vmatpush2.msra.mxu0 0.0
    %748 = vmatprep.subr.mxu0 0.0
    %749 = vmatpush2.msra.mxu0 0.0
    %750 = vmatprep.subr.mxu0 0.0
    %751 = vmatpush2.msra.mxu0 0.0
    %752 = vmatprep.subr.mxu0 0.0
    %753 = vmatpush2.msra.mxu0 0.0
    %754 = vmatprep.subr.mxu0 0.0
    %755 = vmatpush2.msra.mxu0 0.0
    %756 = vmatprep.subr.mxu0 0.0
    %757 = vmatpush2.msra.mxu0 0.0
    %758 = vmatprep.subr.mxu0 0.0
    %759 = vmatpush2.msra.mxu0 0.0
    %760 = vmatprep.subr.mxu0 0.0
    %761 = vmatpush2.msra.mxu0 0.0
    %762 = vmatprep.subr.mxu0 0.0
    %763 = vmatpush2.msra.mxu0 0.0
    %764 = vmatprep.subr.mxu0 0.0
    %765 = vmatpush2.msra.mxu0 0.0
    %766 = vmatprep.subr.mxu0 0.0
    %767 = vmatpush2.msra.mxu0 0.0
    %768 = vmatprep.subr.mxu0 0.0
    %769 = vmatpush2.msra.mxu0 0.0
    %770 = vmatprep.subr.mxu0 0.0
    %771 = vmatpush2.msra.mxu0 0.0
    %772 = vmatprep.subr.mxu0 0.0
    %773 = vmatpush2.msra.mxu0 0.0
    %774 = vmatprep.mubr.f32.mxu0 0.0
    %775 = vmatmul.mubr.f32.gmra.mxu0 %v708
    %v776 = vpop.f32.mrf.mxu0
    %v777 = vadd.f32 0.0, %v776
    %v778 = vpop.f32.mrf.mxu0
    %779 = vdwg.mxu0
    %v780 = vadd.f32 %v704, %v777
    %v781 = vxor.u32 %v780, 2147483648
    %v782 = vmul.f32 %v781, 1.442695
    %v783 = vpow.pop %v782
    %v784 = vadd.f32 %v783, 1.0
    %v785 = vrcp.pop %v784
    %v786 = vmul.f32 1.0, %v785
    %v787 = vtanh.pop %v780
    %v788 = vmul.f32 %v786, %v612
    %790 = vrot.lane.b32.xlu0 %v787, 80
    %v791 = vpop.permute.xlu0 %790
    %v793 = vmul.f32 %v786, %v791
    %795 = vrot.lane.b32.xlu0 %v793, 16
    %v796 = vpop.permute.xlu0 %795
    %v798 = vadd.f32 %v788, %v796
    %v799 = vtanh.pop %v798
    %801 = vrot.lane.b32.xlu0 %v799, 16
    %v802 = vpop.permute.xlu0 %801
    %v804 = vmul.f32 %v786, %v802
    %v805 = vmax.f32 %v804, 0.0
    %807 = vrot.lane.b32.xlu0 %v805, 96
    %v808 = vpop.permute.xlu0 %807
    %v809 = vsel %vm520, %v808, 0
    %811 = vmatprep.subr.mxu0 0.0
    %812 = vmatpush1.msra.mxu0 0.0
    %813 = vmatprep.subr.mxu0 0.0
    %814 = vmatpush1.msra.mxu0 0.0
    %815 = vmatprep.subr.mxu0 0.0
    %816 = vmatpush1.msra.mxu0 0.0
    %817 = vmatprep.subr.mxu0 0.0
    %818 = vmatpush1.msra.mxu0 0.0
    %819 = vmatprep.subr.mxu0 0.0
    %820 = vmatpush1.msra.mxu0 0.0
    %821 = vmatprep.subr.mxu0 0.0
    %822 = vmatpush1.msra.mxu0 0.0
    %823 = vmatprep.subr.mxu0 0.0
    %824 = vmatpush1.msra.mxu0 0.0
    %825 = vmatprep.subr.mxu0 0.0
    %826 = vmatpush1.msra.mxu0 0.0
    %827 = vmatprep.subr.mxu0 0.0
    %828 = vmatpush1.msra.mxu0 0.0
    %829 = vmatprep.subr.mxu0 0.0
    %830 = vmatpush1.msra.mxu0 0.0
    %831 = vmatprep.subr.mxu0 0.0
    %832 = vmatpush1.msra.mxu0 0.0
    %833 = vmatprep.subr.mxu0 0.0
    %834 = vmatpush1.msra.mxu0 0.0
    %835 = vmatprep.subr.mxu0 0.0
    %836 = vmatpush1.msra.mxu0 0.0
    %837 = vmatprep.subr.mxu0 0.0
    %838 = vmatpush1.msra.mxu0 0.0
    %839 = vmatprep.subr.mxu0 0.0
    %840 = vmatpush1.msra.mxu0 %v47
    %841 = vmatprep.subr.mxu0 0.0
    %842 = vmatpush1.msra.mxu0 %v46
    %843 = vmatprep.subr.mxu0 0.0
    %844 = vmatpush2.msra.mxu0 0.0
    %845 = vmatprep.subr.mxu0 0.0
    %846 = vmatpush2.msra.mxu0 0.0
    %847 = vmatprep.subr.mxu0 0.0
    %848 = vmatpush2.msra.mxu0 0.0
    %849 = vmatprep.subr.mxu0 0.0
    %850 = vmatpush2.msra.mxu0 0.0
    %851 = vmatprep.subr.mxu0 0.0
    %852 = vmatpush2.msra.mxu0 0.0
    %853 = vmatprep.subr.mxu0 0.0
    %854 = vmatpush2.msra.mxu0 0.0
    %855 = vmatprep.subr.mxu0 0.0
    %856 = vmatpush2.msra.mxu0 0.0
    %857 = vmatprep.subr.mxu0 0.0
    %858 = vmatpush2.msra.mxu0 0.0
    %859 = vmatprep.subr.mxu0 0.0
    %860 = vmatpush2.msra.mxu0 0.0
    %861 = vmatprep.subr.mxu0 0.0
    %862 = vmatpush2.msra.mxu0 0.0
    %863 = vmatprep.subr.mxu0 0.0
    %864 = vmatpush2.msra.mxu0 0.0
    %865 = vmatprep.subr.mxu0 0.0
    %866 = vmatpush2.msra.mxu0 0.0
    %867 = vmatprep.subr.mxu0 0.0
    %868 = vmatpush2.msra.mxu0 0.0
    %869 = vmatprep.subr.mxu0 0.0
    %870 = vmatpush2.msra.mxu0 0.0
    %871 = vmatprep.subr.mxu0 0.0
    %872 = vmatpush2.msra.mxu0 0.0
    %873 = vmatprep.subr.mxu0 0.0
    %874 = vmatpush2.msra.mxu0 0.0
    %875 = vmatprep.mubr.f32.mxu0 0.0
    %876 = vmatmul.mubr.f32.gmra.mxu0 %v809
    %v877 = vpop.f32.mrf.mxu0
    %v878 = vadd.f32 %v624, %v877
    %v879 = vpop.f32.mrf.mxu0
    %880 = vdwg.mxu0
    %v881 = vrot.slane %v285, 2
    %v883 = vrot.slane %v507, 1
    %v885 = vsel %vm518, %v881, %v883
    %887 = vrot.lane.b32.xlu0 %v804, 96
    %v888 = vpop.permute.xlu0 %887
    %v889 = vsel %vm520, %v888, 0
    %891 = vmatprep.subr.mxu0 0.0
    %892 = vmatpush1.msra.mxu0 0.0
    %893 = vmatprep.subr.mxu0 0.0
    %894 = vmatpush1.msra.mxu0 0.0
    %895 = vmatprep.subr.mxu0 0.0
    %896 = vmatpush1.msra.mxu0 0.0
    %897 = vmatprep.subr.mxu0 0.0
    %898 = vmatpush1.msra.mxu0 0.0
    %899 = vmatprep.subr.mxu0 0.0
    %900 = vmatpush1.msra.mxu0 0.0
    %901 = vmatprep.subr.mxu0 0.0
    %902 = vmatpush1.msra.mxu0 0.0
    %903 = vmatprep.subr.mxu0 0.0
    %904 = vmatpush1.msra.mxu0 0.0
    %905 = vmatprep.subr.mxu0 0.0
    %906 = vmatpush1.msra.mxu0 0.0
    %907 = vmatprep.subr.mxu0 0.0
    %908 = vmatpush1.msra.mxu0 0.0
    %909 = vmatprep.subr.mxu0 0.0
    %910 = vmatpush1.msra.mxu0 0.0
    %911 = vmatprep.subr.mxu0 0.0
    %912 = vmatpush1.msra.mxu0 0.0
    %913 = vmatprep.subr.mxu0 0.0
    %914 = vmatpush1.msra.mxu0 0.0
    %915 = vmatprep.subr.mxu0 0.0
    %916 = vmatpush1.msra.mxu0 0.0
    %917 = vmatprep.subr.mxu0 0.0
    %918 = vmatpush1.msra.mxu0 0.0
    %919 = vmatprep.subr.mxu0 0.0
    %920 = vmatpush1.msra.mxu0 %v44
    %921 = vmatprep.subr.mxu0 0.0
    %922 = vmatpush1.msra.mxu0 %v43
    %923 = vmatprep.subr.mxu0 0.0
    %924 = vmatpush2.msra.mxu0 0.0
    %925 = vmatprep.subr.mxu0 0.0
    %926 = vmatpush2.msra.mxu0 0.0
    %927 = vmatprep.subr.mxu0 0.0
    %928 = vmatpush2.msra.mxu0 0.0
    %929 = vmatprep.subr.mxu0 0.0
    %930 = vmatpush2.msra.mxu0 0.0
    %931 = vmatprep.subr.mxu0 0.0
    %932 = vmatpush2.msra.mxu0 0.0
    %933 = vmatprep.subr.mxu0 0.0
    %934 = vmatpush2.msra.mxu0 0.0
    %935 = vmatprep.subr.mxu0 0.0
    %936 = vmatpush2.msra.mxu0 0.0
    %937 = vmatprep.subr.mxu0 0.0
    %938 = vmatpush2.msra.mxu0 0.0
    %939 = vmatprep.subr.mxu0 0.0
    %940 = vmatpush2.msra.mxu0 0.0
    %941 = vmatprep.subr.mxu0 0.0
    %942 = vmatpush2.msra.mxu0 0.0
    %943 = vmatprep.subr.mxu0 0.0
    %944 = vmatpush2.msra.mxu0 0.0
    %945 = vmatprep.subr.mxu0 0.0
    %946 = vmatpush2.msra.mxu0 0.0
    %947 = vmatprep.subr.mxu0 0.0
    %948 = vmatpush2.msra.mxu0 0.0
    %949 = vmatprep.subr.mxu0 0.0
    %950 = vmatpush2.msra.mxu0 0.0
    %951 = vmatprep.subr.mxu0 0.0
    %952 = vmatpush2.msra.mxu0 0.0
    %953 = vmatprep.subr.mxu0 0.0
    %954 = vmatpush2.msra.mxu0 0.0
    %955 = vmatprep.mubr.f32.mxu0 0.0
    %956 = vmatmul.mubr.f32.gmra.mxu0 %v889
    %v957 = vpop.f32.mrf.mxu0
    %v958 = vadd.f32 0.0, %v957
    %v959 = vpop.f32.mrf.mxu0
    %960 = vdwg.mxu0
    %v961 = vadd.f32 %v885, %v958
    %v962 = vxor.u32 %v961, 2147483648
    %v963 = vmul.f32 %v962, 1.442695
    %v964 = vpow.pop %v963
    %v965 = vadd.f32 %v964, 1.0
    %v966 = vrcp.pop %v965
    %v967 = vmul.f32 1.0, %v966
    %v968 = vtanh.pop %v961
    %v969 = vmul.f32 %v967, %v798
    %971 = vrot.lane.b32.xlu0 %v968, 80
    %v972 = vpop.permute.xlu0 %971
    %v974 = vmul.f32 %v967, %v972
    %976 = vrot.lane.b32.xlu0 %v974, 16
    %v977 = vpop.permute.xlu0 %976
    %v979 = vadd.f32 %v969, %v977
    %v980 = vtanh.pop %v979
    %982 = vrot.lane.b32.xlu0 %v980, 16
    %v983 = vpop.permute.xlu0 %982
    %v985 = vmul.f32 %v967, %v983
    %v986 = vmax.f32 %v985, 0.0
    %988 = vrot.lane.b32.xlu0 %v986, 96
    %v989 = vpop.permute.xlu0 %988
    %v990 = vsel %vm520, %v989, 0
    %992 = vmatprep.subr.mxu0 0.0
    %993 = vmatpush1.msra.mxu0 0.0
    %994 = vmatprep.subr.mxu0 0.0
    %995 = vmatpush1.msra.mxu0 0.0
    %996 = vmatprep.subr.mxu0 0.0
    %997 = vmatpush1.msra.mxu0 0.0
    %998 = vmatprep.subr.mxu0 0.0
    %999 = vmatpush1.msra.mxu0 0.0
    %1000 = vmatprep.subr.mxu0 0.0
    %1001 = vmatpush1.msra.mxu0 0.0
    %1002 = vmatprep.subr.mxu0 0.0
    %1003 = vmatpush1.msra.mxu0 0.0
    %1004 = vmatprep.subr.mxu0 0.0
    %1005 = vmatpush1.msra.mxu0 0.0
    %1006 = vmatprep.subr.mxu0 0.0
    %1007 = vmatpush1.msra.mxu0 0.0
    %1008 = vmatprep.subr.mxu0 0.0
    %1009 = vmatpush1.msra.mxu0 0.0
    %1010 = vmatprep.subr.mxu0 0.0
    %1011 = vmatpush1.msra.mxu0 0.0
    %1012 = vmatprep.subr.mxu0 0.0
    %1013 = vmatpush1.msra.mxu0 0.0
    %1014 = vmatprep.subr.mxu0 0.0
    %1015 = vmatpush1.msra.mxu0 0.0
    %1016 = vmatprep.subr.mxu0 0.0
    %1017 = vmatpush1.msra.mxu0 0.0
    %1018 = vmatprep.subr.mxu0 0.0
    %1019 = vmatpush1.msra.mxu0 0.0
    %1020 = vmatprep.subr.mxu0 0.0
    %1021 = vmatpush1.msra.mxu0 %v47
    %1022 = vmatprep.subr.mxu0 0.0
    %1023 = vmatpush1.msra.mxu0 %v46
    %1024 = vmatprep.subr.mxu0 0.0
    %1025 = vmatpush2.msra.mxu0 0.0
    %1026 = vmatprep.subr.mxu0 0.0
    %1027 = vmatpush2.msra.mxu0 0.0
    %1028 = vmatprep.subr.mxu0 0.0
    %1029 = vmatpush2.msra.mxu0 0.0
    %1030 = vmatprep.subr.mxu0 0.0
    %1031 = vmatpush2.msra.mxu0 0.0
    %1032 = vmatprep.subr.mxu0 0.0
    %1033 = vmatpush2.msra.mxu0 0.0
    %1034 = vmatprep.subr.mxu0 0.0
    %1035 = vmatpush2.msra.mxu0 0.0
    %1036 = vmatprep.subr.mxu0 0.0
    %1037 = vmatpush2.msra.mxu0 0.0
    %1038 = vmatprep.subr.mxu0 0.0
    %1039 = vmatpush2.msra.mxu0 0.0
    %1040 = vmatprep.subr.mxu0 0.0
    %1041 = vmatpush2.msra.mxu0 0.0
    %1042 = vmatprep.subr.mxu0 0.0
    %1043 = vmatpush2.msra.mxu0 0.0
    %1044 = vmatprep.subr.mxu0 0.0
    %1045 = vmatpush2.msra.mxu0 0.0
    %1046 = vmatprep.subr.mxu0 0.0
    %1047 = vmatpush2.msra.mxu0 0.0
    %1048 = vmatprep.subr.mxu0 0.0
    %1049 = vmatpush2.msra.mxu0 0.0
    %1050 = vmatprep.subr.mxu0 0.0
    %1051 = vmatpush2.msra.mxu0 0.0
    %1052 = vmatprep.subr.mxu0 0.0
    %1053 = vmatpush2.msra.mxu0 0.0
    %1054 = vmatprep.subr.mxu0 0.0
    %1055 = vmatpush2.msra.mxu0 0.0
    %1056 = vmatprep.mubr.f32.mxu0 0.0
    %1057 = vmatmul.mubr.f32.gmra.mxu0 %v990
    %v1058 = vpop.f32.mrf.mxu0
    %v1059 = vadd.f32 %v624, %v1058
    %v1060 = vpop.f32.mrf.mxu0
    %1061 = vdwg.mxu0
    %v1062 = vrot.slane %v285, 3
    %v1064 = vrot.slane %v507, 2
    %v1066 = vsel %vm518, %v1062, %v1064
    %1068 = vrot.lane.b32.xlu0 %v985, 96
    %v1069 = vpop.permute.xlu0 %1068
    %v1070 = vsel %vm520, %v1069, 0
    %1072 = vmatprep.subr.mxu0 0.0
    %1073 = vmatpush1.msra.mxu0 0.0
    %1074 = vmatprep.subr.mxu0 0.0
    %1075 = vmatpush1.msra.mxu0 0.0
    %1076 = vmatprep.subr.mxu0 0.0
    %1077 = vmatpush1.msra.mxu0 0.0
    %1078 = vmatprep.subr.mxu0 0.0
    %1079 = vmatpush1.msra.mxu0 0.0
    %1080 = vmatprep.subr.mxu0 0.0
    %1081 = vmatpush1.msra.mxu0 0.0
    %1082 = vmatprep.subr.mxu0 0.0
    %1083 = vmatpush1.msra.mxu0 0.0
    %1084 = vmatprep.subr.mxu0 0.0
    %1085 = vmatpush1.msra.mxu0 0.0
    %1086 = vmatprep.subr.mxu0 0.0
    %1087 = vmatpush1.msra.mxu0 0.0
    %1088 = vmatprep.subr.mxu0 0.0
    %1089 = vmatpush1.msra.mxu0 0.0
    %1090 = vmatprep.subr.mxu0 0.0
    %1091 = vmatpush1.msra.mxu0 0.0
    %1092 = vmatprep.subr.mxu0 0.0
    %1093 = vmatpush1.msra.mxu0 0.0
    %1094 = vmatprep.subr.mxu0 0.0
    %1095 = vmatpush1.msra.mxu0 0.0
    %1096 = vmatprep.subr.mxu0 0.0
    %1097 = vmatpush1.msra.mxu0 0.0
    %1098 = vmatprep.subr.mxu0 0.0
    %1099 = vmatpush1.msra.mxu0 0.0
    %1100 = vmatprep.subr.mxu0 0.0
    %1101 = vmatpush1.msra.mxu0 %v44
    %1102 = vmatprep.subr.mxu0 0.0
    %1103 = vmatpush1.msra.mxu0 %v43
    %1104 = vmatprep.subr.mxu0 0.0
    %1105 = vmatpush2.msra.mxu0 0.0
    %1106 = vmatprep.subr.mxu0 0.0
    %1107 = vmatpush2.msra.mxu0 0.0
    %1108 = vmatprep.subr.mxu0 0.0
    %1109 = vmatpush2.msra.mxu0 0.0
    %1110 = vmatprep.subr.mxu0 0.0
    %1111 = vmatpush2.msra.mxu0 0.0
    %1112 = vmatprep.subr.mxu0 0.0
    %1113 = vmatpush2.msra.mxu0 0.0
    %1114 = vmatprep.subr.mxu0 0.0
    %1115 = vmatpush2.msra.mxu0 0.0
    %1116 = vmatprep.subr.mxu0 0.0
    %1117 = vmatpush2.msra.mxu0 0.0
    %1118 = vmatprep.subr.mxu0 0.0
    %1119 = vmatpush2.msra.mxu0 0.0
    %1120 = vmatprep.subr.mxu0 0.0
    %1121 = vmatpush2.msra.mxu0 0.0
    %1122 = vmatprep.subr.mxu0 0.0
    %1123 = vmatpush2.msra.mxu0 0.0
    %1124 = vmatprep.subr.mxu0 0.0
    %1125 = vmatpush2.msra.mxu0 0.0
    %1126 = vmatprep.subr.mxu0 0.0
    %1127 = vmatpush2.msra.mxu0 0.0
    %1128 = vmatprep.subr.mxu0 0.0
    %1129 = vmatpush2.msra.mxu0 0.0
    %1130 = vmatprep.subr.mxu0 0.0
    %1131 = vmatpush2.msra.mxu0 0.0
    %1132 = vmatprep.subr.mxu0 0.0
    %1133 = vmatpush2.msra.mxu0 0.0
    %1134 = vmatprep.subr.mxu0 0.0
    %1135 = vmatpush2.msra.mxu0 0.0
    %1136 = vmatprep.mubr.f32.mxu0 0.0
    %1137 = vmatmul.mubr.f32.gmra.mxu0 %v1070
    %v1138 = vpop.f32.mrf.mxu0
    %v1139 = vadd.f32 0.0, %v1138
    %v1140 = vpop.f32.mrf.mxu0
    %1141 = vdwg.mxu0
    %v1142 = vadd.f32 %v1066, %v1139
    %v1143 = vxor.u32 %v1142, 2147483648
    %v1144 = vmul.f32 %v1143, 1.442695
    %v1145 = vpow.pop %v1144
    %v1146 = vadd.f32 %v1145, 1.0
    %v1147 = vrcp.pop %v1146
    %v1148 = vmul.f32 1.0, %v1147
    %v1149 = vtanh.pop %v1142
    %v1150 = vmul.f32 %v1148, %v979
    %1152 = vrot.lane.b32.xlu0 %v1149, 80
    %v1153 = vpop.permute.xlu0 %1152
    %v1155 = vmul.f32 %v1148, %v1153
    %1157 = vrot.lane.b32.xlu0 %v1155, 16
    %v1158 = vpop.permute.xlu0 %1157
    %v1160 = vadd.f32 %v1150, %v1158
    %v1161 = vtanh.pop %v1160
    %1163 = vrot.lane.b32.xlu0 %v1161, 16
    %v1164 = vpop.permute.xlu0 %1163
    %v1166 = vmul.f32 %v1148, %v1164
    %v1167 = vmax.f32 %v1166, 0.0
    %1169 = vrot.lane.b32.xlu0 %v1167, 96
    %v1170 = vpop.permute.xlu0 %1169
    %v1171 = vsel %vm520, %v1170, 0
    %1173 = vmatprep.subr.mxu0 0.0
    %1174 = vmatpush1.msra.mxu0 0.0
    %1175 = vmatprep.subr.mxu0 0.0
    %1176 = vmatpush1.msra.mxu0 0.0
    %1177 = vmatprep.subr.mxu0 0.0
    %1178 = vmatpush1.msra.mxu0 0.0
    %1179 = vmatprep.subr.mxu0 0.0
    %1180 = vmatpush1.msra.mxu0 0.0
    %1181 = vmatprep.subr.mxu0 0.0
    %1182 = vmatpush1.msra.mxu0 0.0
    %1183 = vmatprep.subr.mxu0 0.0
    %1184 = vmatpush1.msra.mxu0 0.0
    %1185 = vmatprep.subr.mxu0 0.0
    %1186 = vmatpush1.msra.mxu0 0.0
    %1187 = vmatprep.subr.mxu0 0.0
    %1188 = vmatpush1.msra.mxu0 0.0
    %1189 = vmatprep.subr.mxu0 0.0
    %1190 = vmatpush1.msra.mxu0 0.0
    %1191 = vmatprep.subr.mxu0 0.0
    %1192 = vmatpush1.msra.mxu0 0.0
    %1193 = vmatprep.subr.mxu0 0.0
    %1194 = vmatpush1.msra.mxu0 0.0
    %1195 = vmatprep.subr.mxu0 0.0
    %1196 = vmatpush1.msra.mxu0 0.0
    %1197 = vmatprep.subr.mxu0 0.0
    %1198 = vmatpush1.msra.mxu0 0.0
    %1199 = vmatprep.subr.mxu0 0.0
    %1200 = vmatpush1.msra.mxu0 0.0
    %1201 = vmatprep.subr.mxu0 0.0
    %1202 = vmatpush1.msra.mxu0 %v47
    %1203 = vmatprep.subr.mxu0 0.0
    %1204 = vmatpush1.msra.mxu0 %v46
    %1205 = vmatprep.subr.mxu0 0.0
    %1206 = vmatpush2.msra.mxu0 0.0
    %1207 = vmatprep.subr.mxu0 0.0
    %1208 = vmatpush2.msra.mxu0 0.0
    %1209 = vmatprep.subr.mxu0 0.0
    %1210 = vmatpush2.msra.mxu0 0.0
    %1211 = vmatprep.subr.mxu0 0.0
    %1212 = vmatpush2.msra.mxu0 0.0
    %1213 = vmatprep.subr.mxu0 0.0
    %1214 = vmatpush2.msra.mxu0 0.0
    %1215 = vmatprep.subr.mxu0 0.0
    %1216 = vmatpush2.msra.mxu0 0.0
    %1217 = vmatprep.subr.mxu0 0.0
    %1218 = vmatpush2.msra.mxu0 0.0
    %1219 = vmatprep.subr.mxu0 0.0
    %1220 = vmatpush2.msra.mxu0 0.0
    %1221 = vmatprep.subr.mxu0 0.0
    %1222 = vmatpush2.msra.mxu0 0.0
    %1223 = vmatprep.subr.mxu0 0.0
    %1224 = vmatpush2.msra.mxu0 0.0
    %1225 = vmatprep.subr.mxu0 0.0
    %1226 = vmatpush2.msra.mxu0 0.0
    %1227 = vmatprep.subr.mxu0 0.0
    %1228 = vmatpush2.msra.mxu0 0.0
    %1229 = vmatprep.subr.mxu0 0.0
    %1230 = vmatpush2.msra.mxu0 0.0
    %1231 = vmatprep.subr.mxu0 0.0
    %1232 = vmatpush2.msra.mxu0 0.0
    %1233 = vmatprep.subr.mxu0 0.0
    %1234 = vmatpush2.msra.mxu0 0.0
    %1235 = vmatprep.subr.mxu0 0.0
    %1236 = vmatpush2.msra.mxu0 0.0
    %1237 = vmatprep.mubr.f32.mxu0 0.0
    %1238 = vmatmul.mubr.f32.gmra.mxu0 %v1171
    %v1239 = vpop.f32.mrf.mxu0
    %v1240 = vadd.f32 %v624, %v1239
    %v1241 = vpop.f32.mrf.mxu0
    %1242 = vdwg.mxu0
    %v1243 = vrot.slane %v285, 4
    %v1245 = vrot.slane %v507, 3
    %v1247 = vsel %vm518, %v1243, %v1245
    %1249 = vrot.lane.b32.xlu0 %v1166, 96
    %v1250 = vpop.permute.xlu0 %1249
    %v1251 = vsel %vm520, %v1250, 0
    %1253 = vmatprep.subr.mxu0 0.0
    %1254 = vmatpush1.msra.mxu0 0.0
    %1255 = vmatprep.subr.mxu0 0.0
    %1256 = vmatpush1.msra.mxu0 0.0
    %1257 = vmatprep.subr.mxu0 0.0
    %1258 = vmatpush1.msra.mxu0 0.0
    %1259 = vmatprep.subr.mxu0 0.0
    %1260 = vmatpush1.msra.mxu0 0.0
    %1261 = vmatprep.subr.mxu0 0.0
    %1262 = vmatpush1.msra.mxu0 0.0
    %1263 = vmatprep.subr.mxu0 0.0
    %1264 = vmatpush1.msra.mxu0 0.0
    %1265 = vmatprep.subr.mxu0 0.0
    %1266 = vmatpush1.msra.mxu0 0.0
    %1267 = vmatprep.subr.mxu0 0.0
    %1268 = vmatpush1.msra.mxu0 0.0
    %1269 = vmatprep.subr.mxu0 0.0
    %1270 = vmatpush1.msra.mxu0 0.0
    %1271 = vmatprep.subr.mxu0 0.0
    %1272 = vmatpush1.msra.mxu0 0.0
    %1273 = vmatprep.subr.mxu0 0.0
    %1274 = vmatpush1.msra.mxu0 0.0
    %1275 = vmatprep.subr.mxu0 0.0
    %1276 = vmatpush1.msra.mxu0 0.0
    %1277 = vmatprep.subr.mxu0 0.0
    %1278 = vmatpush1.msra.mxu0 0.0
    %1279 = vmatprep.subr.mxu0 0.0
    %1280 = vmatpush1.msra.mxu0 0.0
    %1281 = vmatprep.subr.mxu0 0.0
    %1282 = vmatpush1.msra.mxu0 %v44
    %1283 = vmatprep.subr.mxu0 0.0
    %1284 = vmatpush1.msra.mxu0 %v43
    %1285 = vmatprep.subr.mxu0 0.0
    %1286 = vmatpush2.msra.mxu0 0.0
    %1287 = vmatprep.subr.mxu0 0.0
    %1288 = vmatpush2.msra.mxu0 0.0
    %1289 = vmatprep.subr.mxu0 0.0
    %1290 = vmatpush2.msra.mxu0 0.0
    %1291 = vmatprep.subr.mxu0 0.0
    %1292 = vmatpush2.msra.mxu0 0.0
    %1293 = vmatprep.subr.mxu0 0.0
    %1294 = vmatpush2.msra.mxu0 0.0
    %1295 = vmatprep.subr.mxu0 0.0
    %1296 = vmatpush2.msra.mxu0 0.0
    %1297 = vmatprep.subr.mxu0 0.0
    %1298 = vmatpush2.msra.mxu0 0.0
    %1299 = vmatprep.subr.mxu0 0.0
    %1300 = vmatpush2.msra.mxu0 0.0
    %1301 = vmatprep.subr.mxu0 0.0
    %1302 = vmatpush2.msra.mxu0 0.0
    %1303 = vmatprep.subr.mxu0 0.0
    %1304 = vmatpush2.msra.mxu0 0.0
    %1305 = vmatprep.subr.mxu0 0.0
    %1306 = vmatpush2.msra.mxu0 0.0
    %1307 = vmatprep.subr.mxu0 0.0
    %1308 = vmatpush2.msra.mxu0 0.0
    %1309 = vmatprep.subr.mxu0 0.0
    %1310 = vmatpush2.msra.mxu0 0.0
    %1311 = vmatprep.subr.mxu0 0.0
    %1312 = vmatpush2.msra.mxu0 0.0
    %1313 = vmatprep.subr.mxu0 0.0
    %1314 = vmatpush2.msra.mxu0 0.0
    %1315 = vmatprep.subr.mxu0 0.0
    %1316 = vmatpush2.msra.mxu0 0.0
    %1317 = vmatprep.mubr.f32.mxu0 0.0
    %1318 = vmatmul.mubr.f32.gmra.mxu0 %v1251
    %v1319 = vpop.f32.mrf.mxu0
    %v1320 = vadd.f32 0.0, %v1319
    %v1321 = vpop.f32.mrf.mxu0
    %1322 = vdwg.mxu0
    %v1323 = vadd.f32 %v1247, %v1320
    %v1324 = vxor.u32 %v1323, 2147483648
    %v1325 = vmul.f32 %v1324, 1.442695
    %v1326 = vpow.pop %v1325
    %v1327 = vadd.f32 %v1326, 1.0
    %v1328 = vrcp.pop %v1327
    %v1329 = vmul.f32 1.0, %v1328
    %v1330 = vtanh.pop %v1323
    %v1331 = vmul.f32 %v1329, %v1160
    %1333 = vrot.lane.b32.xlu0 %v1330, 80
    %v1334 = vpop.permute.xlu0 %1333
    %v1336 = vmul.f32 %v1329, %v1334
    %1338 = vrot.lane.b32.xlu0 %v1336, 16
    %v1339 = vpop.permute.xlu0 %1338
    %v1341 = vadd.f32 %v1331, %v1339
    %v1342 = vtanh.pop %v1341
    %1344 = vrot.lane.b32.xlu0 %v1342, 16
    %v1345 = vpop.permute.xlu0 %1344
    %v1347 = vmul.f32 %v1329, %v1345
    %v1348 = vmax.f32 %v1347, 0.0
    %1350 = vrot.lane.b32.xlu0 %v1348, 96
    %v1351 = vpop.permute.xlu0 %1350
    %v1352 = vsel %vm520, %v1351, 0
    %1354 = vmatprep.subr.mxu0 0.0
    %1355 = vmatpush1.msra.mxu0 0.0
    %1356 = vmatprep.subr.mxu0 0.0
    %1357 = vmatpush1.msra.mxu0 0.0
    %1358 = vmatprep.subr.mxu0 0.0
    %1359 = vmatpush1.msra.mxu0 0.0
    %1360 = vmatprep.subr.mxu0 0.0
    %1361 = vmatpush1.msra.mxu0 0.0
    %1362 = vmatprep.subr.mxu0 0.0
    %1363 = vmatpush1.msra.mxu0 0.0
    %1364 = vmatprep.subr.mxu0 0.0
    %1365 = vmatpush1.msra.mxu0 0.0
    %1366 = vmatprep.subr.mxu0 0.0
    %1367 = vmatpush1.msra.mxu0 0.0
    %1368 = vmatprep.subr.mxu0 0.0
    %1369 = vmatpush1.msra.mxu0 0.0
    %1370 = vmatprep.subr.mxu0 0.0
    %1371 = vmatpush1.msra.mxu0 0.0
    %1372 = vmatprep.subr.mxu0 0.0
    %1373 = vmatpush1.msra.mxu0 0.0
    %1374 = vmatprep.subr.mxu0 0.0
    %1375 = vmatpush1.msra.mxu0 0.0
    %1376 = vmatprep.subr.mxu0 0.0
    %1377 = vmatpush1.msra.mxu0 0.0
    %1378 = vmatprep.subr.mxu0 0.0
    %1379 = vmatpush1.msra.mxu0 0.0
    %1380 = vmatprep.subr.mxu0 0.0
    %1381 = vmatpush1.msra.mxu0 0.0
    %1382 = vmatprep.subr.mxu0 0.0
    %1383 = vmatpush1.msra.mxu0 %v47
    %1384 = vmatprep.subr.mxu0 0.0
    %1385 = vmatpush1.msra.mxu0 %v46
    %1386 = vmatprep.subr.mxu0 0.0
    %1387 = vmatpush2.msra.mxu0 0.0
    %1388 = vmatprep.subr.mxu0 0.0
    %1389 = vmatpush2.msra.mxu0 0.0
    %1390 = vmatprep.subr.mxu0 0.0
    %1391 = vmatpush2.msra.mxu0 0.0
    %1392 = vmatprep.subr.mxu0 0.0
    %1393 = vmatpush2.msra.mxu0 0.0
    %1394 = vmatprep.subr.mxu0 0.0
    %1395 = vmatpush2.msra.mxu0 0.0
    %1396 = vmatprep.subr.mxu0 0.0
    %1397 = vmatpush2.msra.mxu0 0.0
    %1398 = vmatprep.subr.mxu0 0.0
    %1399 = vmatpush2.msra.mxu0 0.0
    %1400 = vmatprep.subr.mxu0 0.0
    %1401 = vmatpush2.msra.mxu0 0.0
    %1402 = vmatprep.subr.mxu0 0.0
    %1403 = vmatpush2.msra.mxu0 0.0
    %1404 = vmatprep.subr.mxu0 0.0
    %1405 = vmatpush2.msra.mxu0 0.0
    %1406 = vmatprep.subr.mxu0 0.0
    %1407 = vmatpush2.msra.mxu0 0.0
    %1408 = vmatprep.subr.mxu0 0.0
    %1409 = vmatpush2.msra.mxu0 0.0
    %1410 = vmatprep.subr.mxu0 0.0
    %1411 = vmatpush2.msra.mxu0 0.0
    %1412 = vmatprep.subr.mxu0 0.0
    %1413 = vmatpush2.msra.mxu0 0.0
    %1414 = vmatprep.subr.mxu0 0.0
    %1415 = vmatpush2.msra.mxu0 0.0
    %1416 = vmatprep.subr.mxu0 0.0
    %1417 = vmatpush2.msra.mxu0 0.0
    %1418 = vmatprep.mubr.f32.mxu0 0.0
    %1419 = vmatmul.mubr.f32.gmra.mxu0 %v1352
    %v1420 = vpop.f32.mrf.mxu0
    %v1421 = vadd.f32 %v624, %v1420
    %v1422 = vpop.f32.mrf.mxu0
    %1423 = vdwg.mxu0
    %v1424 = vrot.slane %v285, 5
    %v1426 = vrot.slane %v507, 4
    %v1428 = vsel %vm518, %v1424, %v1426
    %1430 = vrot.lane.b32.xlu0 %v1347, 96
    %v1431 = vpop.permute.xlu0 %1430
    %v1432 = vsel %vm520, %v1431, 0
    %1434 = vmatprep.subr.mxu0 0.0
    %1435 = vmatpush1.msra.mxu0 0.0
    %1436 = vmatprep.subr.mxu0 0.0
    %1437 = vmatpush1.msra.mxu0 0.0
    %1438 = vmatprep.subr.mxu0 0.0
    %1439 = vmatpush1.msra.mxu0 0.0
    %1440 = vmatprep.subr.mxu0 0.0
    %1441 = vmatpush1.msra.mxu0 0.0
    %1442 = vmatprep.subr.mxu0 0.0
    %1443 = vmatpush1.msra.mxu0 0.0
    %1444 = vmatprep.subr.mxu0 0.0
    %1445 = vmatpush1.msra.mxu0 0.0
    %1446 = vmatprep.subr.mxu0 0.0
    %1447 = vmatpush1.msra.mxu0 0.0
    %1448 = vmatprep.subr.mxu0 0.0
    %1449 = vmatpush1.msra.mxu0 0.0
    %1450 = vmatprep.subr.mxu0 0.0
    %1451 = vmatpush1.msra.mxu0 0.0
    %1452 = vmatprep.subr.mxu0 0.0
    %1453 = vmatpush1.msra.mxu0 0.0
    %1454 = vmatprep.subr.mxu0 0.0
    %1455 = vmatpush1.msra.mxu0 0.0
    %1456 = vmatprep.subr.mxu0 0.0
    %1457 = vmatpush1.msra.mxu0 0.0
    %1458 = vmatprep.subr.mxu0 0.0
    %1459 = vmatpush1.msra.mxu0 0.0
    %1460 = vmatprep.subr.mxu0 0.0
    %1461 = vmatpush1.msra.mxu0 0.0
    %1462 = vmatprep.subr.mxu0 0.0
    %1463 = vmatpush1.msra.mxu0 %v44
    %1464 = vmatprep.subr.mxu0 0.0
    %1465 = vmatpush1.msra.mxu0 %v43
    %1466 = vmatprep.subr.mxu0 0.0
    %1467 = vmatpush2.msra.mxu0 0.0
    %1468 = vmatprep.subr.mxu0 0.0
    %1469 = vmatpush2.msra.mxu0 0.0
    %1470 = vmatprep.subr.mxu0 0.0
    %1471 = vmatpush2.msra.mxu0 0.0
    %1472 = vmatprep.subr.mxu0 0.0
    %1473 = vmatpush2.msra.mxu0 0.0
    %1474 = vmatprep.subr.mxu0 0.0
    %1475 = vmatpush2.msra.mxu0 0.0
    %1476 = vmatprep.subr.mxu0 0.0
    %1477 = vmatpush2.msra.mxu0 0.0
    %1478 = vmatprep.subr.mxu0 0.0
    %1479 = vmatpush2.msra.mxu0 0.0
    %1480 = vmatprep.subr.mxu0 0.0
    %1481 = vmatpush2.msra.mxu0 0.0
    %1482 = vmatprep.subr.mxu0 0.0
    %1483 = vmatpush2.msra.mxu0 0.0
    %1484 = vmatprep.subr.mxu0 0.0
    %1485 = vmatpush2.msra.mxu0 0.0
    %1486 = vmatprep.subr.mxu0 0.0
    %1487 = vmatpush2.msra.mxu0 0.0
    %1488 = vmatprep.subr.mxu0 0.0
    %1489 = vmatpush2.msra.mxu0 0.0
    %1490 = vmatprep.subr.mxu0 0.0
    %1491 = vmatpush2.msra.mxu0 0.0
    %1492 = vmatprep.subr.mxu0 0.0
    %1493 = vmatpush2.msra.mxu0 0.0
    %1494 = vmatprep.subr.mxu0 0.0
    %1495 = vmatpush2.msra.mxu0 0.0
    %1496 = vmatprep.subr.mxu0 0.0
    %1497 = vmatpush2.msra.mxu0 0.0
    %1498 = vmatprep.mubr.f32.mxu0 0.0
    %1499 = vmatmul.mubr.f32.gmra.mxu0 %v1432
    %v1500 = vpop.f32.mrf.mxu0
    %v1501 = vadd.f32 0.0, %v1500
    %v1502 = vpop.f32.mrf.mxu0
    %1503 = vdwg.mxu0
    %v1504 = vadd.f32 %v1428, %v1501
    %v1505 = vxor.u32 %v1504, 2147483648
    %v1506 = vmul.f32 %v1505, 1.442695
    %v1507 = vpow.pop %v1506
    %v1508 = vadd.f32 %v1507, 1.0
    %v1509 = vrcp.pop %v1508
    %v1510 = vmul.f32 1.0, %v1509
    %v1511 = vtanh.pop %v1504
    %v1512 = vmul.f32 %v1510, %v1341
    %1514 = vrot.lane.b32.xlu0 %v1511, 80
    %v1515 = vpop.permute.xlu0 %1514
    %v1517 = vmul.f32 %v1510, %v1515
    %1519 = vrot.lane.b32.xlu0 %v1517, 16
    %v1520 = vpop.permute.xlu0 %1519
    %v1522 = vadd.f32 %v1512, %v1520
    %v1523 = vtanh.pop %v1522
    %1525 = vrot.lane.b32.xlu0 %v1523, 16
    %v1526 = vpop.permute.xlu0 %1525
    %v1528 = vmul.f32 %v1510, %v1526
    %v1529 = vmax.f32 %v1528, 0.0
    %1531 = vrot.lane.b32.xlu0 %v1529, 96
    %v1532 = vpop.permute.xlu0 %1531
    %v1533 = vsel %vm520, %v1532, 0
    %1535 = vmatprep.subr.mxu0 0.0
    %1536 = vmatpush1.msra.mxu0 0.0
    %1537 = vmatprep.subr.mxu0 0.0
    %1538 = vmatpush1.msra.mxu0 0.0
    %1539 = vmatprep.subr.mxu0 0.0
    %1540 = vmatpush1.msra.mxu0 0.0
    %1541 = vmatprep.subr.mxu0 0.0
    %1542 = vmatpush1.msra.mxu0 0.0
    %1543 = vmatprep.subr.mxu0 0.0
    %1544 = vmatpush1.msra.mxu0 0.0
    %1545 = vmatprep.subr.mxu0 0.0
    %1546 = vmatpush1.msra.mxu0 0.0
    %1547 = vmatprep.subr.mxu0 0.0
    %1548 = vmatpush1.msra.mxu0 0.0
    %1549 = vmatprep.subr.mxu0 0.0
    %1550 = vmatpush1.msra.mxu0 0.0
    %1551 = vmatprep.subr.mxu0 0.0
    %1552 = vmatpush1.msra.mxu0 0.0
    %1553 = vmatprep.subr.mxu0 0.0
    %1554 = vmatpush1.msra.mxu0 0.0
    %1555 = vmatprep.subr.mxu0 0.0
    %1556 = vmatpush1.msra.mxu0 0.0
    %1557 = vmatprep.subr.mxu0 0.0
    %1558 = vmatpush1.msra.mxu0 0.0
    %1559 = vmatprep.subr.mxu0 0.0
    %1560 = vmatpush1.msra.mxu0 0.0
    %1561 = vmatprep.subr.mxu0 0.0
    %1562 = vmatpush1.msra.mxu0 0.0
    %1563 = vmatprep.subr.mxu0 0.0
    %1564 = vmatpush1.msra.mxu0 %v47
    %1565 = vmatprep.subr.mxu0 0.0
    %1566 = vmatpush1.msra.mxu0 %v46
    %1567 = vmatprep.subr.mxu0 0.0
    %1568 = vmatpush2.msra.mxu0 0.0
    %1569 = vmatprep.subr.mxu0 0.0
    %1570 = vmatpush2.msra.mxu0 0.0
    %1571 = vmatprep.subr.mxu0 0.0
    %1572 = vmatpush2.msra.mxu0 0.0
    %1573 = vmatprep.subr.mxu0 0.0
    %1574 = vmatpush2.msra.mxu0 0.0
    %1575 = vmatprep.subr.mxu0 0.0
    %1576 = vmatpush2.msra.mxu0 0.0
    %1577 = vmatprep.subr.mxu0 0.0
    %1578 = vmatpush2.msra.mxu0 0.0
    %1579 = vmatprep.subr.mxu0 0.0
    %1580 = vmatpush2.msra.mxu0 0.0
    %1581 = vmatprep.subr.mxu0 0.0
    %1582 = vmatpush2.msra.mxu0 0.0
    %1583 = vmatprep.subr.mxu0 0.0
    %1584 = vmatpush2.msra.mxu0 0.0
    %1585 = vmatprep.subr.mxu0 0.0
    %1586 = vmatpush2.msra.mxu0 0.0
    %1587 = vmatprep.subr.mxu0 0.0
    %1588 = vmatpush2.msra.mxu0 0.0
    %1589 = vmatprep.subr.mxu0 0.0
    %1590 = vmatpush2.msra.mxu0 0.0
    %1591 = vmatprep.subr.mxu0 0.0
    %1592 = vmatpush2.msra.mxu0 0.0
    %1593 = vmatprep.subr.mxu0 0.0
    %1594 = vmatpush2.msra.mxu0 0.0
    %1595 = vmatprep.subr.mxu0 0.0
    %1596 = vmatpush2.msra.mxu0 0.0
    %1597 = vmatprep.subr.mxu0 0.0
    %1598 = vmatpush2.msra.mxu0 0.0
    %1599 = vmatprep.mubr.f32.mxu0 0.0
    %1600 = vmatmul.mubr.f32.gmra.mxu0 %v1533
    %v1601 = vpop.f32.mrf.mxu0
    %v1602 = vadd.f32 %v624, %v1601
    %v1603 = vpop.f32.mrf.mxu0
    %1604 = vdwg.mxu0
    %v1605 = vrot.slane %v285, 6
    %v1607 = vrot.slane %v507, 5
    %v1609 = vsel %vm518, %v1605, %v1607
    %1611 = vrot.lane.b32.xlu0 %v1528, 96
    %v1612 = vpop.permute.xlu0 %1611
    %v1613 = vsel %vm520, %v1612, 0
    %1615 = vmatprep.subr.mxu0 0.0
    %1616 = vmatpush1.msra.mxu0 0.0
    %1617 = vmatprep.subr.mxu0 0.0
    %1618 = vmatpush1.msra.mxu0 0.0
    %1619 = vmatprep.subr.mxu0 0.0
    %1620 = vmatpush1.msra.mxu0 0.0
    %1621 = vmatprep.subr.mxu0 0.0
    %1622 = vmatpush1.msra.mxu0 0.0
    %1623 = vmatprep.subr.mxu0 0.0
    %1624 = vmatpush1.msra.mxu0 0.0
    %1625 = vmatprep.subr.mxu0 0.0
    %1626 = vmatpush1.msra.mxu0 0.0
    %1627 = vmatprep.subr.mxu0 0.0
    %1628 = vmatpush1.msra.mxu0 0.0
    %1629 = vmatprep.subr.mxu0 0.0
    %1630 = vmatpush1.msra.mxu0 0.0
    %1631 = vmatprep.subr.mxu0 0.0
    %1632 = vmatpush1.msra.mxu0 0.0
    %1633 = vmatprep.subr.mxu0 0.0
    %1634 = vmatpush1.msra.mxu0 0.0
    %1635 = vmatprep.subr.mxu0 0.0
    %1636 = vmatpush1.msra.mxu0 0.0
    %1637 = vmatprep.subr.mxu0 0.0
    %1638 = vmatpush1.msra.mxu0 0.0
    %1639 = vmatprep.subr.mxu0 0.0
    %1640 = vmatpush1.msra.mxu0 0.0
    %1641 = vmatprep.subr.mxu0 0.0
    %1642 = vmatpush1.msra.mxu0 0.0
    %1643 = vmatprep.subr.mxu0 0.0
    %1644 = vmatpush1.msra.mxu0 %v44
    %1645 = vmatprep.subr.mxu0 0.0
    %1646 = vmatpush1.msra.mxu0 %v43
    %1647 = vmatprep.subr.mxu0 0.0
    %1648 = vmatpush2.msra.mxu0 0.0
    %1649 = vmatprep.subr.mxu0 0.0
    %1650 = vmatpush2.msra.mxu0 0.0
    %1651 = vmatprep.subr.mxu0 0.0
    %1652 = vmatpush2.msra.mxu0 0.0
    %1653 = vmatprep.subr.mxu0 0.0
    %1654 = vmatpush2.msra.mxu0 0.0
    %1655 = vmatprep.subr.mxu0 0.0
    %1656 = vmatpush2.msra.mxu0 0.0
    %1657 = vmatprep.subr.mxu0 0.0
    %1658 = vmatpush2.msra.mxu0 0.0
    %1659 = vmatprep.subr.mxu0 0.0
    %1660 = vmatpush2.msra.mxu0 0.0
    %1661 = vmatprep.subr.mxu0 0.0
    %1662 = vmatpush2.msra.mxu0 0.0
    %1663 = vmatprep.subr.mxu0 0.0
    %1664 = vmatpush2.msra.mxu0 0.0
    %1665 = vmatprep.subr.mxu0 0.0
    %1666 = vmatpush2.msra.mxu0 0.0
    %1667 = vmatprep.subr.mxu0 0.0
    %1668 = vmatpush2.msra.mxu0 0.0
    %1669 = vmatprep.subr.mxu0 0.0
    %1670 = vmatpush2.msra.mxu0 0.0
    %1671 = vmatprep.subr.mxu0 0.0
    %1672 = vmatpush2.msra.mxu0 0.0
    %1673 = vmatprep.subr.mxu0 0.0
    %1674 = vmatpush2.msra.mxu0 0.0
    %1675 = vmatprep.subr.mxu0 0.0
    %1676 = vmatpush2.msra.mxu0 0.0
    %1677 = vmatprep.subr.mxu0 0.0
    %1678 = vmatpush2.msra.mxu0 0.0
    %1679 = vmatprep.mubr.f32.mxu0 0.0
    %1680 = vmatmul.mubr.f32.gmra.mxu0 %v1613
    %v1681 = vpop.f32.mrf.mxu0
    %v1682 = vadd.f32 0.0, %v1681
    %v1683 = vpop.f32.mrf.mxu0
    %1684 = vdwg.mxu0
    %v1685 = vadd.f32 %v1609, %v1682
    %v1686 = vxor.u32 %v1685, 2147483648
    %v1687 = vmul.f32 %v1686, 1.442695
    %v1688 = vpow.pop %v1687
    %v1689 = vadd.f32 %v1688, 1.0
    %v1690 = vrcp.pop %v1689
    %v1691 = vmul.f32 1.0, %v1690
    %v1692 = vtanh.pop %v1685
    %v1693 = vmul.f32 %v1691, %v1522
    %1695 = vrot.lane.b32.xlu0 %v1692, 80
    %v1696 = vpop.permute.xlu0 %1695
    %v1698 = vmul.f32 %v1691, %v1696
    %1700 = vrot.lane.b32.xlu0 %v1698, 16
    %v1701 = vpop.permute.xlu0 %1700
    %v1703 = vadd.f32 %v1693, %v1701
    %v1704 = vtanh.pop %v1703
    %1706 = vrot.lane.b32.xlu0 %v1704, 16
    %v1707 = vpop.permute.xlu0 %1706
    %v1709 = vmul.f32 %v1691, %v1707
    %v1710 = vmax.f32 %v1709, 0.0
    %1712 = vrot.lane.b32.xlu0 %v1710, 96
    %v1713 = vpop.permute.xlu0 %1712
    %v1714 = vsel %vm520, %v1713, 0
    %1716 = vmatprep.subr.mxu0 0.0
    %1717 = vmatpush1.msra.mxu0 0.0
    %1718 = vmatprep.subr.mxu0 0.0
    %1719 = vmatpush1.msra.mxu0 0.0
    %1720 = vmatprep.subr.mxu0 0.0
    %1721 = vmatpush1.msra.mxu0 0.0
    %1722 = vmatprep.subr.mxu0 0.0
    %1723 = vmatpush1.msra.mxu0 0.0
    %1724 = vmatprep.subr.mxu0 0.0
    %1725 = vmatpush1.msra.mxu0 0.0
    %1726 = vmatprep.subr.mxu0 0.0
    %1727 = vmatpush1.msra.mxu0 0.0
    %1728 = vmatprep.subr.mxu0 0.0
    %1729 = vmatpush1.msra.mxu0 0.0
    %1730 = vmatprep.subr.mxu0 0.0
    %1731 = vmatpush1.msra.mxu0 0.0
    %1732 = vmatprep.subr.mxu0 0.0
    %1733 = vmatpush1.msra.mxu0 0.0
    %1734 = vmatprep.subr.mxu0 0.0
    %1735 = vmatpush1.msra.mxu0 0.0
    %1736 = vmatprep.subr.mxu0 0.0
    %1737 = vmatpush1.msra.mxu0 0.0
    %1738 = vmatprep.subr.mxu0 0.0
    %1739 = vmatpush1.msra.mxu0 0.0
    %1740 = vmatprep.subr.mxu0 0.0
    %1741 = vmatpush1.msra.mxu0 0.0
    %1742 = vmatprep.subr.mxu0 0.0
    %1743 = vmatpush1.msra.mxu0 0.0
    %1744 = vmatprep.subr.mxu0 0.0
    %1745 = vmatpush1.msra.mxu0 %v47
    %1746 = vmatprep.subr.mxu0 0.0
    %1747 = vmatpush1.msra.mxu0 %v46
    %1748 = vmatprep.subr.mxu0 0.0
    %1749 = vmatpush2.msra.mxu0 0.0
    %1750 = vmatprep.subr.mxu0 0.0
    %1751 = vmatpush2.msra.mxu0 0.0
    %1752 = vmatprep.subr.mxu0 0.0
    %1753 = vmatpush2.msra.mxu0 0.0
    %1754 = vmatprep.subr.mxu0 0.0
    %1755 = vmatpush2.msra.mxu0 0.0
    %1756 = vmatprep.subr.mxu0 0.0
    %1757 = vmatpush2.msra.mxu0 0.0
    %1758 = vmatprep.subr.mxu0 0.0
    %1759 = vmatpush2.msra.mxu0 0.0
    %1760 = vmatprep.subr.mxu0 0.0
    %1761 = vmatpush2.msra.mxu0 0.0
    %1762 = vmatprep.subr.mxu0 0.0
    %1763 = vmatpush2.msra.mxu0 0.0
    %1764 = vmatprep.subr.mxu0 0.0
    %1765 = vmatpush2.msra.mxu0 0.0
    %1766 = vmatprep.subr.mxu0 0.0
    %1767 = vmatpush2.msra.mxu0 0.0
    %1768 = vmatprep.subr.mxu0 0.0
    %1769 = vmatpush2.msra.mxu0 0.0
    %1770 = vmatprep.subr.mxu0 0.0
    %1771 = vmatpush2.msra.mxu0 0.0
    %1772 = vmatprep.subr.mxu0 0.0
    %1773 = vmatpush2.msra.mxu0 0.0
    %1774 = vmatprep.subr.mxu0 0.0
    %1775 = vmatpush2.msra.mxu0 0.0
    %1776 = vmatprep.subr.mxu0 0.0
    %1777 = vmatpush2.msra.mxu0 0.0
    %1778 = vmatprep.subr.mxu0 0.0
    %1779 = vmatpush2.msra.mxu0 0.0
    %1780 = vmatprep.mubr.f32.mxu0 0.0
    %1781 = vmatmul.mubr.f32.gmra.mxu0 %v1714
    %v1782 = vpop.f32.mrf.mxu0
    %v1783 = vadd.f32 %v624, %v1782
    %v1784 = vpop.f32.mrf.mxu0
    %1785 = vdwg.mxu0
    %v1786 = vrot.slane %v285, 7
    %v1788 = vrot.slane %v507, 6
    %v1790 = vsel %vm518, %v1786, %v1788
    %1792 = vrot.lane.b32.xlu0 %v1709, 96
    %v1793 = vpop.permute.xlu0 %1792
    %v1794 = vsel %vm520, %v1793, 0
    %1796 = vmatprep.subr.mxu0 0.0
    %1797 = vmatpush1.msra.mxu0 0.0
    %1798 = vmatprep.subr.mxu0 0.0
    %1799 = vmatpush1.msra.mxu0 0.0
    %1800 = vmatprep.subr.mxu0 0.0
    %1801 = vmatpush1.msra.mxu0 0.0
    %1802 = vmatprep.subr.mxu0 0.0
    %1803 = vmatpush1.msra.mxu0 0.0
    %1804 = vmatprep.subr.mxu0 0.0
    %1805 = vmatpush1.msra.mxu0 0.0
    %1806 = vmatprep.subr.mxu0 0.0
    %1807 = vmatpush1.msra.mxu0 0.0
    %1808 = vmatprep.subr.mxu0 0.0
    %1809 = vmatpush1.msra.mxu0 0.0
    %1810 = vmatprep.subr.mxu0 0.0
    %1811 = vmatpush1.msra.mxu0 0.0
    %1812 = vmatprep.subr.mxu0 0.0
    %1813 = vmatpush1.msra.mxu0 0.0
    %1814 = vmatprep.subr.mxu0 0.0
    %1815 = vmatpush1.msra.mxu0 0.0
    %1816 = vmatprep.subr.mxu0 0.0
    %1817 = vmatpush1.msra.mxu0 0.0
    %1818 = vmatprep.subr.mxu0 0.0
    %1819 = vmatpush1.msra.mxu0 0.0
    %1820 = vmatprep.subr.mxu0 0.0
    %1821 = vmatpush1.msra.mxu0 0.0
    %1822 = vmatprep.subr.mxu0 0.0
    %1823 = vmatpush1.msra.mxu0 0.0
    %1824 = vmatprep.subr.mxu0 0.0
    %1825 = vmatpush1.msra.mxu0 %v44
    %1826 = vmatprep.subr.mxu0 0.0
    %1827 = vmatpush1.msra.mxu0 %v43
    %1828 = vmatprep.subr.mxu0 0.0
    %1829 = vmatpush2.msra.mxu0 0.0
    %1830 = vmatprep.subr.mxu0 0.0
    %1831 = vmatpush2.msra.mxu0 0.0
    %1832 = vmatprep.subr.mxu0 0.0
    %1833 = vmatpush2.msra.mxu0 0.0
    %1834 = vmatprep.subr.mxu0 0.0
    %1835 = vmatpush2.msra.mxu0 0.0
    %1836 = vmatprep.subr.mxu0 0.0
    %1837 = vmatpush2.msra.mxu0 0.0
    %1838 = vmatprep.subr.mxu0 0.0
    %1839 = vmatpush2.msra.mxu0 0.0
    %1840 = vmatprep.subr.mxu0 0.0
    %1841 = vmatpush2.msra.mxu0 0.0
    %1842 = vmatprep.subr.mxu0 0.0
    %1843 = vmatpush2.msra.mxu0 0.0
    %1844 = vmatprep.subr.mxu0 0.0
    %1845 = vmatpush2.msra.mxu0 0.0
    %1846 = vmatprep.subr.mxu0 0.0
    %1847 = vmatpush2.msra.mxu0 0.0
    %1848 = vmatprep.subr.mxu0 0.0
    %1849 = vmatpush2.msra.mxu0 0.0
    %1850 = vmatprep.subr.mxu0 0.0
    %1851 = vmatpush2.msra.mxu0 0.0
    %1852 = vmatprep.subr.mxu0 0.0
    %1853 = vmatpush2.msra.mxu0 0.0
    %1854 = vmatprep.subr.mxu0 0.0
    %1855 = vmatpush2.msra.mxu0 0.0
    %1856 = vmatprep.subr.mxu0 0.0
    %1857 = vmatpush2.msra.mxu0 0.0
    %1858 = vmatprep.subr.mxu0 0.0
    %1859 = vmatpush2.msra.mxu0 0.0
    %1860 = vmatprep.mubr.f32.mxu0 0.0
    %1861 = vmatmul.mubr.f32.gmra.mxu0 %v1794
    %v1862 = vpop.f32.mrf.mxu0
    %v1863 = vadd.f32 0.0, %v1862
    %v1864 = vpop.f32.mrf.mxu0
    %1865 = vdwg.mxu0
    %v1866 = vadd.f32 %v1790, %v1863
    %v1867 = vxor.u32 %v1866, 2147483648
    %v1868 = vmul.f32 %v1867, 1.442695
    %v1869 = vpow.pop %v1868
    %v1870 = vadd.f32 %v1869, 1.0
    %v1871 = vrcp.pop %v1870
    %v1872 = vmul.f32 1.0, %v1871
    %v1873 = vtanh.pop %v1866
    %v1874 = vmul.f32 %v1872, %v1703
    %1876 = vrot.lane.b32.xlu0 %v1873, 80
    %v1877 = vpop.permute.xlu0 %1876
    %v1879 = vmul.f32 %v1872, %v1877
    %1881 = vrot.lane.b32.xlu0 %v1879, 16
    %v1882 = vpop.permute.xlu0 %1881
    %v1884 = vadd.f32 %v1874, %v1882
    %v1885 = vtanh.pop %v1884
    %1887 = vrot.lane.b32.xlu0 %v1885, 16
    %v1888 = vpop.permute.xlu0 %1887
    %v1890 = vmul.f32 %v1872, %v1888
    %v1891 = vmax.f32 %v1890, 0.0
    %1893 = vrot.lane.b32.xlu0 %v1891, 96
    %v1894 = vpop.permute.xlu0 %1893
    %v1895 = vsel %vm520, %v1894, 0
    %1897 = vmatprep.subr.mxu0 0.0
    %1898 = vmatpush1.msra.mxu0 0.0
    %1899 = vmatprep.subr.mxu0 0.0
    %1900 = vmatpush1.msra.mxu0 0.0
    %1901 = vmatprep.subr.mxu0 0.0
    %1902 = vmatpush1.msra.mxu0 0.0
    %1903 = vmatprep.subr.mxu0 0.0
    %1904 = vmatpush1.msra.mxu0 0.0
    %1905 = vmatprep.subr.mxu0 0.0
    %1906 = vmatpush1.msra.mxu0 0.0
    %1907 = vmatprep.subr.mxu0 0.0
    %1908 = vmatpush1.msra.mxu0 0.0
    %1909 = vmatprep.subr.mxu0 0.0
    %1910 = vmatpush1.msra.mxu0 0.0
    %1911 = vmatprep.subr.mxu0 0.0
    %1912 = vmatpush1.msra.mxu0 0.0
    %1913 = vmatprep.subr.mxu0 0.0
    %1914 = vmatpush1.msra.mxu0 0.0
    %1915 = vmatprep.subr.mxu0 0.0
    %1916 = vmatpush1.msra.mxu0 0.0
    %1917 = vmatprep.subr.mxu0 0.0
    %1918 = vmatpush1.msra.mxu0 0.0
    %1919 = vmatprep.subr.mxu0 0.0
    %1920 = vmatpush1.msra.mxu0 0.0
    %1921 = vmatprep.subr.mxu0 0.0
    %1922 = vmatpush1.msra.mxu0 0.0
    %1923 = vmatprep.subr.mxu0 0.0
    %1924 = vmatpush1.msra.mxu0 0.0
    %1925 = vmatprep.subr.mxu0 0.0
    %1926 = vmatpush1.msra.mxu0 %v47
    %1927 = vmatprep.subr.mxu0 0.0
    %1928 = vmatpush1.msra.mxu0 %v46
    %1929 = vmatprep.subr.mxu0 0.0
    %1930 = vmatpush2.msra.mxu0 0.0
    %1931 = vmatprep.subr.mxu0 0.0
    %1932 = vmatpush2.msra.mxu0 0.0
    %1933 = vmatprep.subr.mxu0 0.0
    %1934 = vmatpush2.msra.mxu0 0.0
    %1935 = vmatprep.subr.mxu0 0.0
    %1936 = vmatpush2.msra.mxu0 0.0
    %1937 = vmatprep.subr.mxu0 0.0
    %1938 = vmatpush2.msra.mxu0 0.0
    %1939 = vmatprep.subr.mxu0 0.0
    %1940 = vmatpush2.msra.mxu0 0.0
    %1941 = vmatprep.subr.mxu0 0.0
    %1942 = vmatpush2.msra.mxu0 0.0
    %1943 = vmatprep.subr.mxu0 0.0
    %1944 = vmatpush2.msra.mxu0 0.0
    %1945 = vmatprep.subr.mxu0 0.0
    %1946 = vmatpush2.msra.mxu0 0.0
    %1947 = vmatprep.subr.mxu0 0.0
    %1948 = vmatpush2.msra.mxu0 0.0
    %1949 = vmatprep.subr.mxu0 0.0
    %1950 = vmatpush2.msra.mxu0 0.0
    %1951 = vmatprep.subr.mxu0 0.0
    %1952 = vmatpush2.msra.mxu0 0.0
    %1953 = vmatprep.subr.mxu0 0.0
    %1954 = vmatpush2.msra.mxu0 0.0
    %1955 = vmatprep.subr.mxu0 0.0
    %1956 = vmatpush2.msra.mxu0 0.0
    %1957 = vmatprep.subr.mxu0 0.0
    %1958 = vmatpush2.msra.mxu0 0.0
    %1959 = vmatprep.subr.mxu0 0.0
    %1960 = vmatpush2.msra.mxu0 0.0
    %1961 = vmatprep.mubr.f32.mxu0 0.0
    %1962 = vmatmul.mubr.f32.gmra.mxu0 %v1895
    %v1963 = vpop.f32.mrf.mxu0
    %v1964 = vadd.f32 %v624, %v1963
    %v1965 = vpop.f32.mrf.mxu0
    %1966 = vdwg.mxu0
    %v1968 = vrot.slane %v512, 7
    %v1970 = vsel %vm518, %v290, %v1968
    %1972 = vrot.lane.b32.xlu0 %v1890, 96
    %v1973 = vpop.permute.xlu0 %1972
    %v1974 = vsel %vm520, %v1973, 0
    %1976 = vmatprep.subr.mxu0 0.0
    %1977 = vmatpush1.msra.mxu0 0.0
    %1978 = vmatprep.subr.mxu0 0.0
    %1979 = vmatpush1.msra.mxu0 0.0
    %1980 = vmatprep.subr.mxu0 0.0
    %1981 = vmatpush1.msra.mxu0 0.0
    %1982 = vmatprep.subr.mxu0 0.0
    %1983 = vmatpush1.msra.mxu0 0.0
    %1984 = vmatprep.subr.mxu0 0.0
    %1985 = vmatpush1.msra.mxu0 0.0
    %1986 = vmatprep.subr.mxu0 0.0
    %1987 = vmatpush1.msra.mxu0 0.0
    %1988 = vmatprep.subr.mxu0 0.0
    %1989 = vmatpush1.msra.mxu0 0.0
    %1990 = vmatprep.subr.mxu0 0.0
    %1991 = vmatpush1.msra.mxu0 0.0
    %1992 = vmatprep.subr.mxu0 0.0
    %1993 = vmatpush1.msra.mxu0 0.0
    %1994 = vmatprep.subr.mxu0 0.0
    %1995 = vmatpush1.msra.mxu0 0.0
    %1996 = vmatprep.subr.mxu0 0.0
    %1997 = vmatpush1.msra.mxu0 0.0
    %1998 = vmatprep.subr.mxu0 0.0
    %1999 = vmatpush1.msra.mxu0 0.0
    %2000 = vmatprep.subr.mxu0 0.0
    %2001 = vmatpush1.msra.mxu0 0.0
    %2002 = vmatprep.subr.mxu0 0.0
    %2003 = vmatpush1.msra.mxu0 0.0
    %2004 = vmatprep.subr.mxu0 0.0
    %2005 = vmatpush1.msra.mxu0 %v44
    %2006 = vmatprep.subr.mxu0 0.0
    %2007 = vmatpush1.msra.mxu0 %v43
    %2008 = vmatprep.subr.mxu0 0.0
    %2009 = vmatpush2.msra.mxu0 0.0
    %2010 = vmatprep.subr.mxu0 0.0
    %2011 = vmatpush2.msra.mxu0 0.0
    %2012 = vmatprep.subr.mxu0 0.0
    %2013 = vmatpush2.msra.mxu0 0.0
    %2014 = vmatprep.subr.mxu0 0.0
    %2015 = vmatpush2.msra.mxu0 0.0
    %2016 = vmatprep.subr.mxu0 0.0
    %2017 = vmatpush2.msra.mxu0 0.0
    %2018 = vmatprep.subr.mxu0 0.0
    %2019 = vmatpush2.msra.mxu0 0.0
    %2020 = vmatprep.subr.mxu0 0.0
    %2021 = vmatpush2.msra.mxu0 0.0
    %2022 = vmatprep.subr.mxu0 0.0
    %2023 = vmatpush2.msra.mxu0 0.0
    %2024 = vmatprep.subr.mxu0 0.0
    %2025 = vmatpush2.msra.mxu0 0.0
    %2026 = vmatprep.subr.mxu0 0.0
    %2027 = vmatpush2.msra.mxu0 0.0
    %2028 = vmatprep.subr.mxu0 0.0
    %2029 = vmatpush2.msra.mxu0 0.0
    %2030 = vmatprep.subr.mxu0 0.0
    %2031 = vmatpush2.msra.mxu0 0.0
    %2032 = vmatprep.subr.mxu0 0.0
    %2033 = vmatpush2.msra.mxu0 0.0
    %2034 = vmatprep.subr.mxu0 0.0
    %2035 = vmatpush2.msra.mxu0 0.0
    %2036 = vmatprep.subr.mxu0 0.0
    %2037 = vmatpush2.msra.mxu0 0.0
    %2038 = vmatprep.subr.mxu0 0.0
    %2039 = vmatpush2.msra.mxu0 0.0
    %2040 = vmatprep.mubr.f32.mxu0 0.0
    %2041 = vmatmul.mubr.f32.gmra.mxu0 %v1974
    %v2042 = vpop.f32.mrf.mxu0
    %v2043 = vadd.f32 0.0, %v2042
    %v2044 = vpop.f32.mrf.mxu0
    %2045 = vdwg.mxu0
    %v2046 = vadd.f32 %v1970, %v2043
    %v2047 = vxor.u32 %v2046, 2147483648
    %v2048 = vmul.f32 %v2047, 1.442695
    %v2049 = vpow.pop %v2048
    %v2050 = vadd.f32 %v2049, 1.0
    %v2051 = vrcp.pop %v2050
    %v2052 = vmul.f32 1.0, %v2051
    %v2053 = vtanh.pop %v2046
    %v2054 = vmul.f32 %v2052, %v1884
    %2056 = vrot.lane.b32.xlu0 %v2053, 80
    %v2057 = vpop.permute.xlu0 %2056
    %v2059 = vmul.f32 %v2052, %v2057
    %2061 = vrot.lane.b32.xlu0 %v2059, 16
    %v2062 = vpop.permute.xlu0 %2061
    %v2064 = vadd.f32 %v2054, %v2062
    %v2065 = vtanh.pop %v2064
    %2067 = vrot.lane.b32.xlu0 %v2065, 16
    %v2068 = vpop.permute.xlu0 %2067
    %v2070 = vmul.f32 %v2052, %v2068
    %v2071 = vmax.f32 %v2070, 0.0
    %2073 = vrot.lane.b32.xlu0 %v2071, 96
    %v2074 = vpop.permute.xlu0 %2073
    %v2075 = vsel %vm520, %v2074, 0
    %2077 = vmatprep.subr.mxu0 0.0
    %2078 = vmatpush1.msra.mxu0 0.0
    %2079 = vmatprep.subr.mxu0 0.0
    %2080 = vmatpush1.msra.mxu0 0.0
    %2081 = vmatprep.subr.mxu0 0.0
    %2082 = vmatpush1.msra.mxu0 0.0
    %2083 = vmatprep.subr.mxu0 0.0
    %2084 = vmatpush1.msra.mxu0 0.0
    %2085 = vmatprep.subr.mxu0 0.0
    %2086 = vmatpush1.msra.mxu0 0.0
    %2087 = vmatprep.subr.mxu0 0.0
    %2088 = vmatpush1.msra.mxu0 0.0
    %2089 = vmatprep.subr.mxu0 0.0
    %2090 = vmatpush1.msra.mxu0 0.0
    %2091 = vmatprep.subr.mxu0 0.0
    %2092 = vmatpush1.msra.mxu0 0.0
    %2093 = vmatprep.subr.mxu0 0.0
    %2094 = vmatpush1.msra.mxu0 0.0
    %2095 = vmatprep.subr.mxu0 0.0
    %2096 = vmatpush1.msra.mxu0 0.0
    %2097 = vmatprep.subr.mxu0 0.0
    %2098 = vmatpush1.msra.mxu0 0.0
    %2099 = vmatprep.subr.mxu0 0.0
    %2100 = vmatpush1.msra.mxu0 0.0
    %2101 = vmatprep.subr.mxu0 0.0
    %2102 = vmatpush1.msra.mxu0 0.0
    %2103 = vmatprep.subr.mxu0 0.0
    %2104 = vmatpush1.msra.mxu0 0.0
    %2105 = vmatprep.subr.mxu0 0.0
    %2106 = vmatpush1.msra.mxu0 %v47
    %2107 = vmatprep.subr.mxu0 0.0
    %2108 = vmatpush1.msra.mxu0 %v46
    %2109 = vmatprep.subr.mxu0 0.0
    %2110 = vmatpush2.msra.mxu0 0.0
    %2111 = vmatprep.subr.mxu0 0.0
    %2112 = vmatpush2.msra.mxu0 0.0
    %2113 = vmatprep.subr.mxu0 0.0
    %2114 = vmatpush2.msra.mxu0 0.0
    %2115 = vmatprep.subr.mxu0 0.0
    %2116 = vmatpush2.msra.mxu0 0.0
    %2117 = vmatprep.subr.mxu0 0.0
    %2118 = vmatpush2.msra.mxu0 0.0
    %2119 = vmatprep.subr.mxu0 0.0
    %2120 = vmatpush2.msra.mxu0 0.0
    %2121 = vmatprep.subr.mxu0 0.0
    %2122 = vmatpush2.msra.mxu0 0.0
    %2123 = vmatprep.subr.mxu0 0.0
    %2124 = vmatpush2.msra.mxu0 0.0
    %2125 = vmatprep.subr.mxu0 0.0
    %2126 = vmatpush2.msra.mxu0 0.0
    %2127 = vmatprep.subr.mxu0 0.0
    %2128 = vmatpush2.msra.mxu0 0.0
    %2129 = vmatprep.subr.mxu0 0.0
    %2130 = vmatpush2.msra.mxu0 0.0
    %2131 = vmatprep.subr.mxu0 0.0
    %2132 = vmatpush2.msra.mxu0 0.0
    %2133 = vmatprep.subr.mxu0 0.0
    %2134 = vmatpush2.msra.mxu0 0.0
    %2135 = vmatprep.subr.mxu0 0.0
    %2136 = vmatpush2.msra.mxu0 0.0
    %2137 = vmatprep.subr.mxu0 0.0
    %2138 = vmatpush2.msra.mxu0 0.0
    %2139 = vmatprep.subr.mxu0 0.0
    %2140 = vmatpush2.msra.mxu0 0.0
    %2141 = vmatprep.mubr.f32.mxu0 0.0
    %2142 = vmatmul.mubr.f32.gmra.mxu0 %v2075
    %v2143 = vpop.f32.mrf.mxu0
    %v2144 = vadd.f32 %v624, %v2143
    %v2145 = vpop.f32.mrf.mxu0
    %2146 = vdwg.mxu0
    %v2148 = vrot.slane %v290, 1
    %v2150 = vsel %vm518, %v2148, %v512
    %2152 = vrot.lane.b32.xlu0 %v2070, 96
    %v2153 = vpop.permute.xlu0 %2152
    %v2154 = vsel %vm520, %v2153, 0
    %2156 = vmatprep.subr.mxu0 0.0
    %2157 = vmatpush1.msra.mxu0 0.0
    %2158 = vmatprep.subr.mxu0 0.0
    %2159 = vmatpush1.msra.mxu0 0.0
    %2160 = vmatprep.subr.mxu0 0.0
    %2161 = vmatpush1.msra.mxu0 0.0
    %2162 = vmatprep.subr.mxu0 0.0
    %2163 = vmatpush1.msra.mxu0 0.0
    %2164 = vmatprep.subr.mxu0 0.0
    %2165 = vmatpush1.msra.mxu0 0.0
    %2166 = vmatprep.subr.mxu0 0.0
    %2167 = vmatpush1.msra.mxu0 0.0
    %2168 = vmatprep.subr.mxu0 0.0
    %2169 = vmatpush1.msra.mxu0 0.0
    %2170 = vmatprep.subr.mxu0 0.0
    %2171 = vmatpush1.msra.mxu0 0.0
    %2172 = vmatprep.subr.mxu0 0.0
    %2173 = vmatpush1.msra.mxu0 0.0
    %2174 = vmatprep.subr.mxu0 0.0
    %2175 = vmatpush1.msra.mxu0 0.0
    %2176 = vmatprep.subr.mxu0 0.0
    %2177 = vmatpush1.msra.mxu0 0.0
    %2178 = vmatprep.subr.mxu0 0.0
    %2179 = vmatpush1.msra.mxu0 0.0
    %2180 = vmatprep.subr.mxu0 0.0
    %2181 = vmatpush1.msra.mxu0 0.0
    %2182 = vmatprep.subr.mxu0 0.0
    %2183 = vmatpush1.msra.mxu0 0.0
    %2184 = vmatprep.subr.mxu0 0.0
    %2185 = vmatpush1.msra.mxu0 %v44
    %2186 = vmatprep.subr.mxu0 0.0
    %2187 = vmatpush1.msra.mxu0 %v43
    %2188 = vmatprep.subr.mxu0 0.0
    %2189 = vmatpush2.msra.mxu0 0.0
    %2190 = vmatprep.subr.mxu0 0.0
    %2191 = vmatpush2.msra.mxu0 0.0
    %2192 = vmatprep.subr.mxu0 0.0
    %2193 = vmatpush2.msra.mxu0 0.0
    %2194 = vmatprep.subr.mxu0 0.0
    %2195 = vmatpush2.msra.mxu0 0.0
    %2196 = vmatprep.subr.mxu0 0.0
    %2197 = vmatpush2.msra.mxu0 0.0
    %2198 = vmatprep.subr.mxu0 0.0
    %2199 = vmatpush2.msra.mxu0 0.0
    %2200 = vmatprep.subr.mxu0 0.0
    %2201 = vmatpush2.msra.mxu0 0.0
    %2202 = vmatprep.subr.mxu0 0.0
    %2203 = vmatpush2.msra.mxu0 0.0
    %2204 = vmatprep.subr.mxu0 0.0
    %2205 = vmatpush2.msra.mxu0 0.0
    %2206 = vmatprep.subr.mxu0 0.0
    %2207 = vmatpush2.msra.mxu0 0.0
    %2208 = vmatprep.subr.mxu0 0.0
    %2209 = vmatpush2.msra.mxu0 0.0
    %2210 = vmatprep.subr.mxu0 0.0
    %2211 = vmatpush2.msra.mxu0 0.0
    %2212 = vmatprep.subr.mxu0 0.0
    %2213 = vmatpush2.msra.mxu0 0.0
    %2214 = vmatprep.subr.mxu0 0.0
    %2215 = vmatpush2.msra.mxu0 0.0
    %2216 = vmatprep.subr.mxu0 0.0
    %2217 = vmatpush2.msra.mxu0 0.0
    %2218 = vmatprep.subr.mxu0 0.0
    %2219 = vmatpush2.msra.mxu0 0.0
    %2220 = vmatprep.mubr.f32.mxu0 0.0
    %2221 = vmatmul.mubr.f32.gmra.mxu0 %v2154
    %v2222 = vpop.f32.mrf.mxu0
    %v2223 = vadd.f32 0.0, %v2222
    %v2224 = vpop.f32.mrf.mxu0
    %2225 = vdwg.mxu0
    %v2226 = vadd.f32 %v2150, %v2223
    %v2227 = vxor.u32 %v2226, 2147483648
    %v2228 = vmul.f32 %v2227, 1.442695
    %v2229 = vpow.pop %v2228
    %v2230 = vadd.f32 %v2229, 1.0
    %v2231 = vrcp.pop %v2230
    %v2232 = vmul.f32 1.0, %v2231
    %v2233 = vtanh.pop %v2226
    %v2234 = vmul.f32 %v2232, %v2064
    %2236 = vrot.lane.b32.xlu0 %v2233, 80
    %v2237 = vpop.permute.xlu0 %2236
    %v2239 = vmul.f32 %v2232, %v2237
    %2241 = vrot.lane.b32.xlu0 %v2239, 16
    %v2242 = vpop.permute.xlu0 %2241
    %v2244 = vadd.f32 %v2234, %v2242
    %v2245 = vtanh.pop %v2244
    %2247 = vrot.lane.b32.xlu0 %v2245, 16
    %v2248 = vpop.permute.xlu0 %2247
    %v2250 = vmul.f32 %v2232, %v2248
    %v2251 = vmax.f32 %v2250, 0.0
    %2253 = vrot.lane.b32.xlu0 %v2251, 96
    %v2254 = vpop.permute.xlu0 %2253
    %v2255 = vsel %vm520, %v2254, 0
    %2257 = vmatprep.subr.mxu0 0.0
    %2258 = vmatpush1.msra.mxu0 0.0
    %2259 = vmatprep.subr.mxu0 0.0
    %2260 = vmatpush1.msra.mxu0 0.0
    %2261 = vmatprep.subr.mxu0 0.0
    %2262 = vmatpush1.msra.mxu0 0.0
    %2263 = vmatprep.subr.mxu0 0.0
    %2264 = vmatpush1.msra.mxu0 0.0
    %2265 = vmatprep.subr.mxu0 0.0
    %2266 = vmatpush1.msra.mxu0 0.0
    %2267 = vmatprep.subr.mxu0 0.0
    %2268 = vmatpush1.msra.mxu0 0.0
    %2269 = vmatprep.subr.mxu0 0.0
    %2270 = vmatpush1.msra.mxu0 0.0
    %2271 = vmatprep.subr.mxu0 0.0
    %2272 = vmatpush1.msra.mxu0 0.0
    %2273 = vmatprep.subr.mxu0 0.0
    %2274 = vmatpush1.msra.mxu0 0.0
    %2275 = vmatprep.subr.mxu0 0.0
    %2276 = vmatpush1.msra.mxu0 0.0
    %2277 = vmatprep.subr.mxu0 0.0
    %2278 = vmatpush1.msra.mxu0 0.0
    %2279 = vmatprep.subr.mxu0 0.0
    %2280 = vmatpush1.msra.mxu0 0.0
    %2281 = vmatprep.subr.mxu0 0.0
    %2282 = vmatpush1.msra.mxu0 0.0
    %2283 = vmatprep.subr.mxu0 0.0
    %2284 = vmatpush1.msra.mxu0 0.0
    %2285 = vmatprep.subr.mxu0 0.0
    %2286 = vmatpush1.msra.mxu0 %v47
    %2287 = vmatprep.subr.mxu0 0.0
    %2288 = vmatpush1.msra.mxu0 %v46
    %2289 = vmatprep.subr.mxu0 0.0
    %2290 = vmatpush2.msra.mxu0 0.0
    %2291 = vmatprep.subr.mxu0 0.0
    %2292 = vmatpush2.msra.mxu0 0.0
    %2293 = vmatprep.subr.mxu0 0.0
    %2294 = vmatpush2.msra.mxu0 0.0
    %2295 = vmatprep.subr.mxu0 0.0
    %2296 = vmatpush2.msra.mxu0 0.0
    %2297 = vmatprep.subr.mxu0 0.0
    %2298 = vmatpush2.msra.mxu0 0.0
    %2299 = vmatprep.subr.mxu0 0.0
    %2300 = vmatpush2.msra.mxu0 0.0
    %2301 = vmatprep.subr.mxu0 0.0
    %2302 = vmatpush2.msra.mxu0 0.0
    %2303 = vmatprep.subr.mxu0 0.0
    %2304 = vmatpush2.msra.mxu0 0.0
    %2305 = vmatprep.subr.mxu0 0.0
    %2306 = vmatpush2.msra.mxu0 0.0
    %2307 = vmatprep.subr.mxu0 0.0
    %2308 = vmatpush2.msra.mxu0 0.0
    %2309 = vmatprep.subr.mxu0 0.0
    %2310 = vmatpush2.msra.mxu0 0.0
    %2311 = vmatprep.subr.mxu0 0.0
    %2312 = vmatpush2.msra.mxu0 0.0
    %2313 = vmatprep.subr.mxu0 0.0
    %2314 = vmatpush2.msra.mxu0 0.0
    %2315 = vmatprep.subr.mxu0 0.0
    %2316 = vmatpush2.msra.mxu0 0.0
    %2317 = vmatprep.subr.mxu0 0.0
    %2318 = vmatpush2.msra.mxu0 0.0
    %2319 = vmatprep.subr.mxu0 0.0
    %2320 = vmatpush2.msra.mxu0 0.0
    %2321 = vmatprep.mubr.f32.mxu0 0.0
    %2322 = vmatmul.mubr.f32.gmra.mxu0 %v2255
    %v2323 = vpop.f32.mrf.mxu0
    %v2324 = vadd.f32 %v624, %v2323
    %v2325 = vpop.f32.mrf.mxu0
    %2326 = vdwg.mxu0
    %v2327 = vrot.slane %v290, 2
    %v2329 = vrot.slane %v512, 1
    %v2331 = vsel %vm518, %v2327, %v2329
    %2333 = vrot.lane.b32.xlu0 %v2250, 96
    %v2334 = vpop.permute.xlu0 %2333
    %v2335 = vsel %vm520, %v2334, 0
    %2337 = vmatprep.subr.mxu0 0.0
    %2338 = vmatpush1.msra.mxu0 0.0
    %2339 = vmatprep.subr.mxu0 0.0
    %2340 = vmatpush1.msra.mxu0 0.0
    %2341 = vmatprep.subr.mxu0 0.0
    %2342 = vmatpush1.msra.mxu0 0.0
    %2343 = vmatprep.subr.mxu0 0.0
    %2344 = vmatpush1.msra.mxu0 0.0
    %2345 = vmatprep.subr.mxu0 0.0
    %2346 = vmatpush1.msra.mxu0 0.0
    %2347 = vmatprep.subr.mxu0 0.0
    %2348 = vmatpush1.msra.mxu0 0.0
    %2349 = vmatprep.subr.mxu0 0.0
    %2350 = vmatpush1.msra.mxu0 0.0
    %2351 = vmatprep.subr.mxu0 0.0
    %2352 = vmatpush1.msra.mxu0 0.0
    %2353 = vmatprep.subr.mxu0 0.0
    %2354 = vmatpush1.msra.mxu0 0.0
    %2355 = vmatprep.subr.mxu0 0.0
    %2356 = vmatpush1.msra.mxu0 0.0
    %2357 = vmatprep.subr.mxu0 0.0
    %2358 = vmatpush1.msra.mxu0 0.0
    %2359 = vmatprep.subr.mxu0 0.0
    %2360 = vmatpush1.msra.mxu0 0.0
    %2361 = vmatprep.subr.mxu0 0.0
    %2362 = vmatpush1.msra.mxu0 0.0
    %2363 = vmatprep.subr.mxu0 0.0
    %2364 = vmatpush1.msra.mxu0 0.0
    %2365 = vmatprep.subr.mxu0 0.0
    %2366 = vmatpush1.msra.mxu0 %v44
    %2367 = vmatprep.subr.mxu0 0.0
    %2368 = vmatpush1.msra.mxu0 %v43
    %2369 = vmatprep.subr.mxu0 0.0
    %2370 = vmatpush2.msra.mxu0 0.0
    %2371 = vmatprep.subr.mxu0 0.0
    %2372 = vmatpush2.msra.mxu0 0.0
    %2373 = vmatprep.subr.mxu0 0.0
    %2374 = vmatpush2.msra.mxu0 0.0
    %2375 = vmatprep.subr.mxu0 0.0
    %2376 = vmatpush2.msra.mxu0 0.0
    %2377 = vmatprep.subr.mxu0 0.0
    %2378 = vmatpush2.msra.mxu0 0.0
    %2379 = vmatprep.subr.mxu0 0.0
    %2380 = vmatpush2.msra.mxu0 0.0
    %2381 = vmatprep.subr.mxu0 0.0
    %2382 = vmatpush2.msra.mxu0 0.0
    %2383 = vmatprep.subr.mxu0 0.0
    %2384 = vmatpush2.msra.mxu0 0.0
    %2385 = vmatprep.subr.mxu0 0.0
    %2386 = vmatpush2.msra.mxu0 0.0
    %2387 = vmatprep.subr.mxu0 0.0
    %2388 = vmatpush2.msra.mxu0 0.0
    %2389 = vmatprep.subr.mxu0 0.0
    %2390 = vmatpush2.msra.mxu0 0.0
    %2391 = vmatprep.subr.mxu0 0.0
    %2392 = vmatpush2.msra.mxu0 0.0
    %2393 = vmatprep.subr.mxu0 0.0
    %2394 = vmatpush2.msra.mxu0 0.0
    %2395 = vmatprep.subr.mxu0 0.0
    %2396 = vmatpush2.msra.mxu0 0.0
    %2397 = vmatprep.subr.mxu0 0.0
    %2398 = vmatpush2.msra.mxu0 0.0
    %2399 = vmatprep.subr.mxu0 0.0
    %2400 = vmatpush2.msra.mxu0 0.0
    %2401 = vmatprep.mubr.f32.mxu0 0.0
    %2402 = vmatmul.mubr.f32.gmra.mxu0 %v2335
    %v2403 = vpop.f32.mrf.mxu0
    %v2404 = vadd.f32 0.0, %v2403
    %v2405 = vpop.f32.mrf.mxu0
    %2406 = vdwg.mxu0
    %v2407 = vadd.f32 %v2331, %v2404
    %v2408 = vxor.u32 %v2407, 2147483648
    %v2409 = vmul.f32 %v2408, 1.442695
    %v2410 = vpow.pop %v2409
    %v2411 = vadd.f32 %v2410, 1.0
    %v2412 = vrcp.pop %v2411
    %v2413 = vmul.f32 1.0, %v2412
    %v2414 = vtanh.pop %v2407
    %v2415 = vmul.f32 %v2413, %v2244
    %2417 = vrot.lane.b32.xlu0 %v2414, 80
    %v2418 = vpop.permute.xlu0 %2417
    %v2420 = vmul.f32 %v2413, %v2418
    %2422 = vrot.lane.b32.xlu0 %v2420, 16
    %v2423 = vpop.permute.xlu0 %2422
    %v2425 = vadd.f32 %v2415, %v2423
    %v2426 = vtanh.pop %v2425
    %2428 = vrot.lane.b32.xlu0 %v2426, 16
    %v2429 = vpop.permute.xlu0 %2428
    %v2431 = vmul.f32 %v2413, %v2429
    %v2432 = vmax.f32 %v2431, 0.0
    %2434 = vrot.lane.b32.xlu0 %v2432, 96
    %v2435 = vpop.permute.xlu0 %2434
    %v2436 = vsel %vm520, %v2435, 0
    %2438 = vmatprep.subr.mxu0 0.0
    %2439 = vmatpush1.msra.mxu0 0.0
    %2440 = vmatprep.subr.mxu0 0.0
    %2441 = vmatpush1.msra.mxu0 0.0
    %2442 = vmatprep.subr.mxu0 0.0
    %2443 = vmatpush1.msra.mxu0 0.0
    %2444 = vmatprep.subr.mxu0 0.0
    %2445 = vmatpush1.msra.mxu0 0.0
    %2446 = vmatprep.subr.mxu0 0.0
    %2447 = vmatpush1.msra.mxu0 0.0
    %2448 = vmatprep.subr.mxu0 0.0
    %2449 = vmatpush1.msra.mxu0 0.0
    %2450 = vmatprep.subr.mxu0 0.0
    %2451 = vmatpush1.msra.mxu0 0.0
    %2452 = vmatprep.subr.mxu0 0.0
    %2453 = vmatpush1.msra.mxu0 0.0
    %2454 = vmatprep.subr.mxu0 0.0
    %2455 = vmatpush1.msra.mxu0 0.0
    %2456 = vmatprep.subr.mxu0 0.0
    %2457 = vmatpush1.msra.mxu0 0.0
    %2458 = vmatprep.subr.mxu0 0.0
    %2459 = vmatpush1.msra.mxu0 0.0
    %2460 = vmatprep.subr.mxu0 0.0
    %2461 = vmatpush1.msra.mxu0 0.0
    %2462 = vmatprep.subr.mxu0 0.0
    %2463 = vmatpush1.msra.mxu0 0.0
    %2464 = vmatprep.subr.mxu0 0.0
    %2465 = vmatpush1.msra.mxu0 0.0
    %2466 = vmatprep.subr.mxu0 0.0
    %2467 = vmatpush1.msra.mxu0 %v47
    %2468 = vmatprep.subr.mxu0 0.0
    %2469 = vmatpush1.msra.mxu0 %v46
    %2470 = vmatprep.subr.mxu0 0.0
    %2471 = vmatpush2.msra.mxu0 0.0
    %2472 = vmatprep.subr.mxu0 0.0
    %2473 = vmatpush2.msra.mxu0 0.0
    %2474 = vmatprep.subr.mxu0 0.0
    %2475 = vmatpush2.msra.mxu0 0.0
    %2476 = vmatprep.subr.mxu0 0.0
    %2477 = vmatpush2.msra.mxu0 0.0
    %2478 = vmatprep.subr.mxu0 0.0
    %2479 = vmatpush2.msra.mxu0 0.0
    %2480 = vmatprep.subr.mxu0 0.0
    %2481 = vmatpush2.msra.mxu0 0.0
    %2482 = vmatprep.subr.mxu0 0.0
    %2483 = vmatpush2.msra.mxu0 0.0
    %2484 = vmatprep.subr.mxu0 0.0
    %2485 = vmatpush2.msra.mxu0 0.0
    %2486 = vmatprep.subr.mxu0 0.0
    %2487 = vmatpush2.msra.mxu0 0.0
    %2488 = vmatprep.subr.mxu0 0.0
    %2489 = vmatpush2.msra.mxu0 0.0
    %2490 = vmatprep.subr.mxu0 0.0
    %2491 = vmatpush2.msra.mxu0 0.0
    %2492 = vmatprep.subr.mxu0 0.0
    %2493 = vmatpush2.msra.mxu0 0.0
    %2494 = vmatprep.subr.mxu0 0.0
    %2495 = vmatpush2.msra.mxu0 0.0
    %2496 = vmatprep.subr.mxu0 0.0
    %2497 = vmatpush2.msra.mxu0 0.0
    %2498 = vmatprep.subr.mxu0 0.0
    %2499 = vmatpush2.msra.mxu0 0.0
    %2500 = vmatprep.subr.mxu0 0.0
    %2501 = vmatpush2.msra.mxu0 0.0
    %2502 = vmatprep.mubr.f32.mxu0 0.0
    %2503 = vmatmul.mubr.f32.gmra.mxu0 %v2436
    %v2504 = vpop.f32.mrf.mxu0
    %v2505 = vadd.f32 %v624, %v2504
    %v2506 = vpop.f32.mrf.mxu0
    %2507 = vdwg.mxu0
    %v2508 = vrot.slane %v290, 3
    %v2510 = vrot.slane %v512, 2
    %v2512 = vsel %vm518, %v2508, %v2510
    %2514 = vrot.lane.b32.xlu0 %v2431, 96
    %v2515 = vpop.permute.xlu0 %2514
    %v2516 = vsel %vm520, %v2515, 0
    %2518 = vmatprep.subr.mxu0 0.0
    %2519 = vmatpush1.msra.mxu0 0.0
    %2520 = vmatprep.subr.mxu0 0.0
    %2521 = vmatpush1.msra.mxu0 0.0
    %2522 = vmatprep.subr.mxu0 0.0
    %2523 = vmatpush1.msra.mxu0 0.0
    %2524 = vmatprep.subr.mxu0 0.0
    %2525 = vmatpush1.msra.mxu0 0.0
    %2526 = vmatprep.subr.mxu0 0.0
    %2527 = vmatpush1.msra.mxu0 0.0
    %2528 = vmatprep.subr.mxu0 0.0
    %2529 = vmatpush1.msra.mxu0 0.0
    %2530 = vmatprep.subr.mxu0 0.0
    %2531 = vmatpush1.msra.mxu0 0.0
    %2532 = vmatprep.subr.mxu0 0.0
    %2533 = vmatpush1.msra.mxu0 0.0
    %2534 = vmatprep.subr.mxu0 0.0
    %2535 = vmatpush1.msra.mxu0 0.0
    %2536 = vmatprep.subr.mxu0 0.0
    %2537 = vmatpush1.msra.mxu0 0.0
    %2538 = vmatprep.subr.mxu0 0.0
    %2539 = vmatpush1.msra.mxu0 0.0
    %2540 = vmatprep.subr.mxu0 0.0
    %2541 = vmatpush1.msra.mxu0 0.0
    %2542 = vmatprep.subr.mxu0 0.0
    %2543 = vmatpush1.msra.mxu0 0.0
    %2544 = vmatprep.subr.mxu0 0.0
    %2545 = vmatpush1.msra.mxu0 0.0
    %2546 = vmatprep.subr.mxu0 0.0
    %2547 = vmatpush1.msra.mxu0 %v44
    %2548 = vmatprep.subr.mxu0 0.0
    %2549 = vmatpush1.msra.mxu0 %v43
    %2550 = vmatprep.subr.mxu0 0.0
    %2551 = vmatpush2.msra.mxu0 0.0
    %2552 = vmatprep.subr.mxu0 0.0
    %2553 = vmatpush2.msra.mxu0 0.0
    %2554 = vmatprep.subr.mxu0 0.0
    %2555 = vmatpush2.msra.mxu0 0.0
    %2556 = vmatprep.subr.mxu0 0.0
    %2557 = vmatpush2.msra.mxu0 0.0
    %2558 = vmatprep.subr.mxu0 0.0
    %2559 = vmatpush2.msra.mxu0 0.0
    %2560 = vmatprep.subr.mxu0 0.0
    %2561 = vmatpush2.msra.mxu0 0.0
    %2562 = vmatprep.subr.mxu0 0.0
    %2563 = vmatpush2.msra.mxu0 0.0
    %2564 = vmatprep.subr.mxu0 0.0
    %2565 = vmatpush2.msra.mxu0 0.0
    %2566 = vmatprep.subr.mxu0 0.0
    %2567 = vmatpush2.msra.mxu0 0.0
    %2568 = vmatprep.subr.mxu0 0.0
    %2569 = vmatpush2.msra.mxu0 0.0
    %2570 = vmatprep.subr.mxu0 0.0
    %2571 = vmatpush2.msra.mxu0 0.0
    %2572 = vmatprep.subr.mxu0 0.0
    %2573 = vmatpush2.msra.mxu0 0.0
    %2574 = vmatprep.subr.mxu0 0.0
    %2575 = vmatpush2.msra.mxu0 0.0
    %2576 = vmatprep.subr.mxu0 0.0
    %2577 = vmatpush2.msra.mxu0 0.0
    %2578 = vmatprep.subr.mxu0 0.0
    %2579 = vmatpush2.msra.mxu0 0.0
    %2580 = vmatprep.subr.mxu0 0.0
    %2581 = vmatpush2.msra.mxu0 0.0
    %2582 = vmatprep.mubr.f32.mxu0 0.0
    %2583 = vmatmul.mubr.f32.gmra.mxu0 %v2516
    %v2584 = vpop.f32.mrf.mxu0
    %v2585 = vadd.f32 0.0, %v2584
    %v2586 = vpop.f32.mrf.mxu0
    %2587 = vdwg.mxu0
    %v2588 = vadd.f32 %v2512, %v2585
    %v2589 = vxor.u32 %v2588, 2147483648
    %v2590 = vmul.f32 %v2589, 1.442695
    %v2591 = vpow.pop %v2590
    %v2592 = vadd.f32 %v2591, 1.0
    %v2593 = vrcp.pop %v2592
    %v2594 = vmul.f32 1.0, %v2593
    %v2595 = vtanh.pop %v2588
    %v2596 = vmul.f32 %v2594, %v2425
    %2598 = vrot.lane.b32.xlu0 %v2595, 80
    %v2599 = vpop.permute.xlu0 %2598
    %v2601 = vmul.f32 %v2594, %v2599
    %2603 = vrot.lane.b32.xlu0 %v2601, 16
    %v2604 = vpop.permute.xlu0 %2603
    %v2606 = vadd.f32 %v2596, %v2604
    %v2607 = vtanh.pop %v2606
    %2609 = vrot.lane.b32.xlu0 %v2607, 16
    %v2610 = vpop.permute.xlu0 %2609
    %v2612 = vmul.f32 %v2594, %v2610
    %v2613 = vmax.f32 %v2612, 0.0
    %2615 = vrot.lane.b32.xlu0 %v2613, 96
    %v2616 = vpop.permute.xlu0 %2615
    %v2617 = vsel %vm520, %v2616, 0
    %2619 = vmatprep.subr.mxu0 0.0
    %2620 = vmatpush1.msra.mxu0 0.0
    %2621 = vmatprep.subr.mxu0 0.0
    %2622 = vmatpush1.msra.mxu0 0.0
    %2623 = vmatprep.subr.mxu0 0.0
    %2624 = vmatpush1.msra.mxu0 0.0
    %2625 = vmatprep.subr.mxu0 0.0
    %2626 = vmatpush1.msra.mxu0 0.0
    %2627 = vmatprep.subr.mxu0 0.0
    %2628 = vmatpush1.msra.mxu0 0.0
    %2629 = vmatprep.subr.mxu0 0.0
    %2630 = vmatpush1.msra.mxu0 0.0
    %2631 = vmatprep.subr.mxu0 0.0
    %2632 = vmatpush1.msra.mxu0 0.0
    %2633 = vmatprep.subr.mxu0 0.0
    %2634 = vmatpush1.msra.mxu0 0.0
    %2635 = vmatprep.subr.mxu0 0.0
    %2636 = vmatpush1.msra.mxu0 0.0
    %2637 = vmatprep.subr.mxu0 0.0
    %2638 = vmatpush1.msra.mxu0 0.0
    %2639 = vmatprep.subr.mxu0 0.0
    %2640 = vmatpush1.msra.mxu0 0.0
    %2641 = vmatprep.subr.mxu0 0.0
    %2642 = vmatpush1.msra.mxu0 0.0
    %2643 = vmatprep.subr.mxu0 0.0
    %2644 = vmatpush1.msra.mxu0 0.0
    %2645 = vmatprep.subr.mxu0 0.0
    %2646 = vmatpush1.msra.mxu0 0.0
    %2647 = vmatprep.subr.mxu0 0.0
    %2648 = vmatpush1.msra.mxu0 %v47
    %2649 = vmatprep.subr.mxu0 0.0
    %2650 = vmatpush1.msra.mxu0 %v46
    %2651 = vmatprep.subr.mxu0 0.0
    %2652 = vmatpush2.msra.mxu0 0.0
    %2653 = vmatprep.subr.mxu0 0.0
    %2654 = vmatpush2.msra.mxu0 0.0
    %2655 = vmatprep.subr.mxu0 0.0
    %2656 = vmatpush2.msra.mxu0 0.0
    %2657 = vmatprep.subr.mxu0 0.0
    %2658 = vmatpush2.msra.mxu0 0.0
    %2659 = vmatprep.subr.mxu0 0.0
    %2660 = vmatpush2.msra.mxu0 0.0
    %2661 = vmatprep.subr.mxu0 0.0
    %2662 = vmatpush2.msra.mxu0 0.0
    %2663 = vmatprep.subr.mxu0 0.0
    %2664 = vmatpush2.msra.mxu0 0.0
    %2665 = vmatprep.subr.mxu0 0.0
    %2666 = vmatpush2.msra.mxu0 0.0
    %2667 = vmatprep.subr.mxu0 0.0
    %2668 = vmatpush2.msra.mxu0 0.0
    %2669 = vmatprep.subr.mxu0 0.0
    %2670 = vmatpush2.msra.mxu0 0.0
    %2671 = vmatprep.subr.mxu0 0.0
    %2672 = vmatpush2.msra.mxu0 0.0
    %2673 = vmatprep.subr.mxu0 0.0
    %2674 = vmatpush2.msra.mxu0 0.0
    %2675 = vmatprep.subr.mxu0 0.0
    %2676 = vmatpush2.msra.mxu0 0.0
    %2677 = vmatprep.subr.mxu0 0.0
    %2678 = vmatpush2.msra.mxu0 0.0
    %2679 = vmatprep.subr.mxu0 0.0
    %2680 = vmatpush2.msra.mxu0 0.0
    %2681 = vmatprep.subr.mxu0 0.0
    %2682 = vmatpush2.msra.mxu0 0.0
    %2683 = vmatprep.mubr.f32.mxu0 0.0
    %2684 = vmatmul.mubr.f32.gmra.mxu0 %v2617
    %v2685 = vpop.f32.mrf.mxu0
    %v2686 = vadd.f32 %v624, %v2685
    %v2687 = vpop.f32.mrf.mxu0
    %2688 = vdwg.mxu0
    %v2689 = vrot.slane %v290, 4
    %v2691 = vrot.slane %v512, 3
    %v2693 = vsel %vm518, %v2689, %v2691
    %2695 = vrot.lane.b32.xlu0 %v2612, 96
    %v2696 = vpop.permute.xlu0 %2695
    %v2697 = vsel %vm520, %v2696, 0
    %2699 = vmatprep.subr.mxu0 0.0
    %2700 = vmatpush1.msra.mxu0 0.0
    %2701 = vmatprep.subr.mxu0 0.0
    %2702 = vmatpush1.msra.mxu0 0.0
    %2703 = vmatprep.subr.mxu0 0.0
    %2704 = vmatpush1.msra.mxu0 0.0
    %2705 = vmatprep.subr.mxu0 0.0
    %2706 = vmatpush1.msra.mxu0 0.0
    %2707 = vmatprep.subr.mxu0 0.0
    %2708 = vmatpush1.msra.mxu0 0.0
    %2709 = vmatprep.subr.mxu0 0.0
    %2710 = vmatpush1.msra.mxu0 0.0
    %2711 = vmatprep.subr.mxu0 0.0
    %2712 = vmatpush1.msra.mxu0 0.0
    %2713 = vmatprep.subr.mxu0 0.0
    %2714 = vmatpush1.msra.mxu0 0.0
    %2715 = vmatprep.subr.mxu0 0.0
    %2716 = vmatpush1.msra.mxu0 0.0
    %2717 = vmatprep.subr.mxu0 0.0
    %2718 = vmatpush1.msra.mxu0 0.0
    %2719 = vmatprep.subr.mxu0 0.0
    %2720 = vmatpush1.msra.mxu0 0.0
    %2721 = vmatprep.subr.mxu0 0.0
    %2722 = vmatpush1.msra.mxu0 0.0
    %2723 = vmatprep.subr.mxu0 0.0
    %2724 = vmatpush1.msra.mxu0 0.0
    %2725 = vmatprep.subr.mxu0 0.0
    %2726 = vmatpush1.msra.mxu0 0.0
    %2727 = vmatprep.subr.mxu0 0.0
    %2728 = vmatpush1.msra.mxu0 %v44
    %2729 = vmatprep.subr.mxu0 0.0
    %2730 = vmatpush1.msra.mxu0 %v43
    %2731 = vmatprep.subr.mxu0 0.0
    %2732 = vmatpush2.msra.mxu0 0.0
    %2733 = vmatprep.subr.mxu0 0.0
    %2734 = vmatpush2.msra.mxu0 0.0
    %2735 = vmatprep.subr.mxu0 0.0
    %2736 = vmatpush2.msra.mxu0 0.0
    %2737 = vmatprep.subr.mxu0 0.0
    %2738 = vmatpush2.msra.mxu0 0.0
    %2739 = vmatprep.subr.mxu0 0.0
    %2740 = vmatpush2.msra.mxu0 0.0
    %2741 = vmatprep.subr.mxu0 0.0
    %2742 = vmatpush2.msra.mxu0 0.0
    %2743 = vmatprep.subr.mxu0 0.0
    %2744 = vmatpush2.msra.mxu0 0.0
    %2745 = vmatprep.subr.mxu0 0.0
    %2746 = vmatpush2.msra.mxu0 0.0
    %2747 = vmatprep.subr.mxu0 0.0
    %2748 = vmatpush2.msra.mxu0 0.0
    %2749 = vmatprep.subr.mxu0 0.0
    %2750 = vmatpush2.msra.mxu0 0.0
    %2751 = vmatprep.subr.mxu0 0.0
    %2752 = vmatpush2.msra.mxu0 0.0
    %2753 = vmatprep.subr.mxu0 0.0
    %2754 = vmatpush2.msra.mxu0 0.0
    %2755 = vmatprep.subr.mxu0 0.0
    %2756 = vmatpush2.msra.mxu0 0.0
    %2757 = vmatprep.subr.mxu0 0.0
    %2758 = vmatpush2.msra.mxu0 0.0
    %2759 = vmatprep.subr.mxu0 0.0
    %2760 = vmatpush2.msra.mxu0 0.0
    %2761 = vmatprep.subr.mxu0 0.0
    %2762 = vmatpush2.msra.mxu0 0.0
    %2763 = vmatprep.mubr.f32.mxu0 0.0
    %2764 = vmatmul.mubr.f32.gmra.mxu0 %v2697
    %v2765 = vpop.f32.mrf.mxu0
    %v2766 = vadd.f32 0.0, %v2765
    %v2767 = vpop.f32.mrf.mxu0
    %2768 = vdwg.mxu0
    %v2769 = vadd.f32 %v2693, %v2766
    %v2770 = vxor.u32 %v2769, 2147483648
    %v2771 = vmul.f32 %v2770, 1.442695
    %v2772 = vpow.pop %v2771
    %v2773 = vadd.f32 %v2772, 1.0
    %v2774 = vrcp.pop %v2773
    %v2775 = vmul.f32 1.0, %v2774
    %v2776 = vtanh.pop %v2769
    %v2777 = vmul.f32 %v2775, %v2606
    %2779 = vrot.lane.b32.xlu0 %v2776, 80
    %v2780 = vpop.permute.xlu0 %2779
    %v2782 = vmul.f32 %v2775, %v2780
    %2784 = vrot.lane.b32.xlu0 %v2782, 16
    %v2785 = vpop.permute.xlu0 %2784
    %v2787 = vadd.f32 %v2777, %v2785
    %v2788 = vtanh.pop %v2787
    %2790 = vrot.lane.b32.xlu0 %v2788, 16
    %v2791 = vpop.permute.xlu0 %2790
    %v2793 = vmul.f32 %v2775, %v2791
    %v2794 = vmax.f32 %v2793, 0.0
    %2796 = vrot.lane.b32.xlu0 %v2794, 96
    %v2797 = vpop.permute.xlu0 %2796
    %v2798 = vsel %vm520, %v2797, 0
    %2800 = vmatprep.subr.mxu0 0.0
    %2801 = vmatpush1.msra.mxu0 0.0
    %2802 = vmatprep.subr.mxu0 0.0
    %2803 = vmatpush1.msra.mxu0 0.0
    %2804 = vmatprep.subr.mxu0 0.0
    %2805 = vmatpush1.msra.mxu0 0.0
    %2806 = vmatprep.subr.mxu0 0.0
    %2807 = vmatpush1.msra.mxu0 0.0
    %2808 = vmatprep.subr.mxu0 0.0
    %2809 = vmatpush1.msra.mxu0 0.0
    %2810 = vmatprep.subr.mxu0 0.0
    %2811 = vmatpush1.msra.mxu0 0.0
    %2812 = vmatprep.subr.mxu0 0.0
    %2813 = vmatpush1.msra.mxu0 0.0
    %2814 = vmatprep.subr.mxu0 0.0
    %2815 = vmatpush1.msra.mxu0 0.0
    %2816 = vmatprep.subr.mxu0 0.0
    %2817 = vmatpush1.msra.mxu0 0.0
    %2818 = vmatprep.subr.mxu0 0.0
    %2819 = vmatpush1.msra.mxu0 0.0
    %2820 = vmatprep.subr.mxu0 0.0
    %2821 = vmatpush1.msra.mxu0 0.0
    %2822 = vmatprep.subr.mxu0 0.0
    %2823 = vmatpush1.msra.mxu0 0.0
    %2824 = vmatprep.subr.mxu0 0.0
    %2825 = vmatpush1.msra.mxu0 0.0
    %2826 = vmatprep.subr.mxu0 0.0
    %2827 = vmatpush1.msra.mxu0 0.0
    %2828 = vmatprep.subr.mxu0 0.0
    %2829 = vmatpush1.msra.mxu0 %v47
    %2830 = vmatprep.subr.mxu0 0.0
    %2831 = vmatpush1.msra.mxu0 %v46
    %2832 = vmatprep.subr.mxu0 0.0
    %2833 = vmatpush2.msra.mxu0 0.0
    %2834 = vmatprep.subr.mxu0 0.0
    %2835 = vmatpush2.msra.mxu0 0.0
    %2836 = vmatprep.subr.mxu0 0.0
    %2837 = vmatpush2.msra.mxu0 0.0
    %2838 = vmatprep.subr.mxu0 0.0
    %2839 = vmatpush2.msra.mxu0 0.0
    %2840 = vmatprep.subr.mxu0 0.0
    %2841 = vmatpush2.msra.mxu0 0.0
    %2842 = vmatprep.subr.mxu0 0.0
    %2843 = vmatpush2.msra.mxu0 0.0
    %2844 = vmatprep.subr.mxu0 0.0
    %2845 = vmatpush2.msra.mxu0 0.0
    %2846 = vmatprep.subr.mxu0 0.0
    %2847 = vmatpush2.msra.mxu0 0.0
    %2848 = vmatprep.subr.mxu0 0.0
    %2849 = vmatpush2.msra.mxu0 0.0
    %2850 = vmatprep.subr.mxu0 0.0
    %2851 = vmatpush2.msra.mxu0 0.0
    %2852 = vmatprep.subr.mxu0 0.0
    %2853 = vmatpush2.msra.mxu0 0.0
    %2854 = vmatprep.subr.mxu0 0.0
    %2855 = vmatpush2.msra.mxu0 0.0
    %2856 = vmatprep.subr.mxu0 0.0
    %2857 = vmatpush2.msra.mxu0 0.0
    %2858 = vmatprep.subr.mxu0 0.0
    %2859 = vmatpush2.msra.mxu0 0.0
    %2860 = vmatprep.subr.mxu0 0.0
    %2861 = vmatpush2.msra.mxu0 0.0
    %2862 = vmatprep.subr.mxu0 0.0
    %2863 = vmatpush2.msra.mxu0 0.0
    %2864 = vmatprep.mubr.f32.mxu0 0.0
    %2865 = vmatmul.mubr.f32.gmra.mxu0 %v2798
    %v2866 = vpop.f32.mrf.mxu0
    %v2867 = vadd.f32 %v624, %v2866
    %v2868 = vpop.f32.mrf.mxu0
    %2869 = vdwg.mxu0
    %v2870 = vrot.slane %v290, 5
    %v2872 = vrot.slane %v512, 4
    %v2874 = vsel %vm518, %v2870, %v2872
    %2876 = vrot.lane.b32.xlu0 %v2793, 96
    %v2877 = vpop.permute.xlu0 %2876
    %v2878 = vsel %vm520, %v2877, 0
    %2880 = vmatprep.subr.mxu0 0.0
    %2881 = vmatpush1.msra.mxu0 0.0
    %2882 = vmatprep.subr.mxu0 0.0
    %2883 = vmatpush1.msra.mxu0 0.0
    %2884 = vmatprep.subr.mxu0 0.0
    %2885 = vmatpush1.msra.mxu0 0.0
    %2886 = vmatprep.subr.mxu0 0.0
    %2887 = vmatpush1.msra.mxu0 0.0
    %2888 = vmatprep.subr.mxu0 0.0
    %2889 = vmatpush1.msra.mxu0 0.0
    %2890 = vmatprep.subr.mxu0 0.0
    %2891 = vmatpush1.msra.mxu0 0.0
    %2892 = vmatprep.subr.mxu0 0.0
    %2893 = vmatpush1.msra.mxu0 0.0
    %2894 = vmatprep.subr.mxu0 0.0
    %2895 = vmatpush1.msra.mxu0 0.0
    %2896 = vmatprep.subr.mxu0 0.0
    %2897 = vmatpush1.msra.mxu0 0.0
    %2898 = vmatprep.subr.mxu0 0.0
    %2899 = vmatpush1.msra.mxu0 0.0
    %2900 = vmatprep.subr.mxu0 0.0
    %2901 = vmatpush1.msra.mxu0 0.0
    %2902 = vmatprep.subr.mxu0 0.0
    %2903 = vmatpush1.msra.mxu0 0.0
    %2904 = vmatprep.subr.mxu0 0.0
    %2905 = vmatpush1.msra.mxu0 0.0
    %2906 = vmatprep.subr.mxu0 0.0
    %2907 = vmatpush1.msra.mxu0 0.0
    %2908 = vmatprep.subr.mxu0 0.0
    %2909 = vmatpush1.msra.mxu0 %v44
    %2910 = vmatprep.subr.mxu0 0.0
    %2911 = vmatpush1.msra.mxu0 %v43
    %2912 = vmatprep.subr.mxu0 0.0
    %2913 = vmatpush2.msra.mxu0 0.0
    %2914 = vmatprep.subr.mxu0 0.0
    %2915 = vmatpush2.msra.mxu0 0.0
    %2916 = vmatprep.subr.mxu0 0.0
    %2917 = vmatpush2.msra.mxu0 0.0
    %2918 = vmatprep.subr.mxu0 0.0
    %2919 = vmatpush2.msra.mxu0 0.0
    %2920 = vmatprep.subr.mxu0 0.0
    %2921 = vmatpush2.msra.mxu0 0.0
    %2922 = vmatprep.subr.mxu0 0.0
    %2923 = vmatpush2.msra.mxu0 0.0
    %2924 = vmatprep.subr.mxu0 0.0
    %2925 = vmatpush2.msra.mxu0 0.0
    %2926 = vmatprep.subr.mxu0 0.0
    %2927 = vmatpush2.msra.mxu0 0.0
    %2928 = vmatprep.subr.mxu0 0.0
    %2929 = vmatpush2.msra.mxu0 0.0
    %2930 = vmatprep.subr.mxu0 0.0
    %2931 = vmatpush2.msra.mxu0 0.0
    %2932 = vmatprep.subr.mxu0 0.0
    %2933 = vmatpush2.msra.mxu0 0.0
    %2934 = vmatprep.subr.mxu0 0.0
    %2935 = vmatpush2.msra.mxu0 0.0
    %2936 = vmatprep.subr.mxu0 0.0
    %2937 = vmatpush2.msra.mxu0 0.0
    %2938 = vmatprep.subr.mxu0 0.0
    %2939 = vmatpush2.msra.mxu0 0.0
    %2940 = vmatprep.subr.mxu0 0.0
    %2941 = vmatpush2.msra.mxu0 0.0
    %2942 = vmatprep.subr.mxu0 0.0
    %2943 = vmatpush2.msra.mxu0 0.0
    %2944 = vmatprep.mubr.f32.mxu0 0.0
    %2945 = vmatmul.mubr.f32.gmra.mxu0 %v2878
    %v2946 = vpop.f32.mrf.mxu0
    %v2947 = vadd.f32 0.0, %v2946
    %v2948 = vpop.f32.mrf.mxu0
    %2949 = vdwg.mxu0
    %v2950 = vadd.f32 %v2874, %v2947
    %v2951 = vxor.u32 %v2950, 2147483648
    %v2952 = vmul.f32 %v2951, 1.442695
    %v2953 = vpow.pop %v2952
    %v2954 = vadd.f32 %v2953, 1.0
    %v2955 = vrcp.pop %v2954
    %v2956 = vmul.f32 1.0, %v2955
    %v2957 = vtanh.pop %v2950
    %v2958 = vmul.f32 %v2956, %v2787
    %2960 = vrot.lane.b32.xlu0 %v2957, 80
    %v2961 = vpop.permute.xlu0 %2960
    %v2963 = vmul.f32 %v2956, %v2961
    %2965 = vrot.lane.b32.xlu0 %v2963, 16
    %v2966 = vpop.permute.xlu0 %2965
    %v2968 = vadd.f32 %v2958, %v2966
    %v2969 = vtanh.pop %v2968
    %2971 = vrot.lane.b32.xlu0 %v2969, 16
    %v2972 = vpop.permute.xlu0 %2971
    %v2974 = vmul.f32 %v2956, %v2972
    %v2975 = vmax.f32 %v2974, 0.0
    %2977 = vrot.lane.b32.xlu0 %v2975, 96
    %v2978 = vpop.permute.xlu0 %2977
    %v2979 = vsel %vm520, %v2978, 0
    %2981 = vmatprep.subr.mxu0 0.0
    %2982 = vmatpush1.msra.mxu0 0.0
    %2983 = vmatprep.subr.mxu0 0.0
    %2984 = vmatpush1.msra.mxu0 0.0
    %2985 = vmatprep.subr.mxu0 0.0
    %2986 = vmatpush1.msra.mxu0 0.0
    %2987 = vmatprep.subr.mxu0 0.0
    %2988 = vmatpush1.msra.mxu0 0.0
    %2989 = vmatprep.subr.mxu0 0.0
    %2990 = vmatpush1.msra.mxu0 0.0
    %2991 = vmatprep.subr.mxu0 0.0
    %2992 = vmatpush1.msra.mxu0 0.0
    %2993 = vmatprep.subr.mxu0 0.0
    %2994 = vmatpush1.msra.mxu0 0.0
    %2995 = vmatprep.subr.mxu0 0.0
    %2996 = vmatpush1.msra.mxu0 0.0
    %2997 = vmatprep.subr.mxu0 0.0
    %2998 = vmatpush1.msra.mxu0 0.0
    %2999 = vmatprep.subr.mxu0 0.0
    %3000 = vmatpush1.msra.mxu0 0.0
    %3001 = vmatprep.subr.mxu0 0.0
    %3002 = vmatpush1.msra.mxu0 0.0
    %3003 = vmatprep.subr.mxu0 0.0
    %3004 = vmatpush1.msra.mxu0 0.0
    %3005 = vmatprep.subr.mxu0 0.0
    %3006 = vmatpush1.msra.mxu0 0.0
    %3007 = vmatprep.subr.mxu0 0.0
    %3008 = vmatpush1.msra.mxu0 0.0
    %3009 = vmatprep.subr.mxu0 0.0
    %3010 = vmatpush1.msra.mxu0 %v47
    %3011 = vmatprep.subr.mxu0 0.0
    %3012 = vmatpush1.msra.mxu0 %v46
    %3013 = vmatprep.subr.mxu0 0.0
    %3014 = vmatpush2.msra.mxu0 0.0
    %3015 = vmatprep.subr.mxu0 0.0
    %3016 = vmatpush2.msra.mxu0 0.0
    %3017 = vmatprep.subr.mxu0 0.0
    %3018 = vmatpush2.msra.mxu0 0.0
    %3019 = vmatprep.subr.mxu0 0.0
    %3020 = vmatpush2.msra.mxu0 0.0
    %3021 = vmatprep.subr.mxu0 0.0
    %3022 = vmatpush2.msra.mxu0 0.0
    %3023 = vmatprep.subr.mxu0 0.0
    %3024 = vmatpush2.msra.mxu0 0.0
    %3025 = vmatprep.subr.mxu0 0.0
    %3026 = vmatpush2.msra.mxu0 0.0
    %3027 = vmatprep.subr.mxu0 0.0
    %3028 = vmatpush2.msra.mxu0 0.0
    %3029 = vmatprep.subr.mxu0 0.0
    %3030 = vmatpush2.msra.mxu0 0.0
    %3031 = vmatprep.subr.mxu0 0.0
    %3032 = vmatpush2.msra.mxu0 0.0
    %3033 = vmatprep.subr.mxu0 0.0
    %3034 = vmatpush2.msra.mxu0 0.0
    %3035 = vmatprep.subr.mxu0 0.0
    %3036 = vmatpush2.msra.mxu0 0.0
    %3037 = vmatprep.subr.mxu0 0.0
    %3038 = vmatpush2.msra.mxu0 0.0
    %3039 = vmatprep.subr.mxu0 0.0
    %3040 = vmatpush2.msra.mxu0 0.0
    %3041 = vmatprep.subr.mxu0 0.0
    %3042 = vmatpush2.msra.mxu0 0.0
    %3043 = vmatprep.subr.mxu0 0.0
    %3044 = vmatpush2.msra.mxu0 0.0
    %3045 = vmatprep.mubr.f32.mxu0 0.0
    %3046 = vmatmul.mubr.f32.gmra.mxu0 %v2979
    %v3047 = vpop.f32.mrf.mxu0
    %v3048 = vadd.f32 %v624, %v3047
    %v3049 = vpop.f32.mrf.mxu0
    %3050 = vdwg.mxu0
    %3051 = vmatprep.subr.mxu0 0.0
    %3052 = vmatpush1.msra.mxu0 0.0
    %3053 = vmatprep.subr.mxu0 0.0
    %3054 = vmatpush1.msra.mxu0 0.0
    %3055 = vmatprep.subr.mxu0 0.0
    %3056 = vmatpush1.msra.mxu0 0.0
    %3057 = vmatprep.subr.mxu0 0.0
    %3058 = vmatpush1.msra.mxu0 0.0
    %3059 = vmatprep.subr.mxu0 0.0
    %3060 = vmatpush1.msra.mxu0 0.0
    %3061 = vmatprep.subr.mxu0 0.0
    %3062 = vmatpush1.msra.mxu0 0.0
    %3063 = vmatprep.subr.mxu0 0.0
    %3064 = vmatpush1.msra.mxu0 0.0
    %3065 = vmatprep.subr.mxu0 0.0
    %3066 = vmatpush1.msra.mxu0 0.0
    %3067 = vmatprep.subr.mxu0 0.0
    %3068 = vmatpush1.msra.mxu0 0.0
    %3069 = vmatprep.subr.mxu0 0.0
    %3070 = vmatpush1.msra.mxu0 0.0
    %3071 = vmatprep.subr.mxu0 0.0
    %3072 = vmatpush1.msra.mxu0 0.0
    %3073 = vmatprep.subr.mxu0 0.0
    %3074 = vmatpush1.msra.mxu0 0.0
    %3075 = vmatprep.subr.mxu0 0.0
    %3076 = vmatpush1.msra.mxu0 0.0
    %3077 = vmatprep.subr.mxu0 0.0
    %3078 = vmatpush1.msra.mxu0 0.0
    %3079 = vmatprep.subr.mxu0 0.0
    %3080 = vmatpush1.msra.mxu0 %v49
    %3081 = vmatprep.subr.mxu0 0.0
    %3082 = vmatpush1.msra.mxu0 %v48
    %3083 = vmatprep.subr.mxu0 0.0
    %3084 = vmatpush2.msra.mxu0 0.0
    %3085 = vmatprep.subr.mxu0 0.0
    %3086 = vmatpush2.msra.mxu0 0.0
    %3087 = vmatprep.subr.mxu0 0.0
    %3088 = vmatpush2.msra.mxu0 0.0
    %3089 = vmatprep.subr.mxu0 0.0
    %3090 = vmatpush2.msra.mxu0 0.0
    %3091 = vmatprep.subr.mxu0 0.0
    %3092 = vmatpush2.msra.mxu0 0.0
    %3093 = vmatprep.subr.mxu0 0.0
    %3094 = vmatpush2.msra.mxu0 0.0
    %3095 = vmatprep.subr.mxu0 0.0
    %3096 = vmatpush2.msra.mxu0 0.0
    %3097 = vmatprep.subr.mxu0 0.0
    %3098 = vmatpush2.msra.mxu0 0.0
    %3099 = vmatprep.subr.mxu0 0.0
    %3100 = vmatpush2.msra.mxu0 0.0
    %3101 = vmatprep.subr.mxu0 0.0
    %3102 = vmatpush2.msra.mxu0 0.0
    %3103 = vmatprep.subr.mxu0 0.0
    %3104 = vmatpush2.msra.mxu0 0.0
    %3105 = vmatprep.subr.mxu0 0.0
    %3106 = vmatpush2.msra.mxu0 0.0
    %3107 = vmatprep.subr.mxu0 0.0
    %3108 = vmatpush2.msra.mxu0 0.0
    %3109 = vmatprep.subr.mxu0 0.0
    %3110 = vmatpush2.msra.mxu0 0.0
    %3111 = vmatprep.subr.mxu0 0.0
    %3112 = vmatpush2.msra.mxu0 0.0
    %3113 = vmatprep.subr.mxu0 0.0
    %3114 = vmatpush2.msra.mxu0 0.0
    %3115 = vmatprep.mubr.f32.mxu0 0.0
    %3116 = vmatmul.mubr.f32.gmra.mxu0 %v522
    %v3117 = vpop.f32.mrf.mxu0
    %v3118 = vadd.f32 0.0, %v3117
    %v3119 = vpop.f32.mrf.mxu0
    %3120 = vdwg.mxu0
    %v3121 = vadd.f32 %v698, %v3118
    %v3122 = vxor.u32 %v3121, 2147483648
    %v3123 = vmul.f32 %v3122, 1.442695
    %v3124 = vpow.pop %v3123
    %v3125 = vadd.f32 %v3124, 1.0
    %v3126 = vrcp.pop %v3125
    %v3127 = vmul.f32 1.0, %v3126
    %v3128 = vtanh.pop %v3121
    %v3129 = vmul.f32 %v3127, 0.0
    %3131 = vrot.lane.b32.xlu0 %v3128, 80
    %v3132 = vpop.permute.xlu0 %3131
    %v3134 = vmul.f32 %v3127, %v3132
    %3136 = vrot.lane.b32.xlu0 %v3134, 16
    %v3137 = vpop.permute.xlu0 %3136
    %v3139 = vadd.f32 %v3129, %v3137
    %v3140 = vtanh.pop %v3139
    %3142 = vrot.lane.b32.xlu0 %v3140, 16
    %v3143 = vpop.permute.xlu0 %3142
    %v3145 = vmul.f32 %v3127, %v3143
    %v3146 = vmax.f32 %v3145, 0.0
    %3148 = vrot.lane.b32.xlu0 %v3145, 96
    %v3149 = vpop.permute.xlu0 %3148
    %v3150 = vsel %vm520, %v3149, 0
    %3152 = vmatprep.subr.mxu0 0.0
    %3153 = vmatpush1.msra.mxu0 0.0
    %3154 = vmatprep.subr.mxu0 0.0
    %3155 = vmatpush1.msra.mxu0 0.0
    %3156 = vmatprep.subr.mxu0 0.0
    %3157 = vmatpush1.msra.mxu0 0.0
    %3158 = vmatprep.subr.mxu0 0.0
    %3159 = vmatpush1.msra.mxu0 0.0
    %3160 = vmatprep.subr.mxu0 0.0
    %3161 = vmatpush1.msra.mxu0 0.0
    %3162 = vmatprep.subr.mxu0 0.0
    %3163 = vmatpush1.msra.mxu0 0.0
    %3164 = vmatprep.subr.mxu0 0.0
    %3165 = vmatpush1.msra.mxu0 0.0
    %3166 = vmatprep.subr.mxu0 0.0
    %3167 = vmatpush1.msra.mxu0 0.0
    %3168 = vmatprep.subr.mxu0 0.0
    %3169 = vmatpush1.msra.mxu0 0.0
    %3170 = vmatprep.subr.mxu0 0.0
    %3171 = vmatpush1.msra.mxu0 0.0
    %3172 = vmatprep.subr.mxu0 0.0
    %3173 = vmatpush1.msra.mxu0 0.0
    %3174 = vmatprep.subr.mxu0 0.0
    %3175 = vmatpush1.msra.mxu0 0.0
    %3176 = vmatprep.subr.mxu0 0.0
    %3177 = vmatpush1.msra.mxu0 0.0
    %3178 = vmatprep.subr.mxu0 0.0
    %3179 = vmatpush1.msra.mxu0 0.0
    %3180 = vmatprep.subr.mxu0 0.0
    %3181 = vmatpush1.msra.mxu0 %v49
    %3182 = vmatprep.subr.mxu0 0.0
    %3183 = vmatpush1.msra.mxu0 %v48
    %3184 = vmatprep.subr.mxu0 0.0
    %3185 = vmatpush2.msra.mxu0 0.0
    %3186 = vmatprep.subr.mxu0 0.0
    %3187 = vmatpush2.msra.mxu0 0.0
    %3188 = vmatprep.subr.mxu0 0.0
    %3189 = vmatpush2.msra.mxu0 0.0
    %3190 = vmatprep.subr.mxu0 0.0
    %3191 = vmatpush2.msra.mxu0 0.0
    %3192 = vmatprep.subr.mxu0 0.0
    %3193 = vmatpush2.msra.mxu0 0.0
    %3194 = vmatprep.subr.mxu0 0.0
    %3195 = vmatpush2.msra.mxu0 0.0
    %3196 = vmatprep.subr.mxu0 0.0
    %3197 = vmatpush2.msra.mxu0 0.0
    %3198 = vmatprep.subr.mxu0 0.0
    %3199 = vmatpush2.msra.mxu0 0.0
    %3200 = vmatprep.subr.mxu0 0.0
    %3201 = vmatpush2.msra.mxu0 0.0
    %3202 = vmatprep.subr.mxu0 0.0
    %3203 = vmatpush2.msra.mxu0 0.0
    %3204 = vmatprep.subr.mxu0 0.0
    %3205 = vmatpush2.msra.mxu0 0.0
    %3206 = vmatprep.subr.mxu0 0.0
    %3207 = vmatpush2.msra.mxu0 0.0
    %3208 = vmatprep.subr.mxu0 0.0
    %3209 = vmatpush2.msra.mxu0 0.0
    %3210 = vmatprep.subr.mxu0 0.0
    %3211 = vmatpush2.msra.mxu0 0.0
    %3212 = vmatprep.subr.mxu0 0.0
    %3213 = vmatpush2.msra.mxu0 0.0
    %3214 = vmatprep.subr.mxu0 0.0
    %3215 = vmatpush2.msra.mxu0 0.0
    %3216 = vmatprep.mubr.f32.mxu0 0.0
    %3217 = vmatmul.mubr.f32.gmra.mxu0 %v3150
    %v3218 = vpop.f32.mrf.mxu0
    %v3219 = vadd.f32 0.0, %v3218
    %v3220 = vpop.f32.mrf.mxu0
    %3221 = vdwg.mxu0
    %v3222 = vadd.f32 %v878, %v3219
    %v3223 = vxor.u32 %v3222, 2147483648
    %v3224 = vmul.f32 %v3223, 1.442695
    %v3225 = vpow.pop %v3224
    %v3226 = vadd.f32 %v3225, 1.0
    %v3227 = vrcp.pop %v3226
    %v3228 = vmul.f32 1.0, %v3227
    %v3229 = vtanh.pop %v3222
    %v3230 = vmul.f32 %v3228, %v3139
    %3232 = vrot.lane.b32.xlu0 %v3229, 80
    %v3233 = vpop.permute.xlu0 %3232
    %v3235 = vmul.f32 %v3228, %v3233
    %3237 = vrot.lane.b32.xlu0 %v3235, 16
    %v3238 = vpop.permute.xlu0 %3237
    %v3240 = vadd.f32 %v3230, %v3238
    %v3241 = vtanh.pop %v3240
    %3243 = vrot.lane.b32.xlu0 %v3241, 16
    %v3244 = vpop.permute.xlu0 %3243
    %v3246 = vmul.f32 %v3228, %v3244
    %v3247 = vmax.f32 %v3246, 0.0
    %3249 = vrot.lane.b32.xlu0 %v3246, 96
    %v3250 = vpop.permute.xlu0 %3249
    %v3251 = vsel %vm520, %v3250, 0
    %3253 = vmatprep.subr.mxu0 0.0
    %3254 = vmatpush1.msra.mxu0 0.0
    %3255 = vmatprep.subr.mxu0 0.0
    %3256 = vmatpush1.msra.mxu0 0.0
    %3257 = vmatprep.subr.mxu0 0.0
    %3258 = vmatpush1.msra.mxu0 0.0
    %3259 = vmatprep.subr.mxu0 0.0
    %3260 = vmatpush1.msra.mxu0 0.0
    %3261 = vmatprep.subr.mxu0 0.0
    %3262 = vmatpush1.msra.mxu0 0.0
    %3263 = vmatprep.subr.mxu0 0.0
    %3264 = vmatpush1.msra.mxu0 0.0
    %3265 = vmatprep.subr.mxu0 0.0
    %3266 = vmatpush1.msra.mxu0 0.0
    %3267 = vmatprep.subr.mxu0 0.0
    %3268 = vmatpush1.msra.mxu0 0.0
    %3269 = vmatprep.subr.mxu0 0.0
    %3270 = vmatpush1.msra.mxu0 0.0
    %3271 = vmatprep.subr.mxu0 0.0
    %3272 = vmatpush1.msra.mxu0 0.0
    %3273 = vmatprep.subr.mxu0 0.0
    %3274 = vmatpush1.msra.mxu0 0.0
    %3275 = vmatprep.subr.mxu0 0.0
    %3276 = vmatpush1.msra.mxu0 0.0
    %3277 = vmatprep.subr.mxu0 0.0
    %3278 = vmatpush1.msra.mxu0 0.0
    %3279 = vmatprep.subr.mxu0 0.0
    %3280 = vmatpush1.msra.mxu0 0.0
    %3281 = vmatprep.subr.mxu0 0.0
    %3282 = vmatpush1.msra.mxu0 %v49
    %3283 = vmatprep.subr.mxu0 0.0
    %3284 = vmatpush1.msra.mxu0 %v48
    %3285 = vmatprep.subr.mxu0 0.0
    %3286 = vmatpush2.msra.mxu0 0.0
    %3287 = vmatprep.subr.mxu0 0.0
    %3288 = vmatpush2.msra.mxu0 0.0
    %3289 = vmatprep.subr.mxu0 0.0
    %3290 = vmatpush2.msra.mxu0 0.0
    %3291 = vmatprep.subr.mxu0 0.0
    %3292 = vmatpush2.msra.mxu0 0.0
    %3293 = vmatprep.subr.mxu0 0.0
    %3294 = vmatpush2.msra.mxu0 0.0
    %3295 = vmatprep.subr.mxu0 0.0
    %3296 = vmatpush2.msra.mxu0 0.0
    %3297 = vmatprep.subr.mxu0 0.0
    %3298 = vmatpush2.msra.mxu0 0.0
    %3299 = vmatprep.subr.mxu0 0.0
    %3300 = vmatpush2.msra.mxu0 0.0
    %3301 = vmatprep.subr.mxu0 0.0
    %3302 = vmatpush2.msra.mxu0 0.0
    %3303 = vmatprep.subr.mxu0 0.0
    %3304 = vmatpush2.msra.mxu0 0.0
    %3305 = vmatprep.subr.mxu0 0.0
    %3306 = vmatpush2.msra.mxu0 0.0
    %3307 = vmatprep.subr.mxu0 0.0
    %3308 = vmatpush2.msra.mxu0 0.0
    %3309 = vmatprep.subr.mxu0 0.0
    %3310 = vmatpush2.msra.mxu0 0.0
    %3311 = vmatprep.subr.mxu0 0.0
    %3312 = vmatpush2.msra.mxu0 0.0
    %3313 = vmatprep.subr.mxu0 0.0
    %3314 = vmatpush2.msra.mxu0 0.0
    %3315 = vmatprep.subr.mxu0 0.0
    %3316 = vmatpush2.msra.mxu0 0.0
    %3317 = vmatprep.mubr.f32.mxu0 0.0
    %3318 = vmatmul.mubr.f32.gmra.mxu0 %v3251
    %v3319 = vpop.f32.mrf.mxu0
    %v3320 = vadd.f32 0.0, %v3319
    %v3321 = vpop.f32.mrf.mxu0
    %3322 = vdwg.mxu0
    %v3323 = vadd.f32 %v1059, %v3320
    %v3324 = vxor.u32 %v3323, 2147483648
    %v3325 = vmul.f32 %v3324, 1.442695
    %v3326 = vpow.pop %v3325
    %v3327 = vadd.f32 %v3326, 1.0
    %v3328 = vrcp.pop %v3327
    %v3329 = vmul.f32 1.0, %v3328
    %v3330 = vtanh.pop %v3323
    %v3331 = vmul.f32 %v3329, %v3240
    %3333 = vrot.lane.b32.xlu0 %v3330, 80
    %v3334 = vpop.permute.xlu0 %3333
    %v3336 = vmul.f32 %v3329, %v3334
    %3338 = vrot.lane.b32.xlu0 %v3336, 16
    %v3339 = vpop.permute.xlu0 %3338
    %v3341 = vadd.f32 %v3331, %v3339
    %v3342 = vtanh.pop %v3341
    %3344 = vrot.lane.b32.xlu0 %v3342, 16
    %v3345 = vpop.permute.xlu0 %3344
    %v3347 = vmul.f32 %v3329, %v3345
    %v3348 = vmax.f32 %v3347, 0.0
    %3350 = vrot.lane.b32.xlu0 %v3347, 96
    %v3351 = vpop.permute.xlu0 %3350
    %v3352 = vsel %vm520, %v3351, 0
    %3354 = vmatprep.subr.mxu0 0.0
    %3355 = vmatpush1.msra.mxu0 0.0
    %3356 = vmatprep.subr.mxu0 0.0
    %3357 = vmatpush1.msra.mxu0 0.0
    %3358 = vmatprep.subr.mxu0 0.0
    %3359 = vmatpush1.msra.mxu0 0.0
    %3360 = vmatprep.subr.mxu0 0.0
    %3361 = vmatpush1.msra.mxu0 0.0
    %3362 = vmatprep.subr.mxu0 0.0
    %3363 = vmatpush1.msra.mxu0 0.0
    %3364 = vmatprep.subr.mxu0 0.0
    %3365 = vmatpush1.msra.mxu0 0.0
    %3366 = vmatprep.subr.mxu0 0.0
    %3367 = vmatpush1.msra.mxu0 0.0
    %3368 = vmatprep.subr.mxu0 0.0
    %3369 = vmatpush1.msra.mxu0 0.0
    %3370 = vmatprep.subr.mxu0 0.0
    %3371 = vmatpush1.msra.mxu0 0.0
    %3372 = vmatprep.subr.mxu0 0.0
    %3373 = vmatpush1.msra.mxu0 0.0
    %3374 = vmatprep.subr.mxu0 0.0
    %3375 = vmatpush1.msra.mxu0 0.0
    %3376 = vmatprep.subr.mxu0 0.0
    %3377 = vmatpush1.msra.mxu0 0.0
    %3378 = vmatprep.subr.mxu0 0.0
    %3379 = vmatpush1.msra.mxu0 0.0
    %3380 = vmatprep.subr.mxu0 0.0
    %3381 = vmatpush1.msra.mxu0 0.0
    %3382 = vmatprep.subr.mxu0 0.0
    %3383 = vmatpush1.msra.mxu0 %v49
    %3384 = vmatprep.subr.mxu0 0.0
    %3385 = vmatpush1.msra.mxu0 %v48
    %3386 = vmatprep.subr.mxu0 0.0
    %3387 = vmatpush2.msra.mxu0 0.0
    %3388 = vmatprep.subr.mxu0 0.0
    %3389 = vmatpush2.msra.mxu0 0.0
    %3390 = vmatprep.subr.mxu0 0.0
    %3391 = vmatpush2.msra.mxu0 0.0
    %3392 = vmatprep.subr.mxu0 0.0
    %3393 = vmatpush2.msra.mxu0 0.0
    %3394 = vmatprep.subr.mxu0 0.0
    %3395 = vmatpush2.msra.mxu0 0.0
    %3396 = vmatprep.subr.mxu0 0.0
    %3397 = vmatpush2.msra.mxu0 0.0
    %3398 = vmatprep.subr.mxu0 0.0
    %3399 = vmatpush2.msra.mxu0 0.0
    %3400 = vmatprep.subr.mxu0 0.0
    %3401 = vmatpush2.msra.mxu0 0.0
    %3402 = vmatprep.subr.mxu0 0.0
    %3403 = vmatpush2.msra.mxu0 0.0
    %3404 = vmatprep.subr.mxu0 0.0
    %3405 = vmatpush2.msra.mxu0 0.0
    %3406 = vmatprep.subr.mxu0 0.0
    %3407 = vmatpush2.msra.mxu0 0.0
    %3408 = vmatprep.subr.mxu0 0.0
    %3409 = vmatpush2.msra.mxu0 0.0
    %3410 = vmatprep.subr.mxu0 0.0
    %3411 = vmatpush2.msra.mxu0 0.0
    %3412 = vmatprep.subr.mxu0 0.0
    %3413 = vmatpush2.msra.mxu0 0.0
    %3414 = vmatprep.subr.mxu0 0.0
    %3415 = vmatpush2.msra.mxu0 0.0
    %3416 = vmatprep.subr.mxu0 0.0
    %3417 = vmatpush2.msra.mxu0 0.0
    %3418 = vmatprep.mubr.f32.mxu0 0.0
    %3419 = vmatmul.mubr.f32.gmra.mxu0 %v3352
    %v3420 = vpop.f32.mrf.mxu0
    %v3421 = vadd.f32 0.0, %v3420
    %v3422 = vpop.f32.mrf.mxu0
    %3423 = vdwg.mxu0
    %v3424 = vadd.f32 %v1240, %v3421
    %v3425 = vxor.u32 %v3424, 2147483648
    %v3426 = vmul.f32 %v3425, 1.442695
    %v3427 = vpow.pop %v3426
    %v3428 = vadd.f32 %v3427, 1.0
    %v3429 = vrcp.pop %v3428
    %v3430 = vmul.f32 1.0, %v3429
    %v3431 = vtanh.pop %v3424
    %v3432 = vmul.f32 %v3430, %v3341
    %3434 = vrot.lane.b32.xlu0 %v3431, 80
    %v3435 = vpop.permute.xlu0 %3434
    %v3437 = vmul.f32 %v3430, %v3435
    %3439 = vrot.lane.b32.xlu0 %v3437, 16
    %v3440 = vpop.permute.xlu0 %3439
    %v3442 = vadd.f32 %v3432, %v3440
    %v3443 = vtanh.pop %v3442
    %3445 = vrot.lane.b32.xlu0 %v3443, 16
    %v3446 = vpop.permute.xlu0 %3445
    %v3448 = vmul.f32 %v3430, %v3446
    %v3449 = vmax.f32 %v3448, 0.0
    %3451 = vrot.lane.b32.xlu0 %v3448, 96
    %v3452 = vpop.permute.xlu0 %3451
    %v3453 = vsel %vm520, %v3452, 0
    %3455 = vmatprep.subr.mxu0 0.0
    %3456 = vmatpush1.msra.mxu0 0.0
    %3457 = vmatprep.subr.mxu0 0.0
    %3458 = vmatpush1.msra.mxu0 0.0
    %3459 = vmatprep.subr.mxu0 0.0
    %3460 = vmatpush1.msra.mxu0 0.0
    %3461 = vmatprep.subr.mxu0 0.0
    %3462 = vmatpush1.msra.mxu0 0.0
    %3463 = vmatprep.subr.mxu0 0.0
    %3464 = vmatpush1.msra.mxu0 0.0
    %3465 = vmatprep.subr.mxu0 0.0
    %3466 = vmatpush1.msra.mxu0 0.0
    %3467 = vmatprep.subr.mxu0 0.0
    %3468 = vmatpush1.msra.mxu0 0.0
    %3469 = vmatprep.subr.mxu0 0.0
    %3470 = vmatpush1.msra.mxu0 0.0
    %3471 = vmatprep.subr.mxu0 0.0
    %3472 = vmatpush1.msra.mxu0 0.0
    %3473 = vmatprep.subr.mxu0 0.0
    %3474 = vmatpush1.msra.mxu0 0.0
    %3475 = vmatprep.subr.mxu0 0.0
    %3476 = vmatpush1.msra.mxu0 0.0
    %3477 = vmatprep.subr.mxu0 0.0
    %3478 = vmatpush1.msra.mxu0 0.0
    %3479 = vmatprep.subr.mxu0 0.0
    %3480 = vmatpush1.msra.mxu0 0.0
    %3481 = vmatprep.subr.mxu0 0.0
    %3482 = vmatpush1.msra.mxu0 0.0
    %3483 = vmatprep.subr.mxu0 0.0
    %3484 = vmatpush1.msra.mxu0 %v49
    %3485 = vmatprep.subr.mxu0 0.0
    %3486 = vmatpush1.msra.mxu0 %v48
    %3487 = vmatprep.subr.mxu0 0.0
    %3488 = vmatpush2.msra.mxu0 0.0
    %3489 = vmatprep.subr.mxu0 0.0
    %3490 = vmatpush2.msra.mxu0 0.0
    %3491 = vmatprep.subr.mxu0 0.0
    %3492 = vmatpush2.msra.mxu0 0.0
    %3493 = vmatprep.subr.mxu0 0.0
    %3494 = vmatpush2.msra.mxu0 0.0
    %3495 = vmatprep.subr.mxu0 0.0
    %3496 = vmatpush2.msra.mxu0 0.0
    %3497 = vmatprep.subr.mxu0 0.0
    %3498 = vmatpush2.msra.mxu0 0.0
    %3499 = vmatprep.subr.mxu0 0.0
    %3500 = vmatpush2.msra.mxu0 0.0
    %3501 = vmatprep.subr.mxu0 0.0
    %3502 = vmatpush2.msra.mxu0 0.0
    %3503 = vmatprep.subr.mxu0 0.0
    %3504 = vmatpush2.msra.mxu0 0.0
    %3505 = vmatprep.subr.mxu0 0.0
    %3506 = vmatpush2.msra.mxu0 0.0
    %3507 = vmatprep.subr.mxu0 0.0
    %3508 = vmatpush2.msra.mxu0 0.0
    %3509 = vmatprep.subr.mxu0 0.0
    %3510 = vmatpush2.msra.mxu0 0.0
    %3511 = vmatprep.subr.mxu0 0.0
    %3512 = vmatpush2.msra.mxu0 0.0
    %3513 = vmatprep.subr.mxu0 0.0
    %3514 = vmatpush2.msra.mxu0 0.0
    %3515 = vmatprep.subr.mxu0 0.0
    %3516 = vmatpush2.msra.mxu0 0.0
    %3517 = vmatprep.subr.mxu0 0.0
    %3518 = vmatpush2.msra.mxu0 0.0
    %3519 = vmatprep.mubr.f32.mxu0 0.0
    %3520 = vmatmul.mubr.f32.gmra.mxu0 %v3453
    %v3521 = vpop.f32.mrf.mxu0
    %v3522 = vadd.f32 0.0, %v3521
    %v3523 = vpop.f32.mrf.mxu0
    %3524 = vdwg.mxu0
    %v3525 = vadd.f32 %v1421, %v3522
    %v3526 = vxor.u32 %v3525, 2147483648
    %v3527 = vmul.f32 %v3526, 1.442695
    %v3528 = vpow.pop %v3527
    %v3529 = vadd.f32 %v3528, 1.0
    %v3530 = vrcp.pop %v3529
    %v3531 = vmul.f32 1.0, %v3530
    %v3532 = vtanh.pop %v3525
    %v3533 = vmul.f32 %v3531, %v3442
    %3535 = vrot.lane.b32.xlu0 %v3532, 80
    %v3536 = vpop.permute.xlu0 %3535
    %v3538 = vmul.f32 %v3531, %v3536
    %3540 = vrot.lane.b32.xlu0 %v3538, 16
    %v3541 = vpop.permute.xlu0 %3540
    %v3543 = vadd.f32 %v3533, %v3541
    %v3544 = vtanh.pop %v3543
    %3546 = vrot.lane.b32.xlu0 %v3544, 16
    %v3547 = vpop.permute.xlu0 %3546
    %v3549 = vmul.f32 %v3531, %v3547
    %v3550 = vmax.f32 %v3549, 0.0
    %3552 = vrot.lane.b32.xlu0 %v3549, 96
    %v3553 = vpop.permute.xlu0 %3552
    %v3554 = vsel %vm520, %v3553, 0
    %3556 = vmatprep.subr.mxu0 0.0
    %3557 = vmatpush1.msra.mxu0 0.0
    %3558 = vmatprep.subr.mxu0 0.0
    %3559 = vmatpush1.msra.mxu0 0.0
    %3560 = vmatprep.subr.mxu0 0.0
    %3561 = vmatpush1.msra.mxu0 0.0
    %3562 = vmatprep.subr.mxu0 0.0
    %3563 = vmatpush1.msra.mxu0 0.0
    %3564 = vmatprep.subr.mxu0 0.0
    %3565 = vmatpush1.msra.mxu0 0.0
    %3566 = vmatprep.subr.mxu0 0.0
    %3567 = vmatpush1.msra.mxu0 0.0
    %3568 = vmatprep.subr.mxu0 0.0
    %3569 = vmatpush1.msra.mxu0 0.0
    %3570 = vmatprep.subr.mxu0 0.0
    %3571 = vmatpush1.msra.mxu0 0.0
    %3572 = vmatprep.subr.mxu0 0.0
    %3573 = vmatpush1.msra.mxu0 0.0
    %3574 = vmatprep.subr.mxu0 0.0
    %3575 = vmatpush1.msra.mxu0 0.0
    %3576 = vmatprep.subr.mxu0 0.0
    %3577 = vmatpush1.msra.mxu0 0.0
    %3578 = vmatprep.subr.mxu0 0.0
    %3579 = vmatpush1.msra.mxu0 0.0
    %3580 = vmatprep.subr.mxu0 0.0
    %3581 = vmatpush1.msra.mxu0 0.0
    %3582 = vmatprep.subr.mxu0 0.0
    %3583 = vmatpush1.msra.mxu0 0.0
    %3584 = vmatprep.subr.mxu0 0.0
    %3585 = vmatpush1.msra.mxu0 %v49
    %3586 = vmatprep.subr.mxu0 0.0
    %3587 = vmatpush1.msra.mxu0 %v48
    %3588 = vmatprep.subr.mxu0 0.0
    %3589 = vmatpush2.msra.mxu0 0.0
    %3590 = vmatprep.subr.mxu0 0.0
    %3591 = vmatpush2.msra.mxu0 0.0
    %3592 = vmatprep.subr.mxu0 0.0
    %3593 = vmatpush2.msra.mxu0 0.0
    %3594 = vmatprep.subr.mxu0 0.0
    %3595 = vmatpush2.msra.mxu0 0.0
    %3596 = vmatprep.subr.mxu0 0.0
    %3597 = vmatpush2.msra.mxu0 0.0
    %3598 = vmatprep.subr.mxu0 0.0
    %3599 = vmatpush2.msra.mxu0 0.0
    %3600 = vmatprep.subr.mxu0 0.0
    %3601 = vmatpush2.msra.mxu0 0.0
    %3602 = vmatprep.subr.mxu0 0.0
    %3603 = vmatpush2.msra.mxu0 0.0
    %3604 = vmatprep.subr.mxu0 0.0
    %3605 = vmatpush2.msra.mxu0 0.0
    %3606 = vmatprep.subr.mxu0 0.0
    %3607 = vmatpush2.msra.mxu0 0.0
    %3608 = vmatprep.subr.mxu0 0.0
    %3609 = vmatpush2.msra.mxu0 0.0
    %3610 = vmatprep.subr.mxu0 0.0
    %3611 = vmatpush2.msra.mxu0 0.0
    %3612 = vmatprep.subr.mxu0 0.0
    %3613 = vmatpush2.msra.mxu0 0.0
    %3614 = vmatprep.subr.mxu0 0.0
    %3615 = vmatpush2.msra.mxu0 0.0
    %3616 = vmatprep.subr.mxu0 0.0
    %3617 = vmatpush2.msra.mxu0 0.0
    %3618 = vmatprep.subr.mxu0 0.0
    %3619 = vmatpush2.msra.mxu0 0.0
    %3620 = vmatprep.mubr.f32.mxu0 0.0
    %3621 = vmatmul.mubr.f32.gmra.mxu0 %v3554
    %v3622 = vpop.f32.mrf.mxu0
    %v3623 = vadd.f32 0.0, %v3622
    %v3624 = vpop.f32.mrf.mxu0
    %3625 = vdwg.mxu0
    %v3626 = vadd.f32 %v1602, %v3623
    %v3627 = vxor.u32 %v3626, 2147483648
    %v3628 = vmul.f32 %v3627, 1.442695
    %v3629 = vpow.pop %v3628
    %v3630 = vadd.f32 %v3629, 1.0
    %v3631 = vrcp.pop %v3630
    %v3632 = vmul.f32 1.0, %v3631
    %v3633 = vtanh.pop %v3626
    %v3634 = vmul.f32 %v3632, %v3543
    %3636 = vrot.lane.b32.xlu0 %v3633, 80
    %v3637 = vpop.permute.xlu0 %3636
    %v3639 = vmul.f32 %v3632, %v3637
    %3641 = vrot.lane.b32.xlu0 %v3639, 16
    %v3642 = vpop.permute.xlu0 %3641
    %v3644 = vadd.f32 %v3634, %v3642
    %v3645 = vtanh.pop %v3644
    %3647 = vrot.lane.b32.xlu0 %v3645, 16
    %v3648 = vpop.permute.xlu0 %3647
    %v3650 = vmul.f32 %v3632, %v3648
    %v3651 = vmax.f32 %v3650, 0.0
    %3653 = vrot.lane.b32.xlu0 %v3650, 96
    %v3654 = vpop.permute.xlu0 %3653
    %v3655 = vsel %vm520, %v3654, 0
    %3657 = vmatprep.subr.mxu0 0.0
    %3658 = vmatpush1.msra.mxu0 0.0
    %3659 = vmatprep.subr.mxu0 0.0
    %3660 = vmatpush1.msra.mxu0 0.0
    %3661 = vmatprep.subr.mxu0 0.0
    %3662 = vmatpush1.msra.mxu0 0.0
    %3663 = vmatprep.subr.mxu0 0.0
    %3664 = vmatpush1.msra.mxu0 0.0
    %3665 = vmatprep.subr.mxu0 0.0
    %3666 = vmatpush1.msra.mxu0 0.0
    %3667 = vmatprep.subr.mxu0 0.0
    %3668 = vmatpush1.msra.mxu0 0.0
    %3669 = vmatprep.subr.mxu0 0.0
    %3670 = vmatpush1.msra.mxu0 0.0
    %3671 = vmatprep.subr.mxu0 0.0
    %3672 = vmatpush1.msra.mxu0 0.0
    %3673 = vmatprep.subr.mxu0 0.0
    %3674 = vmatpush1.msra.mxu0 0.0
    %3675 = vmatprep.subr.mxu0 0.0
    %3676 = vmatpush1.msra.mxu0 0.0
    %3677 = vmatprep.subr.mxu0 0.0
    %3678 = vmatpush1.msra.mxu0 0.0
    %3679 = vmatprep.subr.mxu0 0.0
    %3680 = vmatpush1.msra.mxu0 0.0
    %3681 = vmatprep.subr.mxu0 0.0
    %3682 = vmatpush1.msra.mxu0 0.0
    %3683 = vmatprep.subr.mxu0 0.0
    %3684 = vmatpush1.msra.mxu0 0.0
    %3685 = vmatprep.subr.mxu0 0.0
    %3686 = vmatpush1.msra.mxu0 %v49
    %3687 = vmatprep.subr.mxu0 0.0
    %3688 = vmatpush1.msra.mxu0 %v48
    %3689 = vmatprep.subr.mxu0 0.0
    %3690 = vmatpush2.msra.mxu0 0.0
    %3691 = vmatprep.subr.mxu0 0.0
    %3692 = vmatpush2.msra.mxu0 0.0
    %3693 = vmatprep.subr.mxu0 0.0
    %3694 = vmatpush2.msra.mxu0 0.0
    %3695 = vmatprep.subr.mxu0 0.0
    %3696 = vmatpush2.msra.mxu0 0.0
    %3697 = vmatprep.subr.mxu0 0.0
    %3698 = vmatpush2.msra.mxu0 0.0
    %3699 = vmatprep.subr.mxu0 0.0
    %3700 = vmatpush2.msra.mxu0 0.0
    %3701 = vmatprep.subr.mxu0 0.0
    %3702 = vmatpush2.msra.mxu0 0.0
    %3703 = vmatprep.subr.mxu0 0.0
    %3704 = vmatpush2.msra.mxu0 0.0
    %3705 = vmatprep.subr.mxu0 0.0
    %3706 = vmatpush2.msra.mxu0 0.0
    %3707 = vmatprep.subr.mxu0 0.0
    %3708 = vmatpush2.msra.mxu0 0.0
    %3709 = vmatprep.subr.mxu0 0.0
    %3710 = vmatpush2.msra.mxu0 0.0
    %3711 = vmatprep.subr.mxu0 0.0
    %3712 = vmatpush2.msra.mxu0 0.0
    %3713 = vmatprep.subr.mxu0 0.0
    %3714 = vmatpush2.msra.mxu0 0.0
    %3715 = vmatprep.subr.mxu0 0.0
    %3716 = vmatpush2.msra.mxu0 0.0
    %3717 = vmatprep.subr.mxu0 0.0
    %3718 = vmatpush2.msra.mxu0 0.0
    %3719 = vmatprep.subr.mxu0 0.0
    %3720 = vmatpush2.msra.mxu0 0.0
    %3721 = vmatprep.mubr.f32.mxu0 0.0
    %3722 = vmatmul.mubr.f32.gmra.mxu0 %v3655
    %v3723 = vpop.f32.mrf.mxu0
    %v3724 = vadd.f32 0.0, %v3723
    %v3725 = vpop.f32.mrf.mxu0
    %3726 = vdwg.mxu0
    %v3727 = vadd.f32 %v1783, %v3724
    %v3728 = vxor.u32 %v3727, 2147483648
    %v3729 = vmul.f32 %v3728, 1.442695
    %v3730 = vpow.pop %v3729
    %v3731 = vadd.f32 %v3730, 1.0
    %v3732 = vrcp.pop %v3731
    %v3733 = vmul.f32 1.0, %v3732
    %v3734 = vtanh.pop %v3727
    %v3735 = vmul.f32 %v3733, %v3644
    %3737 = vrot.lane.b32.xlu0 %v3734, 80
    %v3738 = vpop.permute.xlu0 %3737
    %v3740 = vmul.f32 %v3733, %v3738
    %3742 = vrot.lane.b32.xlu0 %v3740, 16
    %v3743 = vpop.permute.xlu0 %3742
    %v3745 = vadd.f32 %v3735, %v3743
    %v3746 = vtanh.pop %v3745
    %3748 = vrot.lane.b32.xlu0 %v3746, 16
    %v3749 = vpop.permute.xlu0 %3748
    %v3751 = vmul.f32 %v3733, %v3749
    %v3752 = vmax.f32 %v3751, 0.0
    %3754 = vrot.lane.b32.xlu0 %v3751, 96
    %v3755 = vpop.permute.xlu0 %3754
    %v3756 = vsel %vm520, %v3755, 0
    %3758 = vmatprep.subr.mxu0 0.0
    %3759 = vmatpush1.msra.mxu0 0.0
    %3760 = vmatprep.subr.mxu0 0.0
    %3761 = vmatpush1.msra.mxu0 0.0
    %3762 = vmatprep.subr.mxu0 0.0
    %3763 = vmatpush1.msra.mxu0 0.0
    %3764 = vmatprep.subr.mxu0 0.0
    %3765 = vmatpush1.msra.mxu0 0.0
    %3766 = vmatprep.subr.mxu0 0.0
    %3767 = vmatpush1.msra.mxu0 0.0
    %3768 = vmatprep.subr.mxu0 0.0
    %3769 = vmatpush1.msra.mxu0 0.0
    %3770 = vmatprep.subr.mxu0 0.0
    %3771 = vmatpush1.msra.mxu0 0.0
    %3772 = vmatprep.subr.mxu0 0.0
    %3773 = vmatpush1.msra.mxu0 0.0
    %3774 = vmatprep.subr.mxu0 0.0
    %3775 = vmatpush1.msra.mxu0 0.0
    %3776 = vmatprep.subr.mxu0 0.0
    %3777 = vmatpush1.msra.mxu0 0.0
    %3778 = vmatprep.subr.mxu0 0.0
    %3779 = vmatpush1.msra.mxu0 0.0
    %3780 = vmatprep.subr.mxu0 0.0
    %3781 = vmatpush1.msra.mxu0 0.0
    %3782 = vmatprep.subr.mxu0 0.0
    %3783 = vmatpush1.msra.mxu0 0.0
    %3784 = vmatprep.subr.mxu0 0.0
    %3785 = vmatpush1.msra.mxu0 0.0
    %3786 = vmatprep.subr.mxu0 0.0
    %3787 = vmatpush1.msra.mxu0 %v49
    %3788 = vmatprep.subr.mxu0 0.0
    %3789 = vmatpush1.msra.mxu0 %v48
    %3790 = vmatprep.subr.mxu0 0.0
    %3791 = vmatpush2.msra.mxu0 0.0
    %3792 = vmatprep.subr.mxu0 0.0
    %3793 = vmatpush2.msra.mxu0 0.0
    %3794 = vmatprep.subr.mxu0 0.0
    %3795 = vmatpush2.msra.mxu0 0.0
    %3796 = vmatprep.subr.mxu0 0.0
    %3797 = vmatpush2.msra.mxu0 0.0
    %3798 = vmatprep.subr.mxu0 0.0
    %3799 = vmatpush2.msra.mxu0 0.0
    %3800 = vmatprep.subr.mxu0 0.0
    %3801 = vmatpush2.msra.mxu0 0.0
    %3802 = vmatprep.subr.mxu0 0.0
    %3803 = vmatpush2.msra.mxu0 0.0
    %3804 = vmatprep.subr.mxu0 0.0
    %3805 = vmatpush2.msra.mxu0 0.0
    %3806 = vmatprep.subr.mxu0 0.0
    %3807 = vmatpush2.msra.mxu0 0.0
    %3808 = vmatprep.subr.mxu0 0.0
    %3809 = vmatpush2.msra.mxu0 0.0
    %3810 = vmatprep.subr.mxu0 0.0
    %3811 = vmatpush2.msra.mxu0 0.0
    %3812 = vmatprep.subr.mxu0 0.0
    %3813 = vmatpush2.msra.mxu0 0.0
    %3814 = vmatprep.subr.mxu0 0.0
    %3815 = vmatpush2.msra.mxu0 0.0
    %3816 = vmatprep.subr.mxu0 0.0
    %3817 = vmatpush2.msra.mxu0 0.0
    %3818 = vmatprep.subr.mxu0 0.0
    %3819 = vmatpush2.msra.mxu0 0.0
    %3820 = vmatprep.subr.mxu0 0.0
    %3821 = vmatpush2.msra.mxu0 0.0
    %3822 = vmatprep.mubr.f32.mxu0 0.0
    %3823 = vmatmul.mubr.f32.gmra.mxu0 %v3756
    %v3824 = vpop.f32.mrf.mxu0
    %v3825 = vadd.f32 0.0, %v3824
    %v3826 = vpop.f32.mrf.mxu0
    %3827 = vdwg.mxu0
    %v3828 = vadd.f32 %v1964, %v3825
    %v3829 = vxor.u32 %v3828, 2147483648
    %v3830 = vmul.f32 %v3829, 1.442695
    %v3831 = vpow.pop %v3830
    %v3832 = vadd.f32 %v3831, 1.0
    %v3833 = vrcp.pop %v3832
    %v3834 = vmul.f32 1.0, %v3833
    %v3835 = vtanh.pop %v3828
    %v3836 = vmul.f32 %v3834, %v3745
    %3838 = vrot.lane.b32.xlu0 %v3835, 80
    %v3839 = vpop.permute.xlu0 %3838
    %v3841 = vmul.f32 %v3834, %v3839
    %3843 = vrot.lane.b32.xlu0 %v3841, 16
    %v3844 = vpop.permute.xlu0 %3843
    %v3846 = vadd.f32 %v3836, %v3844
    %v3847 = vtanh.pop %v3846
    %3849 = vrot.lane.b32.xlu0 %v3847, 16
    %v3850 = vpop.permute.xlu0 %3849
    %v3852 = vmul.f32 %v3834, %v3850
    %v3853 = vmax.f32 %v3852, 0.0
    %3855 = vrot.lane.b32.xlu0 %v3852, 96
    %v3856 = vpop.permute.xlu0 %3855
    %v3857 = vsel %vm520, %v3856, 0
    %3859 = vmatprep.subr.mxu0 0.0
    %3860 = vmatpush1.msra.mxu0 0.0
    %3861 = vmatprep.subr.mxu0 0.0
    %3862 = vmatpush1.msra.mxu0 0.0
    %3863 = vmatprep.subr.mxu0 0.0
    %3864 = vmatpush1.msra.mxu0 0.0
    %3865 = vmatprep.subr.mxu0 0.0
    %3866 = vmatpush1.msra.mxu0 0.0
    %3867 = vmatprep.subr.mxu0 0.0
    %3868 = vmatpush1.msra.mxu0 0.0
    %3869 = vmatprep.subr.mxu0 0.0
    %3870 = vmatpush1.msra.mxu0 0.0
    %3871 = vmatprep.subr.mxu0 0.0
    %3872 = vmatpush1.msra.mxu0 0.0
    %3873 = vmatprep.subr.mxu0 0.0
    %3874 = vmatpush1.msra.mxu0 0.0
    %3875 = vmatprep.subr.mxu0 0.0
    %3876 = vmatpush1.msra.mxu0 0.0
    %3877 = vmatprep.subr.mxu0 0.0
    %3878 = vmatpush1.msra.mxu0 0.0
    %3879 = vmatprep.subr.mxu0 0.0
    %3880 = vmatpush1.msra.mxu0 0.0
    %3881 = vmatprep.subr.mxu0 0.0
    %3882 = vmatpush1.msra.mxu0 0.0
    %3883 = vmatprep.subr.mxu0 0.0
    %3884 = vmatpush1.msra.mxu0 0.0
    %3885 = vmatprep.subr.mxu0 0.0
    %3886 = vmatpush1.msra.mxu0 0.0
    %3887 = vmatprep.subr.mxu0 0.0
    %3888 = vmatpush1.msra.mxu0 %v49
    %3889 = vmatprep.subr.mxu0 0.0
    %3890 = vmatpush1.msra.mxu0 %v48
    %3891 = vmatprep.subr.mxu0 0.0
    %3892 = vmatpush2.msra.mxu0 0.0
    %3893 = vmatprep.subr.mxu0 0.0
    %3894 = vmatpush2.msra.mxu0 0.0
    %3895 = vmatprep.subr.mxu0 0.0
    %3896 = vmatpush2.msra.mxu0 0.0
    %3897 = vmatprep.subr.mxu0 0.0
    %3898 = vmatpush2.msra.mxu0 0.0
    %3899 = vmatprep.subr.mxu0 0.0
    %3900 = vmatpush2.msra.mxu0 0.0
    %3901 = vmatprep.subr.mxu0 0.0
    %3902 = vmatpush2.msra.mxu0 0.0
    %3903 = vmatprep.subr.mxu0 0.0
    %3904 = vmatpush2.msra.mxu0 0.0
    %3905 = vmatprep.subr.mxu0 0.0
    %3906 = vmatpush2.msra.mxu0 0.0
    %3907 = vmatprep.subr.mxu0 0.0
    %3908 = vmatpush2.msra.mxu0 0.0
    %3909 = vmatprep.subr.mxu0 0.0
    %3910 = vmatpush2.msra.mxu0 0.0
    %3911 = vmatprep.subr.mxu0 0.0
    %3912 = vmatpush2.msra.mxu0 0.0
    %3913 = vmatprep.subr.mxu0 0.0
    %3914 = vmatpush2.msra.mxu0 0.0
    %3915 = vmatprep.subr.mxu0 0.0
    %3916 = vmatpush2.msra.mxu0 0.0
    %3917 = vmatprep.subr.mxu0 0.0
    %3918 = vmatpush2.msra.mxu0 0.0
    %3919 = vmatprep.subr.mxu0 0.0
    %3920 = vmatpush2.msra.mxu0 0.0
    %3921 = vmatprep.subr.mxu0 0.0
    %3922 = vmatpush2.msra.mxu0 0.0
    %3923 = vmatprep.mubr.f32.mxu0 0.0
    %3924 = vmatmul.mubr.f32.gmra.mxu0 %v3857
    %v3925 = vpop.f32.mrf.mxu0
    %v3926 = vadd.f32 0.0, %v3925
    %v3927 = vpop.f32.mrf.mxu0
    %3928 = vdwg.mxu0
    %v3929 = vadd.f32 %v2144, %v3926
    %v3930 = vxor.u32 %v3929, 2147483648
    %v3931 = vmul.f32 %v3930, 1.442695
    %v3932 = vpow.pop %v3931
    %v3933 = vadd.f32 %v3932, 1.0
    %v3934 = vrcp.pop %v3933
    %v3935 = vmul.f32 1.0, %v3934
    %v3936 = vtanh.pop %v3929
    %v3937 = vmul.f32 %v3935, %v3846
    %3939 = vrot.lane.b32.xlu0 %v3936, 80
    %v3940 = vpop.permute.xlu0 %3939
    %v3942 = vmul.f32 %v3935, %v3940
    %3944 = vrot.lane.b32.xlu0 %v3942, 16
    %v3945 = vpop.permute.xlu0 %3944
    %v3947 = vadd.f32 %v3937, %v3945
    %v3948 = vtanh.pop %v3947
    %3950 = vrot.lane.b32.xlu0 %v3948, 16
    %v3951 = vpop.permute.xlu0 %3950
    %v3953 = vmul.f32 %v3935, %v3951
    %v3954 = vmax.f32 %v3953, 0.0
    %3956 = vrot.lane.b32.xlu0 %v3953, 96
    %v3957 = vpop.permute.xlu0 %3956
    %v3958 = vsel %vm520, %v3957, 0
    %3960 = vmatprep.subr.mxu0 0.0
    %3961 = vmatpush1.msra.mxu0 0.0
    %3962 = vmatprep.subr.mxu0 0.0
    %3963 = vmatpush1.msra.mxu0 0.0
    %3964 = vmatprep.subr.mxu0 0.0
    %3965 = vmatpush1.msra.mxu0 0.0
    %3966 = vmatprep.subr.mxu0 0.0
    %3967 = vmatpush1.msra.mxu0 0.0
    %3968 = vmatprep.subr.mxu0 0.0
    %3969 = vmatpush1.msra.mxu0 0.0
    %3970 = vmatprep.subr.mxu0 0.0
    %3971 = vmatpush1.msra.mxu0 0.0
    %3972 = vmatprep.subr.mxu0 0.0
    %3973 = vmatpush1.msra.mxu0 0.0
    %3974 = vmatprep.subr.mxu0 0.0
    %3975 = vmatpush1.msra.mxu0 0.0
    %3976 = vmatprep.subr.mxu0 0.0
    %3977 = vmatpush1.msra.mxu0 0.0
    %3978 = vmatprep.subr.mxu0 0.0
    %3979 = vmatpush1.msra.mxu0 0.0
    %3980 = vmatprep.subr.mxu0 0.0
    %3981 = vmatpush1.msra.mxu0 0.0
    %3982 = vmatprep.subr.mxu0 0.0
    %3983 = vmatpush1.msra.mxu0 0.0
    %3984 = vmatprep.subr.mxu0 0.0
    %3985 = vmatpush1.msra.mxu0 0.0
    %3986 = vmatprep.subr.mxu0 0.0
    %3987 = vmatpush1.msra.mxu0 0.0
    %3988 = vmatprep.subr.mxu0 0.0
    %3989 = vmatpush1.msra.mxu0 %v49
    %3990 = vmatprep.subr.mxu0 0.0
    %3991 = vmatpush1.msra.mxu0 %v48
    %3992 = vmatprep.subr.mxu0 0.0
    %3993 = vmatpush2.msra.mxu0 0.0
    %3994 = vmatprep.subr.mxu0 0.0
    %3995 = vmatpush2.msra.mxu0 0.0
    %3996 = vmatprep.subr.mxu0 0.0
    %3997 = vmatpush2.msra.mxu0 0.0
    %3998 = vmatprep.subr.mxu0 0.0
    %3999 = vmatpush2.msra.mxu0 0.0
    %4000 = vmatprep.subr.mxu0 0.0
    %4001 = vmatpush2.msra.mxu0 0.0
    %4002 = vmatprep.subr.mxu0 0.0
    %4003 = vmatpush2.msra.mxu0 0.0
    %4004 = vmatprep.subr.mxu0 0.0
    %4005 = vmatpush2.msra.mxu0 0.0
    %4006 = vmatprep.subr.mxu0 0.0
    %4007 = vmatpush2.msra.mxu0 0.0
    %4008 = vmatprep.subr.mxu0 0.0
    %4009 = vmatpush2.msra.mxu0 0.0
    %4010 = vmatprep.subr.mxu0 0.0
    %4011 = vmatpush2.msra.mxu0 0.0
    %4012 = vmatprep.subr.mxu0 0.0
    %4013 = vmatpush2.msra.mxu0 0.0
    %4014 = vmatprep.subr.mxu0 0.0
    %4015 = vmatpush2.msra.mxu0 0.0
    %4016 = vmatprep.subr.mxu0 0.0
    %4017 = vmatpush2.msra.mxu0 0.0
    %4018 = vmatprep.subr.mxu0 0.0
    %4019 = vmatpush2.msra.mxu0 0.0
    %4020 = vmatprep.subr.mxu0 0.0
    %4021 = vmatpush2.msra.mxu0 0.0
    %4022 = vmatprep.subr.mxu0 0.0
    %4023 = vmatpush2.msra.mxu0 0.0
    %4024 = vmatprep.mubr.f32.mxu0 0.0
    %4025 = vmatmul.mubr.f32.gmra.mxu0 %v3958
    %v4026 = vpop.f32.mrf.mxu0
    %v4027 = vadd.f32 0.0, %v4026
    %v4028 = vpop.f32.mrf.mxu0
    %4029 = vdwg.mxu0
    %v4030 = vadd.f32 %v2324, %v4027
    %v4031 = vxor.u32 %v4030, 2147483648
    %v4032 = vmul.f32 %v4031, 1.442695
    %v4033 = vpow.pop %v4032
    %v4034 = vadd.f32 %v4033, 1.0
    %v4035 = vrcp.pop %v4034
    %v4036 = vmul.f32 1.0, %v4035
    %v4037 = vtanh.pop %v4030
    %v4038 = vmul.f32 %v4036, %v3947
    %4040 = vrot.lane.b32.xlu0 %v4037, 80
    %v4041 = vpop.permute.xlu0 %4040
    %v4043 = vmul.f32 %v4036, %v4041
    %4045 = vrot.lane.b32.xlu0 %v4043, 16
    %v4046 = vpop.permute.xlu0 %4045
    %v4048 = vadd.f32 %v4038, %v4046
    %v4049 = vtanh.pop %v4048
    %4051 = vrot.lane.b32.xlu0 %v4049, 16
    %v4052 = vpop.permute.xlu0 %4051
    %v4054 = vmul.f32 %v4036, %v4052
    %v4055 = vmax.f32 %v4054, 0.0
    %4057 = vrot.lane.b32.xlu0 %v4054, 96
    %v4058 = vpop.permute.xlu0 %4057
    %v4059 = vsel %vm520, %v4058, 0
    %4061 = vmatprep.subr.mxu0 0.0
    %4062 = vmatpush1.msra.mxu0 0.0
    %4063 = vmatprep.subr.mxu0 0.0
    %4064 = vmatpush1.msra.mxu0 0.0
    %4065 = vmatprep.subr.mxu0 0.0
    %4066 = vmatpush1.msra.mxu0 0.0
    %4067 = vmatprep.subr.mxu0 0.0
    %4068 = vmatpush1.msra.mxu0 0.0
    %4069 = vmatprep.subr.mxu0 0.0
    %4070 = vmatpush1.msra.mxu0 0.0
    %4071 = vmatprep.subr.mxu0 0.0
    %4072 = vmatpush1.msra.mxu0 0.0
    %4073 = vmatprep.subr.mxu0 0.0
    %4074 = vmatpush1.msra.mxu0 0.0
    %4075 = vmatprep.subr.mxu0 0.0
    %4076 = vmatpush1.msra.mxu0 0.0
    %4077 = vmatprep.subr.mxu0 0.0
    %4078 = vmatpush1.msra.mxu0 0.0
    %4079 = vmatprep.subr.mxu0 0.0
    %4080 = vmatpush1.msra.mxu0 0.0
    %4081 = vmatprep.subr.mxu0 0.0
    %4082 = vmatpush1.msra.mxu0 0.0
    %4083 = vmatprep.subr.mxu0 0.0
    %4084 = vmatpush1.msra.mxu0 0.0
    %4085 = vmatprep.subr.mxu0 0.0
    %4086 = vmatpush1.msra.mxu0 0.0
    %4087 = vmatprep.subr.mxu0 0.0
    %4088 = vmatpush1.msra.mxu0 0.0
    %4089 = vmatprep.subr.mxu0 0.0
    %4090 = vmatpush1.msra.mxu0 %v49
    %4091 = vmatprep.subr.mxu0 0.0
    %4092 = vmatpush1.msra.mxu0 %v48
    %4093 = vmatprep.subr.mxu0 0.0
    %4094 = vmatpush2.msra.mxu0 0.0
    %4095 = vmatprep.subr.mxu0 0.0
    %4096 = vmatpush2.msra.mxu0 0.0
    %4097 = vmatprep.subr.mxu0 0.0
    %4098 = vmatpush2.msra.mxu0 0.0
    %4099 = vmatprep.subr.mxu0 0.0
    %4100 = vmatpush2.msra.mxu0 0.0
    %4101 = vmatprep.subr.mxu0 0.0
    %4102 = vmatpush2.msra.mxu0 0.0
    %4103 = vmatprep.subr.mxu0 0.0
    %4104 = vmatpush2.msra.mxu0 0.0
    %4105 = vmatprep.subr.mxu0 0.0
    %4106 = vmatpush2.msra.mxu0 0.0
    %4107 = vmatprep.subr.mxu0 0.0
    %4108 = vmatpush2.msra.mxu0 0.0
    %4109 = vmatprep.subr.mxu0 0.0
    %4110 = vmatpush2.msra.mxu0 0.0
    %4111 = vmatprep.subr.mxu0 0.0
    %4112 = vmatpush2.msra.mxu0 0.0
    %4113 = vmatprep.subr.mxu0 0.0
    %4114 = vmatpush2.msra.mxu0 0.0
    %4115 = vmatprep.subr.mxu0 0.0
    %4116 = vmatpush2.msra.mxu0 0.0
    %4117 = vmatprep.subr.mxu0 0.0
    %4118 = vmatpush2.msra.mxu0 0.0
    %4119 = vmatprep.subr.mxu0 0.0
    %4120 = vmatpush2.msra.mxu0 0.0
    %4121 = vmatprep.subr.mxu0 0.0
    %4122 = vmatpush2.msra.mxu0 0.0
    %4123 = vmatprep.subr.mxu0 0.0
    %4124 = vmatpush2.msra.mxu0 0.0
    %4125 = vmatprep.mubr.f32.mxu0 0.0
    %4126 = vmatmul.mubr.f32.gmra.mxu0 %v4059
    %v4127 = vpop.f32.mrf.mxu0
    %v4128 = vadd.f32 0.0, %v4127
    %v4129 = vpop.f32.mrf.mxu0
    %4130 = vdwg.mxu0
    %v4131 = vadd.f32 %v2505, %v4128
    %v4132 = vxor.u32 %v4131, 2147483648
    %v4133 = vmul.f32 %v4132, 1.442695
    %v4134 = vpow.pop %v4133
    %v4135 = vadd.f32 %v4134, 1.0
    %v4136 = vrcp.pop %v4135
    %v4137 = vmul.f32 1.0, %v4136
    %v4138 = vtanh.pop %v4131
    %v4139 = vmul.f32 %v4137, %v4048
    %4141 = vrot.lane.b32.xlu0 %v4138, 80
    %v4142 = vpop.permute.xlu0 %4141
    %v4144 = vmul.f32 %v4137, %v4142
    %4146 = vrot.lane.b32.xlu0 %v4144, 16
    %v4147 = vpop.permute.xlu0 %4146
    %v4149 = vadd.f32 %v4139, %v4147
    %v4150 = vtanh.pop %v4149
    %4152 = vrot.lane.b32.xlu0 %v4150, 16
    %v4153 = vpop.permute.xlu0 %4152
    %v4155 = vmul.f32 %v4137, %v4153
    %v4156 = vmax.f32 %v4155, 0.0
    %4158 = vrot.lane.b32.xlu0 %v4155, 96
    %v4159 = vpop.permute.xlu0 %4158
    %v4160 = vsel %vm520, %v4159, 0
    %4162 = vmatprep.subr.mxu0 0.0
    %4163 = vmatpush1.msra.mxu0 0.0
    %4164 = vmatprep.subr.mxu0 0.0
    %4165 = vmatpush1.msra.mxu0 0.0
    %4166 = vmatprep.subr.mxu0 0.0
    %4167 = vmatpush1.msra.mxu0 0.0
    %4168 = vmatprep.subr.mxu0 0.0
    %4169 = vmatpush1.msra.mxu0 0.0
    %4170 = vmatprep.subr.mxu0 0.0
    %4171 = vmatpush1.msra.mxu0 0.0
    %4172 = vmatprep.subr.mxu0 0.0
    %4173 = vmatpush1.msra.mxu0 0.0
    %4174 = vmatprep.subr.mxu0 0.0
    %4175 = vmatpush1.msra.mxu0 0.0
    %4176 = vmatprep.subr.mxu0 0.0
    %4177 = vmatpush1.msra.mxu0 0.0
    %4178 = vmatprep.subr.mxu0 0.0
    %4179 = vmatpush1.msra.mxu0 0.0
    %4180 = vmatprep.subr.mxu0 0.0
    %4181 = vmatpush1.msra.mxu0 0.0
    %4182 = vmatprep.subr.mxu0 0.0
    %4183 = vmatpush1.msra.mxu0 0.0
    %4184 = vmatprep.subr.mxu0 0.0
    %4185 = vmatpush1.msra.mxu0 0.0
    %4186 = vmatprep.subr.mxu0 0.0
    %4187 = vmatpush1.msra.mxu0 0.0
    %4188 = vmatprep.subr.mxu0 0.0
    %4189 = vmatpush1.msra.mxu0 0.0
    %4190 = vmatprep.subr.mxu0 0.0
    %4191 = vmatpush1.msra.mxu0 %v49
    %4192 = vmatprep.subr.mxu0 0.0
    %4193 = vmatpush1.msra.mxu0 %v48
    %4194 = vmatprep.subr.mxu0 0.0
    %4195 = vmatpush2.msra.mxu0 0.0
    %4196 = vmatprep.subr.mxu0 0.0
    %4197 = vmatpush2.msra.mxu0 0.0
    %4198 = vmatprep.subr.mxu0 0.0
    %4199 = vmatpush2.msra.mxu0 0.0
    %4200 = vmatprep.subr.mxu0 0.0
    %4201 = vmatpush2.msra.mxu0 0.0
    %4202 = vmatprep.subr.mxu0 0.0
    %4203 = vmatpush2.msra.mxu0 0.0
    %4204 = vmatprep.subr.mxu0 0.0
    %4205 = vmatpush2.msra.mxu0 0.0
    %4206 = vmatprep.subr.mxu0 0.0
    %4207 = vmatpush2.msra.mxu0 0.0
    %4208 = vmatprep.subr.mxu0 0.0
    %4209 = vmatpush2.msra.mxu0 0.0
    %4210 = vmatprep.subr.mxu0 0.0
    %4211 = vmatpush2.msra.mxu0 0.0
    %4212 = vmatprep.subr.mxu0 0.0
    %4213 = vmatpush2.msra.mxu0 0.0
    %4214 = vmatprep.subr.mxu0 0.0
    %4215 = vmatpush2.msra.mxu0 0.0
    %4216 = vmatprep.subr.mxu0 0.0
    %4217 = vmatpush2.msra.mxu0 0.0
    %4218 = vmatprep.subr.mxu0 0.0
    %4219 = vmatpush2.msra.mxu0 0.0
    %4220 = vmatprep.subr.mxu0 0.0
    %4221 = vmatpush2.msra.mxu0 0.0
    %4222 = vmatprep.subr.mxu0 0.0
    %4223 = vmatpush2.msra.mxu0 0.0
    %4224 = vmatprep.subr.mxu0 0.0
    %4225 = vmatpush2.msra.mxu0 0.0
    %4226 = vmatprep.mubr.f32.mxu0 0.0
    %4227 = vmatmul.mubr.f32.gmra.mxu0 %v4160
    %v4228 = vpop.f32.mrf.mxu0
    %v4229 = vadd.f32 0.0, %v4228
    %v4230 = vpop.f32.mrf.mxu0
    %4231 = vdwg.mxu0
    %v4232 = vadd.f32 %v2686, %v4229
    %v4233 = vxor.u32 %v4232, 2147483648
    %v4234 = vmul.f32 %v4233, 1.442695
    %v4235 = vpow.pop %v4234
    %v4236 = vadd.f32 %v4235, 1.0
    %v4237 = vrcp.pop %v4236
    %v4238 = vmul.f32 1.0, %v4237
    %v4239 = vtanh.pop %v4232
    %v4240 = vmul.f32 %v4238, %v4149
    %4242 = vrot.lane.b32.xlu0 %v4239, 80
    %v4243 = vpop.permute.xlu0 %4242
    %v4245 = vmul.f32 %v4238, %v4243
    %4247 = vrot.lane.b32.xlu0 %v4245, 16
    %v4248 = vpop.permute.xlu0 %4247
    %v4250 = vadd.f32 %v4240, %v4248
    %v4251 = vtanh.pop %v4250
    %4253 = vrot.lane.b32.xlu0 %v4251, 16
    %v4254 = vpop.permute.xlu0 %4253
    %v4256 = vmul.f32 %v4238, %v4254
    %v4257 = vmax.f32 %v4256, 0.0
    %4259 = vrot.lane.b32.xlu0 %v4256, 96
    %v4260 = vpop.permute.xlu0 %4259
    %v4261 = vsel %vm520, %v4260, 0
    %4263 = vmatprep.subr.mxu0 0.0
    %4264 = vmatpush1.msra.mxu0 0.0
    %4265 = vmatprep.subr.mxu0 0.0
    %4266 = vmatpush1.msra.mxu0 0.0
    %4267 = vmatprep.subr.mxu0 0.0
    %4268 = vmatpush1.msra.mxu0 0.0
    %4269 = vmatprep.subr.mxu0 0.0
    %4270 = vmatpush1.msra.mxu0 0.0
    %4271 = vmatprep.subr.mxu0 0.0
    %4272 = vmatpush1.msra.mxu0 0.0
    %4273 = vmatprep.subr.mxu0 0.0
    %4274 = vmatpush1.msra.mxu0 0.0
    %4275 = vmatprep.subr.mxu0 0.0
    %4276 = vmatpush1.msra.mxu0 0.0
    %4277 = vmatprep.subr.mxu0 0.0
    %4278 = vmatpush1.msra.mxu0 0.0
    %4279 = vmatprep.subr.mxu0 0.0
    %4280 = vmatpush1.msra.mxu0 0.0
    %4281 = vmatprep.subr.mxu0 0.0
    %4282 = vmatpush1.msra.mxu0 0.0
    %4283 = vmatprep.subr.mxu0 0.0
    %4284 = vmatpush1.msra.mxu0 0.0
    %4285 = vmatprep.subr.mxu0 0.0
    %4286 = vmatpush1.msra.mxu0 0.0
    %4287 = vmatprep.subr.mxu0 0.0
    %4288 = vmatpush1.msra.mxu0 0.0
    %4289 = vmatprep.subr.mxu0 0.0
    %4290 = vmatpush1.msra.mxu0 0.0
    %4291 = vmatprep.subr.mxu0 0.0
    %4292 = vmatpush1.msra.mxu0 %v49
    %4293 = vmatprep.subr.mxu0 0.0
    %4294 = vmatpush1.msra.mxu0 %v48
    %4295 = vmatprep.subr.mxu0 0.0
    %4296 = vmatpush2.msra.mxu0 0.0
    %4297 = vmatprep.subr.mxu0 0.0
    %4298 = vmatpush2.msra.mxu0 0.0
    %4299 = vmatprep.subr.mxu0 0.0
    %4300 = vmatpush2.msra.mxu0 0.0
    %4301 = vmatprep.subr.mxu0 0.0
    %4302 = vmatpush2.msra.mxu0 0.0
    %4303 = vmatprep.subr.mxu0 0.0
    %4304 = vmatpush2.msra.mxu0 0.0
    %4305 = vmatprep.subr.mxu0 0.0
    %4306 = vmatpush2.msra.mxu0 0.0
    %4307 = vmatprep.subr.mxu0 0.0
    %4308 = vmatpush2.msra.mxu0 0.0
    %4309 = vmatprep.subr.mxu0 0.0
    %4310 = vmatpush2.msra.mxu0 0.0
    %4311 = vmatprep.subr.mxu0 0.0
    %4312 = vmatpush2.msra.mxu0 0.0
    %4313 = vmatprep.subr.mxu0 0.0
    %4314 = vmatpush2.msra.mxu0 0.0
    %4315 = vmatprep.subr.mxu0 0.0
    %4316 = vmatpush2.msra.mxu0 0.0
    %4317 = vmatprep.subr.mxu0 0.0
    %4318 = vmatpush2.msra.mxu0 0.0
    %4319 = vmatprep.subr.mxu0 0.0
    %4320 = vmatpush2.msra.mxu0 0.0
    %4321 = vmatprep.subr.mxu0 0.0
    %4322 = vmatpush2.msra.mxu0 0.0
    %4323 = vmatprep.subr.mxu0 0.0
    %4324 = vmatpush2.msra.mxu0 0.0
    %4325 = vmatprep.subr.mxu0 0.0
    %4326 = vmatpush2.msra.mxu0 0.0
    %4327 = vmatprep.mubr.f32.mxu0 0.0
    %4328 = vmatmul.mubr.f32.gmra.mxu0 %v4261
    %v4329 = vpop.f32.mrf.mxu0
    %v4330 = vadd.f32 0.0, %v4329
    %v4331 = vpop.f32.mrf.mxu0
    %4332 = vdwg.mxu0
    %v4333 = vadd.f32 %v2867, %v4330
    %v4334 = vxor.u32 %v4333, 2147483648
    %v4335 = vmul.f32 %v4334, 1.442695
    %v4336 = vpow.pop %v4335
    %v4337 = vadd.f32 %v4336, 1.0
    %v4338 = vrcp.pop %v4337
    %v4339 = vmul.f32 1.0, %v4338
    %v4340 = vtanh.pop %v4333
    %v4341 = vmul.f32 %v4339, %v4250
    %4343 = vrot.lane.b32.xlu0 %v4340, 80
    %v4344 = vpop.permute.xlu0 %4343
    %v4346 = vmul.f32 %v4339, %v4344
    %4348 = vrot.lane.b32.xlu0 %v4346, 16
    %v4349 = vpop.permute.xlu0 %4348
    %v4351 = vadd.f32 %v4341, %v4349
    %v4352 = vtanh.pop %v4351
    %4354 = vrot.lane.b32.xlu0 %v4352, 16
    %v4355 = vpop.permute.xlu0 %4354
    %v4357 = vmul.f32 %v4339, %v4355
    %v4358 = vmax.f32 %v4357, 0.0
    %4360 = vrot.lane.b32.xlu0 %v4357, 96
    %v4361 = vpop.permute.xlu0 %4360
    %v4362 = vsel %vm520, %v4361, 0
    %4364 = vmatprep.subr.mxu0 0.0
    %4365 = vmatpush1.msra.mxu0 0.0
    %4366 = vmatprep.subr.mxu0 0.0
    %4367 = vmatpush1.msra.mxu0 0.0
    %4368 = vmatprep.subr.mxu0 0.0
    %4369 = vmatpush1.msra.mxu0 0.0
    %4370 = vmatprep.subr.mxu0 0.0
    %4371 = vmatpush1.msra.mxu0 0.0
    %4372 = vmatprep.subr.mxu0 0.0
    %4373 = vmatpush1.msra.mxu0 0.0
    %4374 = vmatprep.subr.mxu0 0.0
    %4375 = vmatpush1.msra.mxu0 0.0
    %4376 = vmatprep.subr.mxu0 0.0
    %4377 = vmatpush1.msra.mxu0 0.0
    %4378 = vmatprep.subr.mxu0 0.0
    %4379 = vmatpush1.msra.mxu0 0.0
    %4380 = vmatprep.subr.mxu0 0.0
    %4381 = vmatpush1.msra.mxu0 0.0
    %4382 = vmatprep.subr.mxu0 0.0
    %4383 = vmatpush1.msra.mxu0 0.0
    %4384 = vmatprep.subr.mxu0 0.0
    %4385 = vmatpush1.msra.mxu0 0.0
    %4386 = vmatprep.subr.mxu0 0.0
    %4387 = vmatpush1.msra.mxu0 0.0
    %4388 = vmatprep.subr.mxu0 0.0
    %4389 = vmatpush1.msra.mxu0 0.0
    %4390 = vmatprep.subr.mxu0 0.0
    %4391 = vmatpush1.msra.mxu0 0.0
    %4392 = vmatprep.subr.mxu0 0.0
    %4393 = vmatpush1.msra.mxu0 %v49
    %4394 = vmatprep.subr.mxu0 0.0
    %4395 = vmatpush1.msra.mxu0 %v48
    %4396 = vmatprep.subr.mxu0 0.0
    %4397 = vmatpush2.msra.mxu0 0.0
    %4398 = vmatprep.subr.mxu0 0.0
    %4399 = vmatpush2.msra.mxu0 0.0
    %4400 = vmatprep.subr.mxu0 0.0
    %4401 = vmatpush2.msra.mxu0 0.0
    %4402 = vmatprep.subr.mxu0 0.0
    %4403 = vmatpush2.msra.mxu0 0.0
    %4404 = vmatprep.subr.mxu0 0.0
    %4405 = vmatpush2.msra.mxu0 0.0
    %4406 = vmatprep.subr.mxu0 0.0
    %4407 = vmatpush2.msra.mxu0 0.0
    %4408 = vmatprep.subr.mxu0 0.0
    %4409 = vmatpush2.msra.mxu0 0.0
    %4410 = vmatprep.subr.mxu0 0.0
    %4411 = vmatpush2.msra.mxu0 0.0
    %4412 = vmatprep.subr.mxu0 0.0
    %4413 = vmatpush2.msra.mxu0 0.0
    %4414 = vmatprep.subr.mxu0 0.0
    %4415 = vmatpush2.msra.mxu0 0.0
    %4416 = vmatprep.subr.mxu0 0.0
    %4417 = vmatpush2.msra.mxu0 0.0
    %4418 = vmatprep.subr.mxu0 0.0
    %4419 = vmatpush2.msra.mxu0 0.0
    %4420 = vmatprep.subr.mxu0 0.0
    %4421 = vmatpush2.msra.mxu0 0.0
    %4422 = vmatprep.subr.mxu0 0.0
    %4423 = vmatpush2.msra.mxu0 0.0
    %4424 = vmatprep.subr.mxu0 0.0
    %4425 = vmatpush2.msra.mxu0 0.0
    %4426 = vmatprep.subr.mxu0 0.0
    %4427 = vmatpush2.msra.mxu0 0.0
    %4428 = vmatprep.mubr.f32.mxu0 0.0
    %4429 = vmatmul.mubr.f32.gmra.mxu0 %v4362
    %v4430 = vpop.f32.mrf.mxu0
    %v4431 = vadd.f32 0.0, %v4430
    %v4432 = vpop.f32.mrf.mxu0
    %4433 = vdwg.mxu0
    %v4434 = vadd.f32 %v3048, %v4431
    %v4435 = vxor.u32 %v4434, 2147483648
    %v4436 = vmul.f32 %v4435, 1.442695
    %v4437 = vpow.pop %v4436
    %v4438 = vadd.f32 %v4437, 1.0
    %v4439 = vrcp.pop %v4438
    %v4440 = vmul.f32 1.0, %v4439
    %v4441 = vtanh.pop %v4434
    %v4442 = vmul.f32 %v4440, %v4351
    %4444 = vrot.lane.b32.xlu0 %v4441, 80
    %v4445 = vpop.permute.xlu0 %4444
    %v4447 = vmul.f32 %v4440, %v4445
    %4449 = vrot.lane.b32.xlu0 %v4447, 16
    %v4450 = vpop.permute.xlu0 %4449
    %v4452 = vadd.f32 %v4442, %v4450
    %v4453 = vtanh.pop %v4452
    %4455 = vrot.lane.b32.xlu0 %v4453, 16
    %v4456 = vpop.permute.xlu0 %4455
    %v4458 = vmul.f32 %v4440, %v4456
    %v4459 = vmax.f32 %v4458, 0.0
    %4461 = vrot.lane.b32.xlu0 %v3146, 96
    %v4462 = vpop.permute.xlu0 %4461
    %4465 = vrot.lane.b32.xlu0 %v3247, 112
    %v4466 = vpop.permute.xlu0 %4465
    %4469 = vrot.lane.b32.xlu0 %v3449, 16
    %v4470 = vpop.permute.xlu0 %4469
    %4473 = vrot.lane.b32.xlu0 %v3550, 32
    %v4474 = vpop.permute.xlu0 %4473
    %4477 = vrot.lane.b32.xlu0 %v3651, 48
    %v4478 = vpop.permute.xlu0 %4477
    %4481 = vrot.lane.b32.xlu0 %v3752, 64
    %v4482 = vpop.permute.xlu0 %4481
    %4485 = vrot.lane.b32.xlu0 %v3853, 80
    %v4486 = vpop.permute.xlu0 %4485
    %4489 = vrot.lane.b32.xlu0 %v3954, 96
    %v4490 = vpop.permute.xlu0 %4489
    %4493 = vrot.lane.b32.xlu0 %v4055, 112
    %v4494 = vpop.permute.xlu0 %4493
    %4497 = vrot.lane.b32.xlu0 %v4257, 16
    %v4498 = vpop.permute.xlu0 %4497
    %4501 = vrot.lane.b32.xlu0 %v4358, 32
    %v4502 = vpop.permute.xlu0 %4501
    %4505 = vrot.lane.b32.xlu0 %v4459, 48
    %v4506 = vpop.permute.xlu0 %4505
    %v4508 = vsel %vm520, %v4462, %v4466
    %vm4509 = vcmask 261120
    %v4510 = vsel %vm4509, %v4508, %v3348
    %vm4511 = vcmask 392192
    %v4512 = vsel %vm4511, %v4510, %v4470
    %vm4513 = vcmask 523264
    %v4514 = vsel %vm4513, %v4512, %v4474
    %vm4515 = vcmask 654336
    %v4516 = vsel %vm4515, %v4514, %v4478
    %vm4517 = vcmask 785408
    %v4518 = vsel %vm4517, %v4516, %v4482
    %vm4519 = vcmask 916480
    %v4520 = vsel %vm4519, %v4518, %v4486
    %v4521 = vsel %vm520, %v4490, %v4494
    %v4522 = vsel %vm4509, %v4521, %v4156
    %v4523 = vsel %vm4511, %v4522, %v4498
    %v4524 = vsel %vm4513, %v4523, %v4502
    %v4525 = vsel %vm4515, %v4524, %v4506
    %v4526 = vld [vmem:[%s9] sm:$0xff]
    %v4527 = vld [vmem:[%s9 + $0x8] sm:$0xff]
    %v4528 = vld [vmem:[%s9 + $0x10] sm:$0xff]
    %v4529 = vld [vmem:[%s9 + $0x18] sm:$0xff]
    %v4530 = vld [vmem:[%s9 + $0x20] sm:$0xff]
    %v4531 = vld [vmem:[%s9 + $0x28] sm:$0xff]
    %v4532 = vld [vmem:[%s9 + $0x30] sm:$0xff]
    %v4533 = vld [vmem:[%s9 + $0x38] sm:$0xff]
    %v4534 = vld [vmem:[%s9 + $0x40] sm:$0xff]
    %v4535 = vld [vmem:[%s9 + $0x48] sm:$0xff]
    %v4536 = vld [vmem:[%s9 + $0x50] sm:$0xff]
    %v4537 = vld [vmem:[%s9 + $0x58] sm:$0xff]
    %v4538 = vld [vmem:[%s9 + $0x60] sm:$0xff]
    %v4539 = vld [vmem:[%s9 + $0x68] sm:$0xff]
    %v4540 = vld [vmem:[%s9 + $0x70] sm:$0xff]
    %v4541 = vld [vmem:[%s9 + $0x78] sm:$0xff]
    %v4542 = vld [vmem:[%s9 + $0x80] sm:$0xff]
    %v4543 = vld [vmem:[%s9 + $0x88] sm:$0xff]
    %v4544 = vld [vmem:[%s9 + $0x90] sm:$0xff]
    %v4545 = vld [vmem:[%s9 + $0x98] sm:$0xff]
    %v4546 = vld [vmem:[%s9 + $0xa0] sm:$0xff]
    %v4547 = vld [vmem:[%s9 + $0xa8] sm:$0xff]
    %v4548 = vld [vmem:[%s9 + $0xb0] sm:$0xff]
    %v4549 = vld [vmem:[%s9 + $0xb8] sm:$0xff]
    %v4550 = vld [vmem:[%s9 + $0xc0] sm:$0xff]
    %v4551 = vld [vmem:[%s9 + $0xc8] sm:$0xff]
    %v4552 = vld [vmem:[%s9 + $0xd0] sm:$0xff]
    %v4553 = vld [vmem:[%s9 + $0xd8] sm:$0xff]
    %v4554 = vld [vmem:[%s10] sm:$0x1]
    %v4556 = vlaneseq
    %v4557 = vshrl.u32 %v4556, 7
    %v4558 = vsub.s32 0, %v4557
    %v4559 = vrot.slane %v4554, %v4558
    %v4562 = vsel %vm4517, %v4525, 0
    %4564 = vmatprep.subr.mxu0 0.0
    %4565 = vmatpush1.msra.mxu0 %v4541
    %4566 = vmatprep.subr.mxu0 0.0
    %4567 = vmatpush1.msra.mxu0 %v4540
    %4568 = vmatprep.subr.mxu0 0.0
    %4569 = vmatpush1.msra.mxu0 %v4539
    %4570 = vmatprep.subr.mxu0 0.0
    %4571 = vmatpush1.msra.mxu0 %v4538
    %4572 = vmatprep.subr.mxu0 0.0
    %4573 = vmatpush1.msra.mxu0 %v4537
    %4574 = vmatprep.subr.mxu0 0.0
    %4575 = vmatpush1.msra.mxu0 %v4536
    %4576 = vmatprep.subr.mxu0 0.0
    %4577 = vmatpush1.msra.mxu0 %v4535
    %4578 = vmatprep.subr.mxu0 0.0
    %4579 = vmatpush1.msra.mxu0 %v4534
    %4580 = vmatprep.subr.mxu0 0.0
    %4581 = vmatpush1.msra.mxu0 %v4533
    %4582 = vmatprep.subr.mxu0 0.0
    %4583 = vmatpush1.msra.mxu0 %v4532
    %4584 = vmatprep.subr.mxu0 0.0
    %4585 = vmatpush1.msra.mxu0 %v4531
    %4586 = vmatprep.subr.mxu0 0.0
    %4587 = vmatpush1.msra.mxu0 %v4530
    %4588 = vmatprep.subr.mxu0 0.0
    %4589 = vmatpush1.msra.mxu0 %v4529
    %4590 = vmatprep.subr.mxu0 0.0
    %4591 = vmatpush1.msra.mxu0 %v4528
    %4592 = vmatprep.subr.mxu0 0.0
    %4593 = vmatpush1.msra.mxu0 %v4527
    %4594 = vmatprep.subr.mxu0 0.0
    %4595 = vmatpush1.msra.mxu0 %v4526
    %4596 = vmatprep.subr.mxu0 0.0
    %4597 = vmatpush2.msra.mxu0 0.0
    %4598 = vmatprep.subr.mxu0 0.0
    %4599 = vmatpush2.msra.mxu0 0.0
    %4600 = vmatprep.subr.mxu0 0.0
    %4601 = vmatpush2.msra.mxu0 0.0
    %4602 = vmatprep.subr.mxu0 0.0
    %4603 = vmatpush2.msra.mxu0 0.0
    %4604 = vmatprep.subr.mxu0 0.0
    %4605 = vmatpush2.msra.mxu0 %v4553
    %4606 = vmatprep.subr.mxu0 0.0
    %4607 = vmatpush2.msra.mxu0 %v4552
    %4608 = vmatprep.subr.mxu0 0.0
    %4609 = vmatpush2.msra.mxu0 %v4551
    %4610 = vmatprep.subr.mxu0 0.0
    %4611 = vmatpush2.msra.mxu0 %v4550
    %4612 = vmatprep.subr.mxu0 0.0
    %4613 = vmatpush2.msra.mxu0 %v4549
    %4614 = vmatprep.subr.mxu0 0.0
    %4615 = vmatpush2.msra.mxu0 %v4548
    %4616 = vmatprep.subr.mxu0 0.0
    %4617 = vmatpush2.msra.mxu0 %v4547
    %4618 = vmatprep.subr.mxu0 0.0
    %4619 = vmatpush2.msra.mxu0 %v4546
    %4620 = vmatprep.subr.mxu0 0.0
    %4621 = vmatpush2.msra.mxu0 %v4545
    %4622 = vmatprep.subr.mxu0 0.0
    %4623 = vmatpush2.msra.mxu0 %v4544
    %4624 = vmatprep.subr.mxu0 0.0
    %4625 = vmatpush2.msra.mxu0 %v4543
    %4626 = vmatprep.subr.mxu0 0.0
    %4627 = vmatpush2.msra.mxu0 %v4542
    %4628 = vmatprep.mubr.f32.mxu0 %v4562
    %4629 = vmatmul.mubr.f32.gmra.mxu0 %v4520
    %v4630 = vpop.f32.mrf.mxu0
    %v4631 = vadd.f32 %v4559, %v4630
    %v4632 = vpop.f32.mrf.mxu0
    %4633 = vdwg.mxu0
    %vm4634 = vcmask 66560
    %4635 = vst.msk [vmem:[#allocation2] sm:$0x3] %vm4634, %v4631
    // Predicated region
    $region46: #{cnn_lstm_net_forward.1} parent=1 // pred_check
      _
    $region47: #{cnn_lstm_net_forward.1} parent=1 // pred_check_branch
      %4637 = sbr.rel (0) target = $region49
    $region48: #{cnn_lstm_net_forward.1} parent=1 // pred_region
      %s4639 = ssub.s32 32, 32
      %4640 = vsyncadd [#allocation3], %s4639
      %s4642 = sshll.u32 [#allocation2], 4
      %s4643 = int_to_ptr.vmem [resolvable:$true] %s4642
      %4645 = dma.vmem_to_hbm [thread:$0]  %s4643, 32, %s11, [#allocation3]
    $region49: #{cnn_lstm_net_forward.1} parent=1 // pred_fallthru
      _
    // Predicated region
    $region50: #{cnn_lstm_net_forward.1} parent=1 // pred_check
      _
    $region51: #{cnn_lstm_net_forward.1} parent=1 // pred_check_branch
      %4647 = sbr.rel (0) target = $region53
    $region52: #{cnn_lstm_net_forward.1} parent=1 // pred_region
      %4648 = dma.done [#allocation3], 32
    $region53: #{cnn_lstm_net_forward.1} parent=1 // pred_fallthru
      _
    %4649 = vsyncpa [#allocation3], 1

</llo_original>
